<compile_context>
chip_gen: v5e
topology: v5e:2x2
jax: 0.10.0
libtpu: 0.0.40
codegen_flags: <defaults>
</compile_context>

<pallas_src>
import jax
import jax.numpy as jnp
from jax.experimental import pallas as pl
from jax.experimental.pallas import tpu as pltpu

NO_BOARD_STATES_SAVED = 2            # synthetic choice for the undefined constant
C_IN = NO_BOARD_STATES_SAVED * 3     # = 6
C_PAD = 8                            # input channels zero-padded 6 -> 8 (sublane friendly)
C_OUT = 256
KH = KW = 3
EPS = 1e-5                           # nn.BatchNorm2d default eps

# ~2 MiB f32 output tile -> double-buffered tiles fit comfortably in 32 MiB of
# scoped VMEM on every generation (v5e/v6e: 128 MiB physical, v7x: 64 MiB).
DEFAULT_MAX_ROWS_PER_TILE = 2048
VMEM_LIMIT_BYTES = 32 * 1024 * 1024


def _conv_rows(x_ref, w_ref):
    """3x3 conv on a halo'd NHWC tile as 9 accumulated (rows, C_PAD)@(C_PAD, 256)
    matmuls. Returns (tn*H*W, 256) f32."""
    tn, hp, wp, _ = x_ref.shape
    h, w = hp - 2, wp - 2
    rows = tn * h * w
    x = x_ref[...]                                         # (tn, H+2, W+2, C_PAD)
    acc = jnp.zeros((rows, C_OUT), jnp.float32)
    for kh in range(KH):
        for kw in range(KW):
            xs = x[:, kh:kh + h, kw:kw + w, :].reshape(rows, C_PAD)
            acc = acc + jnp.dot(xs, w_ref[kh * KW + kw],
                                preferred_element_type=jnp.float32)
    return acc


def _stats_kernel(x_ref, w_ref, sum_ref, ssq_ref):
    """Pass 1: conv + accumulate global per-channel sum and sum-of-squares."""
    y = _conv_rows(x_ref, w_ref)                           # (rows, 256) f32

    @pl.when(pl.program_id(0) == 0)
    def _init():
        sum_ref[...] = jnp.zeros_like(sum_ref)
        ssq_ref[...] = jnp.zeros_like(ssq_ref)

    sum_ref[...] += jnp.sum(y, axis=0, keepdims=True)
    ssq_ref[...] += jnp.sum(y * y, axis=0, keepdims=True)


def _apply_kernel(x_ref, w_ref, scale_ref, shift_ref, o_ref):
    """Pass 2: recompute conv, apply folded BN scale/shift + ReLU."""
    y = _conv_rows(x_ref, w_ref)                           # (rows, 256) f32
    y = y * scale_ref[...] + shift_ref[...]                # folded BatchNorm
    y = jnp.maximum(y, 0.0)                                # ReLU
    o_ref[...] = y.reshape(o_ref.shape).astype(o_ref.dtype)


def conv_bn_relu(x_nchw, w_oihw, bias, gamma, beta, *, max_rows_per_tile=None):
    N, C, H, W = x_nchw.shape
    assert C == C_IN
    # Conv bias is mathematically redundant under training-mode BatchNorm
    # (the batch mean subtracts it exactly) -> drop it, saves a (M,256) add.
    del bias

    # NCHW -> NHWC: channels-last keeps the 256 output channels lane-dense.
    # TODO(synk): if the surrounding model can consume NHWC directly, drop the
    # two wrapper transposes (each is a full extra HBM pass over the activation).
    x_nhwc = jnp.transpose(x_nchw, (0, 2, 3, 1)).astype(jnp.float32)
    # Single spatial zero-pad of the tiny 6-channel input (+ channel pad 6->8).
    # im2col is never materialized in HBM.
    x_pad = jnp.pad(x_nhwc, ((0, 0), (1, 1), (1, 1), (0, C_PAD - C_IN)))

    # OIHW -> (KH*KW, C_in_pad, C_out): one (C_in, 256) matrix per filter tap.
    w9 = jnp.transpose(w_oihw, (2, 3, 1, 0)).reshape(KH * KW, C_IN, C_OUT)
    w9 = jnp.pad(w9.astype(jnp.float32), ((0, 0), (0, C_PAD - C_IN), (0, 0)))

    # Tile over the batch dim: each tile gets its 1-pixel halo for free
    # (no overlapping-H blocks needed).
    rows_per_n = H * W
    cap = max_rows_per_tile or DEFAULT_MAX_ROWS_PER_TILE
    tn = max(1, min(N, cap // rows_per_n))
    while N % tn:
        tn -= 1
    n_tiles = N // tn

    x_spec = pl.BlockSpec((tn, H + 2, W + 2, C_PAD), lambda i: (i, 0, 0, 0))
    w_spec = pl.BlockSpec((KH * KW, C_PAD, C_OUT), lambda i: (0, 0, 0))
    vec_spec = pl.BlockSpec((1, C_OUT), lambda i: (0, 0))

    # ---- Pass 1: global per-channel sum / sum-of-squares (resident accumulator)
    s, ssq = pl.pallas_call(
        _stats_kernel,
        out_shape=(jax.ShapeDtypeStruct((1, C_OUT), jnp.float32),
                   jax.ShapeDtypeStruct((1, C_OUT), jnp.float32)),
        grid=(n_tiles,),
        in_specs=[x_spec, w_spec],
        out_specs=(vec_spec, vec_spec),
        compiler_params=pltpu.CompilerParams(
            dimension_semantics=("arbitrary",),
            vmem_limit_bytes=VMEM_LIMIT_BYTES),
    )(x_pad, w9)

    # Fold BatchNorm (training mode, biased variance) into per-channel scale/shift.
    cnt = jnp.float32(N * H * W)
    mean = s / cnt
    var = jnp.maximum(ssq / cnt - mean * mean, 0.0)
    scale = gamma.reshape(1, C_OUT).astype(jnp.float32) * jax.lax.rsqrt(var + EPS)
    shift = beta.reshape(1, C_OUT).astype(jnp.float32) - mean * scale

    # ---- Pass 2: recompute conv per tile (cheap, K=54) + scale/shift + ReLU
    out_nhwc = pl.pallas_call(
        _apply_kernel,
        out_shape=jax.ShapeDtypeStruct((N, H, W, C_OUT), jnp.float32),
        grid=(n_tiles,),
        in_specs=[x_spec, w_spec, vec_spec, vec_spec],
        out_specs=pl.BlockSpec((tn, H, W, C_OUT), lambda i: (i, 0, 0, 0)),
        compiler_params=pltpu.CompilerParams(
            dimension_semantics=("parallel",),   # v7x: shard tiles over 2 TCs
            vmem_limit_bytes=VMEM_LIMIT_BYTES),
    )(x_pad, w9, scale, shift)

    return jnp.transpose(out_nhwc, (0, 3, 1, 2))            # NCHW, like PyTorch


def _reference(x_nchw, w_oihw, bias, gamma, beta):
    y = jax.lax.conv_general_dilated(
        x_nchw, w_oihw, window_strides=(1, 1), padding=((1, 1), (1, 1)),
        dimension_numbers=("NCHW", "OIHW", "NCHW"))
    y = y + bias[None, :, None, None]
    mean = jnp.mean(y, axis=(0, 2, 3), keepdims=True)
    var = jnp.mean((y - mean) ** 2, axis=(0, 2, 3), keepdims=True)
    y = (y - mean) * jax.lax.rsqrt(var + EPS)
    y = y * gamma[None, :, None, None] + beta[None, :, None, None]
    return jnp.maximum(y, 0.0)


if __name__ == "__main__":
    key = jax.random.PRNGKey(0)
    kx, kw, kb, kg, kbeta = jax.random.split(key, 5)

    N, H, W = 8, 8, 8
    x = jax.random.normal(kx, (N, C_IN, H, W), dtype=jnp.float32)

    # Deterministic synthetic parameters (shapes match nn.Conv2d / nn.BatchNorm2d)
    fan_in = C_IN * KH * KW
    w = jax.random.normal(kw, (C_OUT, C_IN, KH, KW), dtype=jnp.float32) / jnp.sqrt(fan_in)
    b = jax.random.normal(kb, (C_OUT,), dtype=jnp.float32) * 0.1
    gamma = 1.0 + 0.1 * jax.random.normal(kg, (C_OUT,), dtype=jnp.float32)
    beta = 0.1 * jax.random.normal(kbeta, (C_OUT,), dtype=jnp.float32)

    ref = _reference(x, w, b, gamma, beta)

    # Default tiling (single tile at this toy size).
    out = jax.block_until_ready(conv_bn_relu(x, w, b, gamma, beta))
    assert out.shape == (N, C_OUT, H, W)
    assert jnp.allclose(out, ref, atol=5e-4, rtol=5e-4), "mismatch vs JAX reference"

    # Force multiple tiles to exercise the cross-tile BN-stats accumulator and
    # the parallel apply pass.
    out_tiled = jax.block_until_ready(
        conv_bn_relu(x, w, b, gamma, beta, max_rows_per_tile=128))
    assert jnp.allclose(out_tiled, ref, atol=5e-4, rtol=5e-4), "tiled mismatch"

    print("KERNEL_OK")
</pallas_src>

<mosaic_0001>
module attributes {stable_mosaic.version = 11 : i64} {
  func.func @_stats_kernel(%arg0: i32, %arg1: memref<8x10x10x8xf32, #tpu.memory_space<vmem>>, %arg2: memref<9x8x256xf32, #tpu.memory_space<vmem>>, %arg3: memref<1x256xf32, #tpu.memory_space<vmem>>, %arg4: memref<1x256xf32, #tpu.memory_space<vmem>>) attributes {dimension_semantics = [#tpu.dimension_semantics<arbitrary>], iteration_bounds = array<i64: 1>, scalar_prefetch = 0 : i64, scratch_operands = 0 : i64, tpu.core_type = #tpu.core_type<tc>, window_params = [{transform_indices = @transform_0, window_bounds = array<i64: 8, 10, 10, 8>}, {pipeline_mode = #tpu.pipeline_mode<synchronous>, transform_indices = @transform_1, window_bounds = array<i64: 9, 8, 256>}, {pipeline_mode = #tpu.pipeline_mode<synchronous>, transform_indices = @transform_2, window_bounds = array<i64: 1, 256>}, {pipeline_mode = #tpu.pipeline_mode<synchronous>, transform_indices = @transform_3, window_bounds = array<i64: 1, 256>}]} {
    %c0 = arith.constant 0 : index
    %c0_0 = arith.constant 0 : index
    %c0_1 = arith.constant 0 : index
    %c0_2 = arith.constant 0 : index
    %0 = vector.load %arg1[%c0, %c0_0, %c0_1, %c0_2] : memref<8x10x10x8xf32, #tpu.memory_space<vmem>>, vector<8x10x10x8xf32>
    %cst = arith.constant 0.000000e+00 : f32
    %1 = vector.broadcast %cst : f32 to vector<512x256xf32>
    %2 = vector.extract_strided_slice %0 {offsets = [0, 0, 0, 0], sizes = [8, 8, 8, 8], strides = [1, 1, 1, 1]} : vector<8x10x10x8xf32> to vector<8x8x8x8xf32>
    %3 = vector.shape_cast %2 : vector<8x8x8x8xf32> to vector<512x8xf32>
    %c0_3 = arith.constant 0 : index
    %c0_4 = arith.constant 0 : index
    %c0_5 = arith.constant 0 : index
    %4 = vector.load %arg2[%c0_3, %c0_4, %c0_5] : memref<9x8x256xf32, #tpu.memory_space<vmem>>, vector<1x8x256xf32>
    %5 = vector.shape_cast %4 : vector<1x8x256xf32> to vector<8x256xf32>
    %cst_6 = arith.constant dense<0.000000e+00> : vector<512x256xf32>
    %6 = tpu.matmul %3, %5, %cst_6 {dimension_numbers = #tpu.dot_dimension_numbers<[1], [0], [0], [1], [0, 0, 1, 1], [], []>} : vector<512x8xf32>, vector<8x256xf32>, vector<512x256xf32> -> vector<512x256xf32>
    %7 = arith.addf %1, %6 : vector<512x256xf32>
    %8 = vector.extract_strided_slice %0 {offsets = [0, 0, 1, 0], sizes = [8, 8, 8, 8], strides = [1, 1, 1, 1]} : vector<8x10x10x8xf32> to vector<8x8x8x8xf32>
    %9 = vector.shape_cast %8 : vector<8x8x8x8xf32> to vector<512x8xf32>
    %c1 = arith.constant 1 : index
    %c0_7 = arith.constant 0 : index
    %c0_8 = arith.constant 0 : index
    %10 = vector.load %arg2[%c1, %c0_7, %c0_8] : memref<9x8x256xf32, #tpu.memory_space<vmem>>, vector<1x8x256xf32>
    %11 = vector.shape_cast %10 : vector<1x8x256xf32> to vector<8x256xf32>
    %cst_9 = arith.constant dense<0.000000e+00> : vector<512x256xf32>
    %12 = tpu.matmul %9, %11, %cst_9 {dimension_numbers = #tpu.dot_dimension_numbers<[1], [0], [0], [1], [0, 0, 1, 1], [], []>} : vector<512x8xf32>, vector<8x256xf32>, vector<512x256xf32> -> vector<512x256xf32>
    %13 = arith.addf %7, %12 : vector<512x256xf32>
    %14 = vector.extract_strided_slice %0 {offsets = [0, 0, 2, 0], sizes = [8, 8, 8, 8], strides = [1, 1, 1, 1]} : vector<8x10x10x8xf32> to vector<8x8x8x8xf32>
    %15 = vector.shape_cast %14 : vector<8x8x8x8xf32> to vector<512x8xf32>
    %c2 = arith.constant 2 : index
    %c0_10 = arith.constant 0 : index
    %c0_11 = arith.constant 0 : index
    %16 = vector.load %arg2[%c2, %c0_10, %c0_11] : memref<9x8x256xf32, #tpu.memory_space<vmem>>, vector<1x8x256xf32>
    %17 = vector.shape_cast %16 : vector<1x8x256xf32> to vector<8x256xf32>
    %cst_12 = arith.constant dense<0.000000e+00> : vector<512x256xf32>
    %18 = tpu.matmul %15, %17, %cst_12 {dimension_numbers = #tpu.dot_dimension_numbers<[1], [0], [0], [1], [0, 0, 1, 1], [], []>} : vector<512x8xf32>, vector<8x256xf32>, vector<512x256xf32> -> vector<512x256xf32>
    %19 = arith.addf %13, %18 : vector<512x256xf32>
    %20 = vector.extract_strided_slice %0 {offsets = [0, 1, 0, 0], sizes = [8, 8, 8, 8], strides = [1, 1, 1, 1]} : vector<8x10x10x8xf32> to vector<8x8x8x8xf32>
    %21 = vector.shape_cast %20 : vector<8x8x8x8xf32> to vector<512x8xf32>
    %c3 = arith.constant 3 : index
    %c0_13 = arith.constant 0 : index
    %c0_14 = arith.constant 0 : index
    %22 = vector.load %arg2[%c3, %c0_13, %c0_14] : memref<9x8x256xf32, #tpu.memory_space<vmem>>, vector<1x8x256xf32>
    %23 = vector.shape_cast %22 : vector<1x8x256xf32> to vector<8x256xf32>
    %cst_15 = arith.constant dense<0.000000e+00> : vector<512x256xf32>
    %24 = tpu.matmul %21, %23, %cst_15 {dimension_numbers = #tpu.dot_dimension_numbers<[1], [0], [0], [1], [0, 0, 1, 1], [], []>} : vector<512x8xf32>, vector<8x256xf32>, vector<512x256xf32> -> vector<512x256xf32>
    %25 = arith.addf %19, %24 : vector<512x256xf32>
    %26 = vector.extract_strided_slice %0 {offsets = [0, 1, 1, 0], sizes = [8, 8, 8, 8], strides = [1, 1, 1, 1]} : vector<8x10x10x8xf32> to vector<8x8x8x8xf32>
    %27 = vector.shape_cast %26 : vector<8x8x8x8xf32> to vector<512x8xf32>
    %c4 = arith.constant 4 : index
    %c0_16 = arith.constant 0 : index
    %c0_17 = arith.constant 0 : index
    %28 = vector.load %arg2[%c4, %c0_16, %c0_17] : memref<9x8x256xf32, #tpu.memory_space<vmem>>, vector<1x8x256xf32>
    %29 = vector.shape_cast %28 : vector<1x8x256xf32> to vector<8x256xf32>
    %cst_18 = arith.constant dense<0.000000e+00> : vector<512x256xf32>
    %30 = tpu.matmul %27, %29, %cst_18 {dimension_numbers = #tpu.dot_dimension_numbers<[1], [0], [0], [1], [0, 0, 1, 1], [], []>} : vector<512x8xf32>, vector<8x256xf32>, vector<512x256xf32> -> vector<512x256xf32>
    %31 = arith.addf %25, %30 : vector<512x256xf32>
    %32 = vector.extract_strided_slice %0 {offsets = [0, 1, 2, 0], sizes = [8, 8, 8, 8], strides = [1, 1, 1, 1]} : vector<8x10x10x8xf32> to vector<8x8x8x8xf32>
    %33 = vector.shape_cast %32 : vector<8x8x8x8xf32> to vector<512x8xf32>
    %c5 = arith.constant 5 : index
    %c0_19 = arith.constant 0 : index
    %c0_20 = arith.constant 0 : index
    %34 = vector.load %arg2[%c5, %c0_19, %c0_20] : memref<9x8x256xf32, #tpu.memory_space<vmem>>, vector<1x8x256xf32>
    %35 = vector.shape_cast %34 : vector<1x8x256xf32> to vector<8x256xf32>
    %cst_21 = arith.constant dense<0.000000e+00> : vector<512x256xf32>
    %36 = tpu.matmul %33, %35, %cst_21 {dimension_numbers = #tpu.dot_dimension_numbers<[1], [0], [0], [1], [0, 0, 1, 1], [], []>} : vector<512x8xf32>, vector<8x256xf32>, vector<512x256xf32> -> vector<512x256xf32>
    %37 = arith.addf %31, %36 : vector<512x256xf32>
    %38 = vector.extract_strided_slice %0 {offsets = [0, 2, 0, 0], sizes = [8, 8, 8, 8], strides = [1, 1, 1, 1]} : vector<8x10x10x8xf32> to vector<8x8x8x8xf32>
    %39 = vector.shape_cast %38 : vector<8x8x8x8xf32> to vector<512x8xf32>
    %c6 = arith.constant 6 : index
    %c0_22 = arith.constant 0 : index
    %c0_23 = arith.constant 0 : index
    %40 = vector.load %arg2[%c6, %c0_22, %c0_23] : memref<9x8x256xf32, #tpu.memory_space<vmem>>, vector<1x8x256xf32>
    %41 = vector.shape_cast %40 : vector<1x8x256xf32> to vector<8x256xf32>
    %cst_24 = arith.constant dense<0.000000e+00> : vector<512x256xf32>
    %42 = tpu.matmul %39, %41, %cst_24 {dimension_numbers = #tpu.dot_dimension_numbers<[1], [0], [0], [1], [0, 0, 1, 1], [], []>} : vector<512x8xf32>, vector<8x256xf32>, vector<512x256xf32> -> vector<512x256xf32>
    %43 = arith.addf %37, %42 : vector<512x256xf32>
    %44 = vector.extract_strided_slice %0 {offsets = [0, 2, 1, 0], sizes = [8, 8, 8, 8], strides = [1, 1, 1, 1]} : vector<8x10x10x8xf32> to vector<8x8x8x8xf32>
    %45 = vector.shape_cast %44 : vector<8x8x8x8xf32> to vector<512x8xf32>
    %c7 = arith.constant 7 : index
    %c0_25 = arith.constant 0 : index
    %c0_26 = arith.constant 0 : index
    %46 = vector.load %arg2[%c7, %c0_25, %c0_26] : memref<9x8x256xf32, #tpu.memory_space<vmem>>, vector<1x8x256xf32>
    %47 = vector.shape_cast %46 : vector<1x8x256xf32> to vector<8x256xf32>
    %cst_27 = arith.constant dense<0.000000e+00> : vector<512x256xf32>
    %48 = tpu.matmul %45, %47, %cst_27 {dimension_numbers = #tpu.dot_dimension_numbers<[1], [0], [0], [1], [0, 0, 1, 1], [], []>} : vector<512x8xf32>, vector<8x256xf32>, vector<512x256xf32> -> vector<512x256xf32>
    %49 = arith.addf %43, %48 : vector<512x256xf32>
    %50 = vector.extract_strided_slice %0 {offsets = [0, 2, 2, 0], sizes = [8, 8, 8, 8], strides = [1, 1, 1, 1]} : vector<8x10x10x8xf32> to vector<8x8x8x8xf32>
    %51 = vector.shape_cast %50 : vector<8x8x8x8xf32> to vector<512x8xf32>
    %c8 = arith.constant 8 : index
    %c0_28 = arith.constant 0 : index
    %c0_29 = arith.constant 0 : index
    %52 = vector.load %arg2[%c8, %c0_28, %c0_29] : memref<9x8x256xf32, #tpu.memory_space<vmem>>, vector<1x8x256xf32>
    %53 = vector.shape_cast %52 : vector<1x8x256xf32> to vector<8x256xf32>
    %cst_30 = arith.constant dense<0.000000e+00> : vector<512x256xf32>
    %54 = tpu.matmul %51, %53, %cst_30 {dimension_numbers = #tpu.dot_dimension_numbers<[1], [0], [0], [1], [0, 0, 1, 1], [], []>} : vector<512x8xf32>, vector<8x256xf32>, vector<512x256xf32> -> vector<512x256xf32>
    %55 = arith.addf %49, %54 : vector<512x256xf32>
    %c0_i32 = arith.constant 0 : i32
    %56 = arith.cmpi eq, %arg0, %c0_i32 : i32
    %57 = arith.extui %56 : i1 to i32
    %c0_i32_31 = arith.constant 0 : i32
    %58 = arith.cmpi ne, %57, %c0_i32_31 : i32
    scf.if %58 {
      %cst_42 = arith.constant 0.000000e+00 : f32
      %70 = vector.broadcast %cst_42 : f32 to vector<1x256xf32>
      %c0_43 = arith.constant 0 : index
      %c0_44 = arith.constant 0 : index
      %71 = vector.load %arg3[%c0_43, %c0_44] : memref<1x256xf32, #tpu.memory_space<vmem>>, vector<1x256xf32>
      tpu.vector_store %arg3[%c0_43, %c0_44], %70 {strides = array<i32>} : memref<1x256xf32, #tpu.memory_space<vmem>>, vector<1x256xf32>,
      %cst_45 = arith.constant 0.000000e+00 : f32
      %72 = vector.broadcast %cst_45 : f32 to vector<1x256xf32>
      %c0_46 = arith.constant 0 : index
      %c0_47 = arith.constant 0 : index
      %73 = vector.load %arg4[%c0_46, %c0_47] : memref<1x256xf32, #tpu.memory_space<vmem>>, vector<1x256xf32>
      tpu.vector_store %arg4[%c0_46, %c0_47], %72 {strides = array<i32>} : memref<1x256xf32, #tpu.memory_space<vmem>>, vector<1x256xf32>,
    } else {
    }
    %c0_32 = arith.constant 0 : index
    %c0_33 = arith.constant 0 : index
    %59 = vector.load %arg3[%c0_32, %c0_33] : memref<1x256xf32, #tpu.memory_space<vmem>>, vector<1x256xf32>
    %cst_34 = arith.constant dense<0.000000e+00> : vector<256xf32>
    %60 = vector.multi_reduction <add>, %55, %cst_34 [0] : vector<512x256xf32> to vector<256xf32>
    %61 = vector.shape_cast %60 : vector<256xf32> to vector<1x256xf32>
    %62 = arith.addf %59, %61 : vector<1x256xf32>
    %c0_35 = arith.constant 0 : index
    %c0_36 = arith.constant 0 : index
    %63 = vector.load %arg3[%c0_35, %c0_36] : memref<1x256xf32, #tpu.memory_space<vmem>>, vector<1x256xf32>
    tpu.vector_store %arg3[%c0_35, %c0_36], %62 {strides = array<i32>} : memref<1x256xf32, #tpu.memory_space<vmem>>, vector<1x256xf32>,
    %c0_37 = arith.constant 0 : index
    %c0_38 = arith.constant 0 : index
    %64 = vector.load %arg4[%c0_37, %c0_38] : memref<1x256xf32, #tpu.memory_space<vmem>>, vector<1x256xf32>
    %65 = arith.mulf %55, %55 : vector<512x256xf32>
    %cst_39 = arith.constant dense<0.000000e+00> : vector<256xf32>
    %66 = vector.multi_reduction <add>, %65, %cst_39 [0] : vector<512x256xf32> to vector<256xf32>
    %67 = vector.shape_cast %66 : vector<256xf32> to vector<1x256xf32>
    %68 = arith.addf %64, %67 : vector<1x256xf32>
    %c0_40 = arith.constant 0 : index
    %c0_41 = arith.constant 0 : index
    %69 = vector.load %arg4[%c0_40, %c0_41] : memref<1x256xf32, #tpu.memory_space<vmem>>, vector<1x256xf32>
    tpu.vector_store %arg4[%c0_40, %c0_41], %68 {strides = array<i32>} : memref<1x256xf32, #tpu.memory_space<vmem>>, vector<1x256xf32>,
    return
  }
  func.func @transform_0(%arg0: i32) -> (i32, i32, i32, i32) {
    %c0_i32 = arith.constant 0 : i32
    %c0_i32_0 = arith.constant 0 : i32
    %c0_i32_1 = arith.constant 0 : i32
    %c0_i32_2 = arith.constant 0 : i32
    return %arg0, %c0_i32, %c0_i32_0, %c0_i32_1 : i32, i32, i32, i32
  }
  func.func @transform_1(%arg0: i32) -> (i32, i32, i32) {
    %c0_i32 = arith.constant 0 : i32
    %c0_i32_0 = arith.constant 0 : i32
    %c0_i32_1 = arith.constant 0 : i32
    %c0_i32_2 = arith.constant 0 : i32
    return %c0_i32, %c0_i32_0, %c0_i32_1 : i32, i32, i32
  }
  func.func @transform_2(%arg0: i32) -> (i32, i32) {
    %c0_i32 = arith.constant 0 : i32
    %c0_i32_0 = arith.constant 0 : i32
    %c0_i32_1 = arith.constant 0 : i32
    return %c0_i32, %c0_i32_0 : i32, i32
  }
  func.func @transform_3(%arg0: i32) -> (i32, i32) {
    %c0_i32 = arith.constant 0 : i32
    %c0_i32_0 = arith.constant 0 : i32
    %c0_i32_1 = arith.constant 0 : i32
    return %c0_i32, %c0_i32_0 : i32, i32
  }
}

</mosaic_0001>

<llo_original>
// kernel: tpu_custom_call.1
$region0: #{tpu_custom_call.1}
  #allocation0 [shape = 'u32[]', space=smem, size = 0x4, offset = 0x4, fixed_abs, tag = 'smem constant byte address 0x4 - core index']
  #allocation1 [shape = 'u32[72,128]{1,0:T(1,128)}', space=vmem, size = 0x9000, scoped, tag = 'internal scratch']
  %s0 = inlined_call_operand.vmem [shape: f32[8,10,10,8], index: 0, kind: input, shape index: {}]
  %s1 = inlined_call_operand.vmem [shape: f32[9,8,256], index: 1, kind: input, shape index: {}]
  %s2 = inlined_call_operand.hbm [shape: f32[1,256], index: 2, kind: output, shape index: {0}]
  %s3 = inlined_call_operand.hbm [shape: f32[1,256], index: 3, kind: output, shape index: {1}]
  %4 = xla_tuple %s2, %s3
  %s5 = sld [smem:[#allocation0]]
  $region30: #{tpu_custom_call.1} parent=0
    _
  %s7 = ssub.s32 1, %s5
  %s8 = scalar_select 0, %s7, %s5
  $region1: #{tpu_custom_call.1} parent=0
    #allocation2 [shape = 'u8[1024]{0}', space=vmem, size = 0x400, scoped, tag = 'output window, operand 0, single buffered']
    #allocation3 [shape = 's32[1]{0}', space=sflag, size = 0x4, scoped, tag = 'scoped memory for tpu_custom_call.1']
    #allocation4 [shape = 'u8[1024]{0}', space=vmem, size = 0x400, scoped, tag = 'output window, operand 1, single buffered']
    #allocation5 [shape = 's32[1]{0}', space=sflag, size = 0x4, scoped, tag = 'scoped memory for tpu_custom_call.1']
    %9 = vsyncpa [#allocation3], 0
    %10 = vsyncpa [#allocation5], 0
    // Predicated region
    $region2: #{tpu_custom_call.1} parent=1 // pred_check
      _
    $region3: #{tpu_custom_call.1} parent=1 // pred_check_branch
      %12 = sbr.rel (0) target = $region5
    $region4: #{tpu_custom_call.1} parent=1 // pred_region
      _
    $region5: #{tpu_custom_call.1} parent=1 // pred_fallthru
      _
    // Predicated region
    $region6: #{tpu_custom_call.1} parent=1 // pred_check
      _
    $region7: #{tpu_custom_call.1} parent=1 // pred_check_branch
      %14 = sbr.rel (0) target = $region9
    $region8: #{tpu_custom_call.1} parent=1 // pred_region
      _
    $region9: #{tpu_custom_call.1} parent=1 // pred_fallthru
      _
    %v15 = vld [vmem:[%s0] sm:$0xff]
    %v16 = vld [vmem:[%s0 + $0x8] sm:$0x3]
    %v17 = vld [vmem:[%s0 + $0x10] sm:$0xff]
    %v18 = vld [vmem:[%s0 + $0x18] sm:$0x3]
    %v19 = vld [vmem:[%s0 + $0x20] sm:$0xff]
    %v20 = vld [vmem:[%s0 + $0x28] sm:$0x3]
    %v21 = vld [vmem:[%s0 + $0x30] sm:$0xff]
    %v22 = vld [vmem:[%s0 + $0x38] sm:$0x3]
    %v23 = vld [vmem:[%s0 + $0x40] sm:$0xff]
    %v24 = vld [vmem:[%s0 + $0x48] sm:$0x3]
    %v25 = vld [vmem:[%s0 + $0x50] sm:$0xff]
    %v26 = vld [vmem:[%s0 + $0x58] sm:$0x3]
    %v27 = vld [vmem:[%s0 + $0x60] sm:$0xff]
    %v28 = vld [vmem:[%s0 + $0x68] sm:$0x3]
    %v29 = vld [vmem:[%s0 + $0x70] sm:$0xff]
    %v30 = vld [vmem:[%s0 + $0x78] sm:$0x3]
    %v31 = vld [vmem:[%s0 + $0x80] sm:$0xff]
    %v32 = vld [vmem:[%s0 + $0x88] sm:$0x3]
    %v33 = vld [vmem:[%s0 + $0x90] sm:$0xff]
    %v34 = vld [vmem:[%s0 + $0x98] sm:$0x3]
    %v35 = vld [vmem:[%s0 + $0xa0] sm:$0xff]
    %v36 = vld [vmem:[%s0 + $0xa8] sm:$0x3]
    %v37 = vld [vmem:[%s0 + $0xb0] sm:$0xff]
    %v38 = vld [vmem:[%s0 + $0xb8] sm:$0x3]
    %v39 = vld [vmem:[%s0 + $0xc0] sm:$0xff]
    %v40 = vld [vmem:[%s0 + $0xc8] sm:$0x3]
    %v41 = vld [vmem:[%s0 + $0xd0] sm:$0xff]
    %v42 = vld [vmem:[%s0 + $0xd8] sm:$0x3]
    %v43 = vld [vmem:[%s0 + $0xe0] sm:$0xff]
    %v44 = vld [vmem:[%s0 + $0xe8] sm:$0x3]
    %v45 = vld [vmem:[%s0 + $0xf0] sm:$0xff]
    %v46 = vld [vmem:[%s0 + $0xf8] sm:$0x3]
    %v47 = vld [vmem:[%s0 + $0x100] sm:$0xff]
    %v48 = vld [vmem:[%s0 + $0x108] sm:$0x3]
    %v49 = vld [vmem:[%s0 + $0x110] sm:$0xff]
    %v50 = vld [vmem:[%s0 + $0x118] sm:$0x3]
    %v51 = vld [vmem:[%s0 + $0x120] sm:$0xff]
    %v52 = vld [vmem:[%s0 + $0x128] sm:$0x3]
    %v53 = vld [vmem:[%s0 + $0x130] sm:$0xff]
    %v54 = vld [vmem:[%s0 + $0x138] sm:$0x3]
    %v55 = vld [vmem:[%s0 + $0x140] sm:$0xff]
    %v56 = vld [vmem:[%s0 + $0x148] sm:$0x3]
    %v57 = vld [vmem:[%s0 + $0x150] sm:$0xff]
    %v58 = vld [vmem:[%s0 + $0x158] sm:$0x3]
    %v59 = vld [vmem:[%s0 + $0x160] sm:$0xff]
    %v60 = vld [vmem:[%s0 + $0x168] sm:$0x3]
    %v61 = vld [vmem:[%s0 + $0x170] sm:$0xff]
    %v62 = vld [vmem:[%s0 + $0x178] sm:$0x3]
    %v63 = vld [vmem:[%s0 + $0x180] sm:$0xff]
    %v64 = vld [vmem:[%s0 + $0x188] sm:$0x3]
    %v65 = vld [vmem:[%s0 + $0x190] sm:$0xff]
    %v66 = vld [vmem:[%s0 + $0x198] sm:$0x3]
    %v67 = vld [vmem:[%s0 + $0x1a0] sm:$0xff]
    %v68 = vld [vmem:[%s0 + $0x1a8] sm:$0x3]
    %v69 = vld [vmem:[%s0 + $0x1b0] sm:$0xff]
    %v70 = vld [vmem:[%s0 + $0x1b8] sm:$0x3]
    %v71 = vld [vmem:[%s0 + $0x1c0] sm:$0xff]
    %v72 = vld [vmem:[%s0 + $0x1c8] sm:$0x3]
    %v73 = vld [vmem:[%s0 + $0x1d0] sm:$0xff]
    %v74 = vld [vmem:[%s0 + $0x1d8] sm:$0x3]
    %v75 = vld [vmem:[%s0 + $0x1e0] sm:$0xff]
    %v76 = vld [vmem:[%s0 + $0x1e8] sm:$0x3]
    %v77 = vld [vmem:[%s0 + $0x1f0] sm:$0xff]
    %v78 = vld [vmem:[%s0 + $0x1f8] sm:$0x3]
    %v79 = vld [vmem:[%s0 + $0x200] sm:$0xff]
    %v80 = vld [vmem:[%s0 + $0x208] sm:$0x3]
    %v81 = vld [vmem:[%s0 + $0x210] sm:$0xff]
    %v82 = vld [vmem:[%s0 + $0x218] sm:$0x3]
    %v83 = vld [vmem:[%s0 + $0x220] sm:$0xff]
    %v84 = vld [vmem:[%s0 + $0x228] sm:$0x3]
    %v85 = vld [vmem:[%s0 + $0x230] sm:$0xff]
    %v86 = vld [vmem:[%s0 + $0x238] sm:$0x3]
    %v87 = vld [vmem:[%s0 + $0x240] sm:$0xff]
    %v88 = vld [vmem:[%s0 + $0x248] sm:$0x3]
    %v89 = vld [vmem:[%s0 + $0x250] sm:$0xff]
    %v90 = vld [vmem:[%s0 + $0x258] sm:$0x3]
    %v91 = vld [vmem:[%s0 + $0x260] sm:$0xff]
    %v92 = vld [vmem:[%s0 + $0x268] sm:$0x3]
    %v93 = vld [vmem:[%s0 + $0x270] sm:$0xff]
    %v94 = vld [vmem:[%s0 + $0x278] sm:$0x3]
    %v95 = vld [vmem:[%s0 + $0x280] sm:$0xff]
    %v96 = vld [vmem:[%s0 + $0x288] sm:$0x3]
    %v97 = vld [vmem:[%s0 + $0x290] sm:$0xff]
    %v98 = vld [vmem:[%s0 + $0x298] sm:$0x3]
    %v99 = vld [vmem:[%s0 + $0x2a0] sm:$0xff]
    %v100 = vld [vmem:[%s0 + $0x2a8] sm:$0x3]
    %v101 = vld [vmem:[%s0 + $0x2b0] sm:$0xff]
    %v102 = vld [vmem:[%s0 + $0x2b8] sm:$0x3]
    %v103 = vld [vmem:[%s0 + $0x2c0] sm:$0xff]
    %v104 = vld [vmem:[%s0 + $0x2c8] sm:$0x3]
    %v105 = vld [vmem:[%s0 + $0x2d0] sm:$0xff]
    %v106 = vld [vmem:[%s0 + $0x2d8] sm:$0x3]
    %v107 = vld [vmem:[%s0 + $0x2e0] sm:$0xff]
    %v108 = vld [vmem:[%s0 + $0x2e8] sm:$0x3]
    %v109 = vld [vmem:[%s0 + $0x2f0] sm:$0xff]
    %v110 = vld [vmem:[%s0 + $0x2f8] sm:$0x3]
    %v111 = vld [vmem:[%s0 + $0x300] sm:$0xff]
    %v112 = vld [vmem:[%s0 + $0x308] sm:$0x3]
    %v113 = vld [vmem:[%s0 + $0x310] sm:$0xff]
    %v114 = vld [vmem:[%s0 + $0x318] sm:$0x3]
    %v115 = vld [vmem:[%s0 + $0x320] sm:$0xff]
    %v116 = vld [vmem:[%s0 + $0x328] sm:$0x3]
    %v117 = vld [vmem:[%s0 + $0x330] sm:$0xff]
    %v118 = vld [vmem:[%s0 + $0x338] sm:$0x3]
    %v119 = vld [vmem:[%s0 + $0x340] sm:$0xff]
    %v120 = vld [vmem:[%s0 + $0x348] sm:$0x3]
    %v121 = vld [vmem:[%s0 + $0x350] sm:$0xff]
    %v122 = vld [vmem:[%s0 + $0x358] sm:$0x3]
    %v123 = vld [vmem:[%s0 + $0x360] sm:$0xff]
    %v124 = vld [vmem:[%s0 + $0x368] sm:$0x3]
    %v125 = vld [vmem:[%s0 + $0x370] sm:$0xff]
    %v126 = vld [vmem:[%s0 + $0x378] sm:$0x3]
    %v127 = vld [vmem:[%s0 + $0x380] sm:$0xff]
    %v128 = vld [vmem:[%s0 + $0x388] sm:$0x3]
    %v129 = vld [vmem:[%s0 + $0x390] sm:$0xff]
    %v130 = vld [vmem:[%s0 + $0x398] sm:$0x3]
    %v131 = vld [vmem:[%s0 + $0x3a0] sm:$0xff]
    %v132 = vld [vmem:[%s0 + $0x3a8] sm:$0x3]
    %v133 = vld [vmem:[%s0 + $0x3b0] sm:$0xff]
    %v134 = vld [vmem:[%s0 + $0x3b8] sm:$0x3]
    %v135 = vld [vmem:[%s0 + $0x3c0] sm:$0xff]
    %v136 = vld [vmem:[%s0 + $0x3c8] sm:$0x3]
    %v137 = vld [vmem:[%s0 + $0x3d0] sm:$0xff]
    %v138 = vld [vmem:[%s0 + $0x3d8] sm:$0x3]
    %v139 = vld [vmem:[%s0 + $0x3e0] sm:$0xff]
    %v140 = vld [vmem:[%s0 + $0x3e8] sm:$0x3]
    %v141 = vld [vmem:[%s0 + $0x3f0] sm:$0xff]
    %v142 = vld [vmem:[%s0 + $0x3f8] sm:$0x3]
    %v143 = vld [vmem:[%s0 + $0x400] sm:$0xff]
    %v144 = vld [vmem:[%s0 + $0x408] sm:$0x3]
    %v145 = vld [vmem:[%s0 + $0x410] sm:$0xff]
    %v146 = vld [vmem:[%s0 + $0x418] sm:$0x3]
    %v147 = vld [vmem:[%s0 + $0x420] sm:$0xff]
    %v148 = vld [vmem:[%s0 + $0x428] sm:$0x3]
    %v149 = vld [vmem:[%s0 + $0x430] sm:$0xff]
    %v150 = vld [vmem:[%s0 + $0x438] sm:$0x3]
    %v151 = vld [vmem:[%s0 + $0x440] sm:$0xff]
    %v152 = vld [vmem:[%s0 + $0x448] sm:$0x3]
    %v153 = vld [vmem:[%s0 + $0x450] sm:$0xff]
    %v154 = vld [vmem:[%s0 + $0x458] sm:$0x3]
    %v155 = vld [vmem:[%s0 + $0x460] sm:$0xff]
    %v156 = vld [vmem:[%s0 + $0x468] sm:$0x3]
    %v157 = vld [vmem:[%s0 + $0x470] sm:$0xff]
    %v158 = vld [vmem:[%s0 + $0x478] sm:$0x3]
    %v159 = vld [vmem:[%s0 + $0x480] sm:$0xff]
    %v160 = vld [vmem:[%s0 + $0x488] sm:$0x3]
    %v161 = vld [vmem:[%s0 + $0x490] sm:$0xff]
    %v162 = vld [vmem:[%s0 + $0x498] sm:$0x3]
    %v163 = vld [vmem:[%s0 + $0x4a0] sm:$0xff]
    %v164 = vld [vmem:[%s0 + $0x4a8] sm:$0x3]
    %v165 = vld [vmem:[%s0 + $0x4b0] sm:$0xff]
    %v166 = vld [vmem:[%s0 + $0x4b8] sm:$0x3]
    %v167 = vld [vmem:[%s0 + $0x4c0] sm:$0xff]
    %v168 = vld [vmem:[%s0 + $0x4c8] sm:$0x3]
    %v169 = vld [vmem:[%s0 + $0x4d0] sm:$0xff]
    %v170 = vld [vmem:[%s0 + $0x4d8] sm:$0x3]
    %v171 = vld [vmem:[%s0 + $0x4e0] sm:$0xff]
    %v172 = vld [vmem:[%s0 + $0x4e8] sm:$0x3]
    %v173 = vld [vmem:[%s0 + $0x4f0] sm:$0xff]
    %v174 = vld [vmem:[%s0 + $0x4f8] sm:$0x3]
    %v175 = vld [vmem:[%s1] sm:$0xff]
    %v176 = vld [vmem:[%s1 + $0x8] sm:$0xff]
    %vm305 = vcmask 1046528
    %v306 = vrot.slane %v15, 1
    %v307 = vrot.slane %v16, 1
    %v308 = vsel %vm305, %v306, %v307
    %v309 = vrot.slane %v17, 1
    %v310 = vrot.slane %v18, 1
    %v311 = vsel %vm305, %v309, %v310
    %v312 = vrot.slane %v19, 1
    %v313 = vrot.slane %v20, 1
    %v314 = vsel %vm305, %v312, %v313
    %v315 = vrot.slane %v21, 1
    %v316 = vrot.slane %v22, 1
    %v317 = vsel %vm305, %v315, %v316
    %v318 = vrot.slane %v23, 1
    %v319 = vrot.slane %v24, 1
    %v320 = vsel %vm305, %v318, %v319
    %v321 = vrot.slane %v25, 1
    %v322 = vrot.slane %v26, 1
    %v323 = vsel %vm305, %v321, %v322
    %v324 = vrot.slane %v27, 1
    %v325 = vrot.slane %v28, 1
    %v326 = vsel %vm305, %v324, %v325
    %v327 = vrot.slane %v29, 1
    %v328 = vrot.slane %v30, 1
    %v329 = vsel %vm305, %v327, %v328
    %v330 = vrot.slane %v35, 1
    %v331 = vrot.slane %v36, 1
    %v332 = vsel %vm305, %v330, %v331
    %v333 = vrot.slane %v37, 1
    %v334 = vrot.slane %v38, 1
    %v335 = vsel %vm305, %v333, %v334
    %v336 = vrot.slane %v39, 1
    %v337 = vrot.slane %v40, 1
    %v338 = vsel %vm305, %v336, %v337
    %v339 = vrot.slane %v41, 1
    %v340 = vrot.slane %v42, 1
    %v341 = vsel %vm305, %v339, %v340
    %v342 = vrot.slane %v43, 1
    %v343 = vrot.slane %v44, 1
    %v344 = vsel %vm305, %v342, %v343
    %v345 = vrot.slane %v45, 1
    %v346 = vrot.slane %v46, 1
    %v347 = vsel %vm305, %v345, %v346
    %v348 = vrot.slane %v47, 1
    %v349 = vrot.slane %v48, 1
    %v350 = vsel %vm305, %v348, %v349
    %v351 = vrot.slane %v49, 1
    %v352 = vrot.slane %v50, 1
    %v353 = vsel %vm305, %v351, %v352
    %v354 = vrot.slane %v55, 1
    %v355 = vrot.slane %v56, 1
    %v356 = vsel %vm305, %v354, %v355
    %v357 = vrot.slane %v57, 1
    %v358 = vrot.slane %v58, 1
    %v359 = vsel %vm305, %v357, %v358
    %v360 = vrot.slane %v59, 1
    %v361 = vrot.slane %v60, 1
    %v362 = vsel %vm305, %v360, %v361
    %v363 = vrot.slane %v61, 1
    %v364 = vrot.slane %v62, 1
    %v365 = vsel %vm305, %v363, %v364
    %v366 = vrot.slane %v63, 1
    %v367 = vrot.slane %v64, 1
    %v368 = vsel %vm305, %v366, %v367
    %v369 = vrot.slane %v65, 1
    %v370 = vrot.slane %v66, 1
    %v371 = vsel %vm305, %v369, %v370
    %v372 = vrot.slane %v67, 1
    %v373 = vrot.slane %v68, 1
    %v374 = vsel %vm305, %v372, %v373
    %v375 = vrot.slane %v69, 1
    %v376 = vrot.slane %v70, 1
    %v377 = vsel %vm305, %v375, %v376
    %v378 = vrot.slane %v75, 1
    %v379 = vrot.slane %v76, 1
    %v380 = vsel %vm305, %v378, %v379
    %v381 = vrot.slane %v77, 1
    %v382 = vrot.slane %v78, 1
    %v383 = vsel %vm305, %v381, %v382
    %v384 = vrot.slane %v79, 1
    %v385 = vrot.slane %v80, 1
    %v386 = vsel %vm305, %v384, %v385
    %v387 = vrot.slane %v81, 1
    %v388 = vrot.slane %v82, 1
    %v389 = vsel %vm305, %v387, %v388
    %v390 = vrot.slane %v83, 1
    %v391 = vrot.slane %v84, 1
    %v392 = vsel %vm305, %v390, %v391
    %v393 = vrot.slane %v85, 1
    %v394 = vrot.slane %v86, 1
    %v395 = vsel %vm305, %v393, %v394
    %v396 = vrot.slane %v87, 1
    %v397 = vrot.slane %v88, 1
    %v398 = vsel %vm305, %v396, %v397
    %v399 = vrot.slane %v89, 1
    %v400 = vrot.slane %v90, 1
    %v401 = vsel %vm305, %v399, %v400
    %v402 = vrot.slane %v95, 1
    %v403 = vrot.slane %v96, 1
    %v404 = vsel %vm305, %v402, %v403
    %v405 = vrot.slane %v97, 1
    %v406 = vrot.slane %v98, 1
    %v407 = vsel %vm305, %v405, %v406
    %v408 = vrot.slane %v99, 1
    %v409 = vrot.slane %v100, 1
    %v410 = vsel %vm305, %v408, %v409
    %v411 = vrot.slane %v101, 1
    %v412 = vrot.slane %v102, 1
    %v413 = vsel %vm305, %v411, %v412
    %v414 = vrot.slane %v103, 1
    %v415 = vrot.slane %v104, 1
    %v416 = vsel %vm305, %v414, %v415
    %v417 = vrot.slane %v105, 1
    %v418 = vrot.slane %v106, 1
    %v419 = vsel %vm305, %v417, %v418
    %v420 = vrot.slane %v107, 1
    %v421 = vrot.slane %v108, 1
    %v422 = vsel %vm305, %v420, %v421
    %v423 = vrot.slane %v109, 1
    %v424 = vrot.slane %v110, 1
    %v425 = vsel %vm305, %v423, %v424
    %v426 = vrot.slane %v115, 1
    %v427 = vrot.slane %v116, 1
    %v428 = vsel %vm305, %v426, %v427
    %v429 = vrot.slane %v117, 1
    %v430 = vrot.slane %v118, 1
    %v431 = vsel %vm305, %v429, %v430
    %v432 = vrot.slane %v119, 1
    %v433 = vrot.slane %v120, 1
    %v434 = vsel %vm305, %v432, %v433
    %v435 = vrot.slane %v121, 1
    %v436 = vrot.slane %v122, 1
    %v437 = vsel %vm305, %v435, %v436
    %v438 = vrot.slane %v123, 1
    %v439 = vrot.slane %v124, 1
    %v440 = vsel %vm305, %v438, %v439
    %v441 = vrot.slane %v125, 1
    %v442 = vrot.slane %v126, 1
    %v443 = vsel %vm305, %v441, %v442
    %v444 = vrot.slane %v127, 1
    %v445 = vrot.slane %v128, 1
    %v446 = vsel %vm305, %v444, %v445
    %v447 = vrot.slane %v129, 1
    %v448 = vrot.slane %v130, 1
    %v449 = vsel %vm305, %v447, %v448
    %v450 = vrot.slane %v135, 1
    %v451 = vrot.slane %v136, 1
    %v452 = vsel %vm305, %v450, %v451
    %v453 = vrot.slane %v137, 1
    %v454 = vrot.slane %v138, 1
    %v455 = vsel %vm305, %v453, %v454
    %v456 = vrot.slane %v139, 1
    %v457 = vrot.slane %v140, 1
    %v458 = vsel %vm305, %v456, %v457
    %v459 = vrot.slane %v141, 1
    %v460 = vrot.slane %v142, 1
    %v461 = vsel %vm305, %v459, %v460
    %v462 = vrot.slane %v143, 1
    %v463 = vrot.slane %v144, 1
    %v464 = vsel %vm305, %v462, %v463
    %v465 = vrot.slane %v145, 1
    %v466 = vrot.slane %v146, 1
    %v467 = vsel %vm305, %v465, %v466
    %v468 = vrot.slane %v147, 1
    %v469 = vrot.slane %v148, 1
    %v470 = vsel %vm305, %v468, %v469
    %v471 = vrot.slane %v149, 1
    %v472 = vrot.slane %v150, 1
    %v473 = vsel %vm305, %v471, %v472
    %v474 = vrot.slane %v155, 1
    %v475 = vrot.slane %v156, 1
    %v476 = vsel %vm305, %v474, %v475
    %v477 = vrot.slane %v157, 1
    %v478 = vrot.slane %v158, 1
    %v479 = vsel %vm305, %v477, %v478
    %v480 = vrot.slane %v159, 1
    %v481 = vrot.slane %v160, 1
    %v482 = vsel %vm305, %v480, %v481
    %v483 = vrot.slane %v161, 1
    %v484 = vrot.slane %v162, 1
    %v485 = vsel %vm305, %v483, %v484
    %v486 = vrot.slane %v163, 1
    %v487 = vrot.slane %v164, 1
    %v488 = vsel %vm305, %v486, %v487
    %v489 = vrot.slane %v165, 1
    %v490 = vrot.slane %v166, 1
    %v491 = vsel %vm305, %v489, %v490
    %v492 = vrot.slane %v167, 1
    %v493 = vrot.slane %v168, 1
    %v494 = vsel %vm305, %v492, %v493
    %v495 = vrot.slane %v169, 1
    %v496 = vrot.slane %v170, 1
    %v497 = vsel %vm305, %v495, %v496
    %s498 = scalar_lea.vmem %s1, 16
    %v499 = vld [vmem:[%s498] sm:$0xff]
    %v500 = vld [vmem:[%s498 + $0x8] sm:$0xff]
    %vm501 = vcmask 64512
    %v502 = vsel %vm501, %v308, 0
    %v504 = vsel %vm501, %v311, 0
    %v506 = vsel %vm501, %v314, 0
    %v508 = vsel %vm501, %v317, 0
    %v510 = vsel %vm501, %v320, 0
    %v512 = vsel %vm501, %v323, 0
    %v514 = vsel %vm501, %v326, 0
    %v516 = vsel %vm501, %v329, 0
    %v518 = vsel %vm501, %v332, 0
    %v520 = vsel %vm501, %v335, 0
    %v522 = vsel %vm501, %v338, 0
    %v524 = vsel %vm501, %v341, 0
    %v526 = vsel %vm501, %v344, 0
    %v528 = vsel %vm501, %v347, 0
    %v530 = vsel %vm501, %v350, 0
    %v532 = vsel %vm501, %v353, 0
    %v534 = vsel %vm501, %v356, 0
    %v536 = vsel %vm501, %v359, 0
    %v538 = vsel %vm501, %v362, 0
    %v540 = vsel %vm501, %v365, 0
    %v542 = vsel %vm501, %v368, 0
    %v544 = vsel %vm501, %v371, 0
    %v546 = vsel %vm501, %v374, 0
    %v548 = vsel %vm501, %v377, 0
    %v550 = vsel %vm501, %v380, 0
    %v552 = vsel %vm501, %v383, 0
    %v554 = vsel %vm501, %v386, 0
    %v556 = vsel %vm501, %v389, 0
    %v558 = vsel %vm501, %v392, 0
    %v560 = vsel %vm501, %v395, 0
    %v562 = vsel %vm501, %v398, 0
    %v564 = vsel %vm501, %v401, 0
    %v566 = vsel %vm501, %v404, 0
    %v568 = vsel %vm501, %v407, 0
    %v570 = vsel %vm501, %v410, 0
    %v572 = vsel %vm501, %v413, 0
    %v574 = vsel %vm501, %v416, 0
    %v576 = vsel %vm501, %v419, 0
    %v578 = vsel %vm501, %v422, 0
    %v580 = vsel %vm501, %v425, 0
    %v582 = vsel %vm501, %v428, 0
    %v584 = vsel %vm501, %v431, 0
    %v586 = vsel %vm501, %v434, 0
    %v588 = vsel %vm501, %v437, 0
    %v590 = vsel %vm501, %v440, 0
    %v592 = vsel %vm501, %v443, 0
    %v594 = vsel %vm501, %v446, 0
    %v596 = vsel %vm501, %v449, 0
    %v598 = vsel %vm501, %v452, 0
    %v600 = vsel %vm501, %v455, 0
    %v602 = vsel %vm501, %v458, 0
    %v604 = vsel %vm501, %v461, 0
    %v606 = vsel %vm501, %v464, 0
    %v608 = vsel %vm501, %v467, 0
    %v610 = vsel %vm501, %v470, 0
    %v612 = vsel %vm501, %v473, 0
    %v614 = vsel %vm501, %v476, 0
    %v616 = vsel %vm501, %v479, 0
    %v618 = vsel %vm501, %v482, 0
    %v620 = vsel %vm501, %v485, 0
    %v622 = vsel %vm501, %v488, 0
    %v624 = vsel %vm501, %v491, 0
    %v626 = vsel %vm501, %v494, 0
    %v628 = vsel %vm501, %v497, 0
    %630 = vmatpush.msra.mxu0 0.0
    %631 = vmatpush.msra.mxu0 0.0
    %632 = vmatpush.msra.mxu0 0.0
    %633 = vmatpush.msra.mxu0 0.0
    %634 = vmatpush.msra.mxu0 0.0
    %635 = vmatpush.msra.mxu0 0.0
    %636 = vmatpush.msra.mxu0 0.0
    %637 = vmatpush.msra.mxu0 0.0
    %638 = vmatpush.msra.mxu0 0.0
    %639 = vmatpush.msra.mxu0 0.0
    %640 = vmatpush.msra.mxu0 0.0
    %641 = vmatpush.msra.mxu0 0.0
    %642 = vmatpush.msra.mxu0 0.0
    %643 = vmatpush.msra.mxu0 0.0
    %644 = vmatpush.msra.mxu0 0.0
    %645 = vmatpush.msra.mxu0 %v499
    %646 = vmatmul.f32.gmra.mxu0 %v502
    %v647 = vpop.f32.mrf.mxu0
    %v648 = vadd.f32 0.0, %v647
    %649 = vmatmul.f32.gmra.mxu0 %v504
    %v650 = vpop.f32.mrf.mxu0
    %v651 = vadd.f32 0.0, %v650
    %652 = vmatmul.f32.gmra.mxu0 %v506
    %v653 = vpop.f32.mrf.mxu0
    %v654 = vadd.f32 0.0, %v653
    %655 = vmatmul.f32.gmra.mxu0 %v508
    %v656 = vpop.f32.mrf.mxu0
    %v657 = vadd.f32 0.0, %v656
    %658 = vmatmul.f32.gmra.mxu0 %v510
    %v659 = vpop.f32.mrf.mxu0
    %v660 = vadd.f32 0.0, %v659
    %661 = vmatmul.f32.gmra.mxu0 %v512
    %v662 = vpop.f32.mrf.mxu0
    %v663 = vadd.f32 0.0, %v662
    %664 = vmatmul.f32.gmra.mxu0 %v514
    %v665 = vpop.f32.mrf.mxu0
    %v666 = vadd.f32 0.0, %v665
    %667 = vmatmul.f32.gmra.mxu0 %v516
    %v668 = vpop.f32.mrf.mxu0
    %v669 = vadd.f32 0.0, %v668
    %670 = vmatmul.f32.gmra.mxu0 %v518
    %v671 = vpop.f32.mrf.mxu0
    %v672 = vadd.f32 0.0, %v671
    %673 = vmatmul.f32.gmra.mxu0 %v520
    %v674 = vpop.f32.mrf.mxu0
    %v675 = vadd.f32 0.0, %v674
    %676 = vmatmul.f32.gmra.mxu0 %v522
    %v677 = vpop.f32.mrf.mxu0
    %v678 = vadd.f32 0.0, %v677
    %679 = vmatmul.f32.gmra.mxu0 %v524
    %v680 = vpop.f32.mrf.mxu0
    %v681 = vadd.f32 0.0, %v680
    %682 = vmatmul.f32.gmra.mxu0 %v526
    %v683 = vpop.f32.mrf.mxu0
    %v684 = vadd.f32 0.0, %v683
    %685 = vmatmul.f32.gmra.mxu0 %v528
    %v686 = vpop.f32.mrf.mxu0
    %v687 = vadd.f32 0.0, %v686
    %688 = vmatmul.f32.gmra.mxu0 %v530
    %v689 = vpop.f32.mrf.mxu0
    %v690 = vadd.f32 0.0, %v689
    %691 = vmatmul.f32.gmra.mxu0 %v532
    %v692 = vpop.f32.mrf.mxu0
    %v693 = vadd.f32 0.0, %v692
    %694 = vmatmul.f32.gmra.mxu0 %v534
    %v695 = vpop.f32.mrf.mxu0
    %v696 = vadd.f32 0.0, %v695
    %697 = vmatmul.f32.gmra.mxu0 %v536
    %v698 = vpop.f32.mrf.mxu0
    %v699 = vadd.f32 0.0, %v698
    %700 = vmatmul.f32.gmra.mxu0 %v538
    %v701 = vpop.f32.mrf.mxu0
    %v702 = vadd.f32 0.0, %v701
    %703 = vmatmul.f32.gmra.mxu0 %v540
    %v704 = vpop.f32.mrf.mxu0
    %v705 = vadd.f32 0.0, %v704
    %706 = vmatmul.f32.gmra.mxu0 %v542
    %v707 = vpop.f32.mrf.mxu0
    %v708 = vadd.f32 0.0, %v707
    %709 = vmatmul.f32.gmra.mxu0 %v544
    %v710 = vpop.f32.mrf.mxu0
    %v711 = vadd.f32 0.0, %v710
    %712 = vmatmul.f32.gmra.mxu0 %v546
    %v713 = vpop.f32.mrf.mxu0
    %v714 = vadd.f32 0.0, %v713
    %715 = vmatmul.f32.gmra.mxu0 %v548
    %v716 = vpop.f32.mrf.mxu0
    %v717 = vadd.f32 0.0, %v716
    %718 = vmatmul.f32.gmra.mxu0 %v550
    %v719 = vpop.f32.mrf.mxu0
    %v720 = vadd.f32 0.0, %v719
    %721 = vmatmul.f32.gmra.mxu0 %v552
    %v722 = vpop.f32.mrf.mxu0
    %v723 = vadd.f32 0.0, %v722
    %724 = vmatmul.f32.gmra.mxu0 %v554
    %v725 = vpop.f32.mrf.mxu0
    %v726 = vadd.f32 0.0, %v725
    %727 = vmatmul.f32.gmra.mxu0 %v556
    %v728 = vpop.f32.mrf.mxu0
    %v729 = vadd.f32 0.0, %v728
    %730 = vmatmul.f32.gmra.mxu0 %v558
    %v731 = vpop.f32.mrf.mxu0
    %v732 = vadd.f32 0.0, %v731
    %733 = vmatmul.f32.gmra.mxu0 %v560
    %v734 = vpop.f32.mrf.mxu0
    %v735 = vadd.f32 0.0, %v734
    %736 = vmatmul.f32.gmra.mxu0 %v562
    %v737 = vpop.f32.mrf.mxu0
    %v738 = vadd.f32 0.0, %v737
    %739 = vmatmul.f32.gmra.mxu0 %v564
    %v740 = vpop.f32.mrf.mxu0
    %v741 = vadd.f32 0.0, %v740
    %742 = vmatmul.f32.gmra.mxu0 %v566
    %v743 = vpop.f32.mrf.mxu0
    %v744 = vadd.f32 0.0, %v743
    %745 = vmatmul.f32.gmra.mxu0 %v568
    %v746 = vpop.f32.mrf.mxu0
    %v747 = vadd.f32 0.0, %v746
    %748 = vmatmul.f32.gmra.mxu0 %v570
    %v749 = vpop.f32.mrf.mxu0
    %v750 = vadd.f32 0.0, %v749
    %751 = vmatmul.f32.gmra.mxu0 %v572
    %v752 = vpop.f32.mrf.mxu0
    %v753 = vadd.f32 0.0, %v752
    %754 = vmatmul.f32.gmra.mxu0 %v574
    %v755 = vpop.f32.mrf.mxu0
    %v756 = vadd.f32 0.0, %v755
    %757 = vmatmul.f32.gmra.mxu0 %v576
    %v758 = vpop.f32.mrf.mxu0
    %v759 = vadd.f32 0.0, %v758
    %760 = vmatmul.f32.gmra.mxu0 %v578
    %v761 = vpop.f32.mrf.mxu0
    %v762 = vadd.f32 0.0, %v761
    %763 = vmatmul.f32.gmra.mxu0 %v580
    %v764 = vpop.f32.mrf.mxu0
    %v765 = vadd.f32 0.0, %v764
    %766 = vmatmul.f32.gmra.mxu0 %v582
    %v767 = vpop.f32.mrf.mxu0
    %v768 = vadd.f32 0.0, %v767
    %769 = vmatmul.f32.gmra.mxu0 %v584
    %v770 = vpop.f32.mrf.mxu0
    %v771 = vadd.f32 0.0, %v770
    %772 = vmatmul.f32.gmra.mxu0 %v586
    %v773 = vpop.f32.mrf.mxu0
    %v774 = vadd.f32 0.0, %v773
    %775 = vmatmul.f32.gmra.mxu0 %v588
    %v776 = vpop.f32.mrf.mxu0
    %v777 = vadd.f32 0.0, %v776
    %778 = vmatmul.f32.gmra.mxu0 %v590
    %v779 = vpop.f32.mrf.mxu0
    %v780 = vadd.f32 0.0, %v779
    %781 = vmatmul.f32.gmra.mxu0 %v592
    %v782 = vpop.f32.mrf.mxu0
    %v783 = vadd.f32 0.0, %v782
    %784 = vmatmul.f32.gmra.mxu0 %v594
    %v785 = vpop.f32.mrf.mxu0
    %v786 = vadd.f32 0.0, %v785
    %787 = vmatmul.f32.gmra.mxu0 %v596
    %v788 = vpop.f32.mrf.mxu0
    %v789 = vadd.f32 0.0, %v788
    %790 = vmatmul.f32.gmra.mxu0 %v598
    %v791 = vpop.f32.mrf.mxu0
    %v792 = vadd.f32 0.0, %v791
    %793 = vmatmul.f32.gmra.mxu0 %v600
    %v794 = vpop.f32.mrf.mxu0
    %v795 = vadd.f32 0.0, %v794
    %796 = vmatmul.f32.gmra.mxu0 %v602
    %v797 = vpop.f32.mrf.mxu0
    %v798 = vadd.f32 0.0, %v797
    %799 = vmatmul.f32.gmra.mxu0 %v604
    %v800 = vpop.f32.mrf.mxu0
    %v801 = vadd.f32 0.0, %v800
    %802 = vmatmul.f32.gmra.mxu0 %v606
    %v803 = vpop.f32.mrf.mxu0
    %v804 = vadd.f32 0.0, %v803
    %805 = vmatmul.f32.gmra.mxu0 %v608
    %v806 = vpop.f32.mrf.mxu0
    %v807 = vadd.f32 0.0, %v806
    %808 = vmatmul.f32.gmra.mxu0 %v610
    %v809 = vpop.f32.mrf.mxu0
    %v810 = vadd.f32 0.0, %v809
    %811 = vmatmul.f32.gmra.mxu0 %v612
    %v812 = vpop.f32.mrf.mxu0
    %v813 = vadd.f32 0.0, %v812
    %814 = vmatmul.f32.gmra.mxu0 %v614
    %v815 = vpop.f32.mrf.mxu0
    %v816 = vadd.f32 0.0, %v815
    %817 = vmatmul.f32.gmra.mxu0 %v616
    %v818 = vpop.f32.mrf.mxu0
    %v819 = vadd.f32 0.0, %v818
    %820 = vmatmul.f32.gmra.mxu0 %v618
    %v821 = vpop.f32.mrf.mxu0
    %v822 = vadd.f32 0.0, %v821
    %823 = vmatmul.f32.gmra.mxu0 %v620
    %v824 = vpop.f32.mrf.mxu0
    %v825 = vadd.f32 0.0, %v824
    %826 = vmatmul.f32.gmra.mxu0 %v622
    %v827 = vpop.f32.mrf.mxu0
    %v828 = vadd.f32 0.0, %v827
    %829 = vmatmul.f32.gmra.mxu0 %v624
    %v830 = vpop.f32.mrf.mxu0
    %v831 = vadd.f32 0.0, %v830
    %832 = vmatmul.f32.gmra.mxu0 %v626
    %v833 = vpop.f32.mrf.mxu0
    %v834 = vadd.f32 0.0, %v833
    %835 = vmatmul.f32.gmra.mxu0 %v628
    %v836 = vpop.f32.mrf.mxu0
    %v837 = vadd.f32 0.0, %v836
    %838 = vdwg.mxu0
    %839 = vmatpush.msra.mxu0 0.0
    %840 = vmatpush.msra.mxu0 0.0
    %841 = vmatpush.msra.mxu0 0.0
    %842 = vmatpush.msra.mxu0 0.0
    %843 = vmatpush.msra.mxu0 0.0
    %844 = vmatpush.msra.mxu0 0.0
    %845 = vmatpush.msra.mxu0 0.0
    %846 = vmatpush.msra.mxu0 0.0
    %847 = vmatpush.msra.mxu0 0.0
    %848 = vmatpush.msra.mxu0 0.0
    %849 = vmatpush.msra.mxu0 0.0
    %850 = vmatpush.msra.mxu0 0.0
    %851 = vmatpush.msra.mxu0 0.0
    %852 = vmatpush.msra.mxu0 0.0
    %853 = vmatpush.msra.mxu0 0.0
    %854 = vmatpush.msra.mxu0 %v500
    %855 = vmatmul.f32.gmra.mxu0 %v502
    %v856 = vpop.f32.mrf.mxu0
    %v857 = vadd.f32 0.0, %v856
    %858 = vmatmul.f32.gmra.mxu0 %v504
    %v859 = vpop.f32.mrf.mxu0
    %v860 = vadd.f32 0.0, %v859
    %861 = vmatmul.f32.gmra.mxu0 %v506
    %v862 = vpop.f32.mrf.mxu0
    %v863 = vadd.f32 0.0, %v862
    %864 = vmatmul.f32.gmra.mxu0 %v508
    %v865 = vpop.f32.mrf.mxu0
    %v866 = vadd.f32 0.0, %v865
    %867 = vmatmul.f32.gmra.mxu0 %v510
    %v868 = vpop.f32.mrf.mxu0
    %v869 = vadd.f32 0.0, %v868
    %870 = vmatmul.f32.gmra.mxu0 %v512
    %v871 = vpop.f32.mrf.mxu0
    %v872 = vadd.f32 0.0, %v871
    %873 = vmatmul.f32.gmra.mxu0 %v514
    %v874 = vpop.f32.mrf.mxu0
    %v875 = vadd.f32 0.0, %v874
    %876 = vmatmul.f32.gmra.mxu0 %v516
    %v877 = vpop.f32.mrf.mxu0
    %v878 = vadd.f32 0.0, %v877
    %879 = vmatmul.f32.gmra.mxu0 %v518
    %v880 = vpop.f32.mrf.mxu0
    %v881 = vadd.f32 0.0, %v880
    %882 = vmatmul.f32.gmra.mxu0 %v520
    %v883 = vpop.f32.mrf.mxu0
    %v884 = vadd.f32 0.0, %v883
    %885 = vmatmul.f32.gmra.mxu0 %v522
    %v886 = vpop.f32.mrf.mxu0
    %v887 = vadd.f32 0.0, %v886
    %888 = vmatmul.f32.gmra.mxu0 %v524
    %v889 = vpop.f32.mrf.mxu0
    %v890 = vadd.f32 0.0, %v889
    %891 = vmatmul.f32.gmra.mxu0 %v526
    %v892 = vpop.f32.mrf.mxu0
    %v893 = vadd.f32 0.0, %v892
    %894 = vmatmul.f32.gmra.mxu0 %v528
    %v895 = vpop.f32.mrf.mxu0
    %v896 = vadd.f32 0.0, %v895
    %897 = vmatmul.f32.gmra.mxu0 %v530
    %v898 = vpop.f32.mrf.mxu0
    %v899 = vadd.f32 0.0, %v898
    %900 = vmatmul.f32.gmra.mxu0 %v532
    %v901 = vpop.f32.mrf.mxu0
    %v902 = vadd.f32 0.0, %v901
    %903 = vmatmul.f32.gmra.mxu0 %v534
    %v904 = vpop.f32.mrf.mxu0
    %v905 = vadd.f32 0.0, %v904
    %906 = vmatmul.f32.gmra.mxu0 %v536
    %v907 = vpop.f32.mrf.mxu0
    %v908 = vadd.f32 0.0, %v907
    %909 = vmatmul.f32.gmra.mxu0 %v538
    %v910 = vpop.f32.mrf.mxu0
    %v911 = vadd.f32 0.0, %v910
    %912 = vmatmul.f32.gmra.mxu0 %v540
    %v913 = vpop.f32.mrf.mxu0
    %v914 = vadd.f32 0.0, %v913
    %915 = vmatmul.f32.gmra.mxu0 %v542
    %v916 = vpop.f32.mrf.mxu0
    %v917 = vadd.f32 0.0, %v916
    %918 = vmatmul.f32.gmra.mxu0 %v544
    %v919 = vpop.f32.mrf.mxu0
    %v920 = vadd.f32 0.0, %v919
    %921 = vmatmul.f32.gmra.mxu0 %v546
    %v922 = vpop.f32.mrf.mxu0
    %v923 = vadd.f32 0.0, %v922
    %924 = vmatmul.f32.gmra.mxu0 %v548
    %v925 = vpop.f32.mrf.mxu0
    %v926 = vadd.f32 0.0, %v925
    %927 = vmatmul.f32.gmra.mxu0 %v550
    %v928 = vpop.f32.mrf.mxu0
    %v929 = vadd.f32 0.0, %v928
    %930 = vmatmul.f32.gmra.mxu0 %v552
    %v931 = vpop.f32.mrf.mxu0
    %v932 = vadd.f32 0.0, %v931
    %933 = vmatmul.f32.gmra.mxu0 %v554
    %v934 = vpop.f32.mrf.mxu0
    %v935 = vadd.f32 0.0, %v934
    %936 = vmatmul.f32.gmra.mxu0 %v556
    %v937 = vpop.f32.mrf.mxu0
    %v938 = vadd.f32 0.0, %v937
    %939 = vmatmul.f32.gmra.mxu0 %v558
    %v940 = vpop.f32.mrf.mxu0
    %v941 = vadd.f32 0.0, %v940
    %942 = vmatmul.f32.gmra.mxu0 %v560
    %v943 = vpop.f32.mrf.mxu0
    %v944 = vadd.f32 0.0, %v943
    %945 = vmatmul.f32.gmra.mxu0 %v562
    %v946 = vpop.f32.mrf.mxu0
    %v947 = vadd.f32 0.0, %v946
    %948 = vmatmul.f32.gmra.mxu0 %v564
    %v949 = vpop.f32.mrf.mxu0
    %v950 = vadd.f32 0.0, %v949
    %951 = vmatmul.f32.gmra.mxu0 %v566
    %v952 = vpop.f32.mrf.mxu0
    %v953 = vadd.f32 0.0, %v952
    %954 = vmatmul.f32.gmra.mxu0 %v568
    %v955 = vpop.f32.mrf.mxu0
    %v956 = vadd.f32 0.0, %v955
    %957 = vmatmul.f32.gmra.mxu0 %v570
    %v958 = vpop.f32.mrf.mxu0
    %v959 = vadd.f32 0.0, %v958
    %960 = vmatmul.f32.gmra.mxu0 %v572
    %v961 = vpop.f32.mrf.mxu0
    %v962 = vadd.f32 0.0, %v961
    %963 = vmatmul.f32.gmra.mxu0 %v574
    %v964 = vpop.f32.mrf.mxu0
    %v965 = vadd.f32 0.0, %v964
    %966 = vmatmul.f32.gmra.mxu0 %v576
    %v967 = vpop.f32.mrf.mxu0
    %v968 = vadd.f32 0.0, %v967
    %969 = vmatmul.f32.gmra.mxu0 %v578
    %v970 = vpop.f32.mrf.mxu0
    %v971 = vadd.f32 0.0, %v970
    %972 = vmatmul.f32.gmra.mxu0 %v580
    %v973 = vpop.f32.mrf.mxu0
    %v974 = vadd.f32 0.0, %v973
    %975 = vmatmul.f32.gmra.mxu0 %v582
    %v976 = vpop.f32.mrf.mxu0
    %v977 = vadd.f32 0.0, %v976
    %978 = vmatmul.f32.gmra.mxu0 %v584
    %v979 = vpop.f32.mrf.mxu0
    %v980 = vadd.f32 0.0, %v979
    %981 = vmatmul.f32.gmra.mxu0 %v586
    %v982 = vpop.f32.mrf.mxu0
    %v983 = vadd.f32 0.0, %v982
    %984 = vmatmul.f32.gmra.mxu0 %v588
    %v985 = vpop.f32.mrf.mxu0
    %v986 = vadd.f32 0.0, %v985
    %987 = vmatmul.f32.gmra.mxu0 %v590
    %v988 = vpop.f32.mrf.mxu0
    %v989 = vadd.f32 0.0, %v988
    %990 = vmatmul.f32.gmra.mxu0 %v592
    %v991 = vpop.f32.mrf.mxu0
    %v992 = vadd.f32 0.0, %v991
    %993 = vmatmul.f32.gmra.mxu0 %v594
    %v994 = vpop.f32.mrf.mxu0
    %v995 = vadd.f32 0.0, %v994
    %996 = vmatmul.f32.gmra.mxu0 %v596
    %v997 = vpop.f32.mrf.mxu0
    %v998 = vadd.f32 0.0, %v997
    %999 = vmatmul.f32.gmra.mxu0 %v598
    %v1000 = vpop.f32.mrf.mxu0
    %v1001 = vadd.f32 0.0, %v1000
    %1002 = vmatmul.f32.gmra.mxu0 %v600
    %v1003 = vpop.f32.mrf.mxu0
    %v1004 = vadd.f32 0.0, %v1003
    %1005 = vmatmul.f32.gmra.mxu0 %v602
    %v1006 = vpop.f32.mrf.mxu0
    %v1007 = vadd.f32 0.0, %v1006
    %1008 = vmatmul.f32.gmra.mxu0 %v604
    %v1009 = vpop.f32.mrf.mxu0
    %v1010 = vadd.f32 0.0, %v1009
    %1011 = vmatmul.f32.gmra.mxu0 %v606
    %v1012 = vpop.f32.mrf.mxu0
    %v1013 = vadd.f32 0.0, %v1012
    %1014 = vmatmul.f32.gmra.mxu0 %v608
    %v1015 = vpop.f32.mrf.mxu0
    %v1016 = vadd.f32 0.0, %v1015
    %1017 = vmatmul.f32.gmra.mxu0 %v610
    %v1018 = vpop.f32.mrf.mxu0
    %v1019 = vadd.f32 0.0, %v1018
    %1020 = vmatmul.f32.gmra.mxu0 %v612
    %v1021 = vpop.f32.mrf.mxu0
    %v1022 = vadd.f32 0.0, %v1021
    %1023 = vmatmul.f32.gmra.mxu0 %v614
    %v1024 = vpop.f32.mrf.mxu0
    %v1025 = vadd.f32 0.0, %v1024
    %1026 = vmatmul.f32.gmra.mxu0 %v616
    %v1027 = vpop.f32.mrf.mxu0
    %v1028 = vadd.f32 0.0, %v1027
    %1029 = vmatmul.f32.gmra.mxu0 %v618
    %v1030 = vpop.f32.mrf.mxu0
    %v1031 = vadd.f32 0.0, %v1030
    %1032 = vmatmul.f32.gmra.mxu0 %v620
    %v1033 = vpop.f32.mrf.mxu0
    %v1034 = vadd.f32 0.0, %v1033
    %1035 = vmatmul.f32.gmra.mxu0 %v622
    %v1036 = vpop.f32.mrf.mxu0
    %v1037 = vadd.f32 0.0, %v1036
    %1038 = vmatmul.f32.gmra.mxu0 %v624
    %v1039 = vpop.f32.mrf.mxu0
    %v1040 = vadd.f32 0.0, %v1039
    %1041 = vmatmul.f32.gmra.mxu0 %v626
    %v1042 = vpop.f32.mrf.mxu0
    %v1043 = vadd.f32 0.0, %v1042
    %1044 = vmatmul.f32.gmra.mxu0 %v628
    %v1045 = vpop.f32.mrf.mxu0
    %v1046 = vadd.f32 0.0, %v1045
    %1047 = vdwg.mxu0
    %v1048 = vsel %vm501, %v15, 0
    %v1050 = vsel %vm501, %v17, 0
    %v1052 = vsel %vm501, %v19, 0
    %v1054 = vsel %vm501, %v21, 0
    %v1056 = vsel %vm501, %v23, 0
    %v1058 = vsel %vm501, %v25, 0
    %v1060 = vsel %vm501, %v27, 0
    %v1062 = vsel %vm501, %v29, 0
    %v1064 = vsel %vm501, %v35, 0
    %v1066 = vsel %vm501, %v37, 0
    %v1068 = vsel %vm501, %v39, 0
    %v1070 = vsel %vm501, %v41, 0
    %v1072 = vsel %vm501, %v43, 0
    %v1074 = vsel %vm501, %v45, 0
    %v1076 = vsel %vm501, %v47, 0
    %v1078 = vsel %vm501, %v49, 0
    %v1080 = vsel %vm501, %v55, 0
    %v1082 = vsel %vm501, %v57, 0
    %v1084 = vsel %vm501, %v59, 0
    %v1086 = vsel %vm501, %v61, 0
    %v1088 = vsel %vm501, %v63, 0
    %v1090 = vsel %vm501, %v65, 0
    %v1092 = vsel %vm501, %v67, 0
    %v1094 = vsel %vm501, %v69, 0
    %v1096 = vsel %vm501, %v75, 0
    %v1098 = vsel %vm501, %v77, 0
    %v1100 = vsel %vm501, %v79, 0
    %v1102 = vsel %vm501, %v81, 0
    %v1104 = vsel %vm501, %v83, 0
    %v1106 = vsel %vm501, %v85, 0
    %v1108 = vsel %vm501, %v87, 0
    %v1110 = vsel %vm501, %v89, 0
    %v1112 = vsel %vm501, %v95, 0
    %v1114 = vsel %vm501, %v97, 0
    %v1116 = vsel %vm501, %v99, 0
    %v1118 = vsel %vm501, %v101, 0
    %v1120 = vsel %vm501, %v103, 0
    %v1122 = vsel %vm501, %v105, 0
    %v1124 = vsel %vm501, %v107, 0
    %v1126 = vsel %vm501, %v109, 0
    %v1128 = vsel %vm501, %v115, 0
    %v1130 = vsel %vm501, %v117, 0
    %v1132 = vsel %vm501, %v119, 0
    %v1134 = vsel %vm501, %v121, 0
    %v1136 = vsel %vm501, %v123, 0
    %v1138 = vsel %vm501, %v125, 0
    %v1140 = vsel %vm501, %v127, 0
    %v1142 = vsel %vm501, %v129, 0
    %v1144 = vsel %vm501, %v135, 0
    %v1146 = vsel %vm501, %v137, 0
    %v1148 = vsel %vm501, %v139, 0
    %v1150 = vsel %vm501, %v141, 0
    %v1152 = vsel %vm501, %v143, 0
    %v1154 = vsel %vm501, %v145, 0
    %v1156 = vsel %vm501, %v147, 0
    %v1158 = vsel %vm501, %v149, 0
    %v1160 = vsel %vm501, %v155, 0
    %v1162 = vsel %vm501, %v157, 0
    %v1164 = vsel %vm501, %v159, 0
    %v1166 = vsel %vm501, %v161, 0
    %v1168 = vsel %vm501, %v163, 0
    %v1170 = vsel %vm501, %v165, 0
    %v1172 = vsel %vm501, %v167, 0
    %v1174 = vsel %vm501, %v169, 0
    %1176 = vmatpush.msra.mxu0 0.0
    %1177 = vmatpush.msra.mxu0 0.0
    %1178 = vmatpush.msra.mxu0 0.0
    %1179 = vmatpush.msra.mxu0 0.0
    %1180 = vmatpush.msra.mxu0 0.0
    %1181 = vmatpush.msra.mxu0 0.0
    %1182 = vmatpush.msra.mxu0 0.0
    %1183 = vmatpush.msra.mxu0 0.0
    %1184 = vmatpush.msra.mxu0 0.0
    %1185 = vmatpush.msra.mxu0 0.0
    %1186 = vmatpush.msra.mxu0 0.0
    %1187 = vmatpush.msra.mxu0 0.0
    %1188 = vmatpush.msra.mxu0 0.0
    %1189 = vmatpush.msra.mxu0 0.0
    %1190 = vmatpush.msra.mxu0 0.0
    %1191 = vmatpush.msra.mxu0 %v175
    %1192 = vmatmul.f32.gmra.mxu0 %v1048
    %v1193 = vpop.f32.mrf.mxu0
    %v1194 = vadd.f32 %v648, %v1193
    %1195 = vmatmul.f32.gmra.mxu0 %v1050
    %v1196 = vpop.f32.mrf.mxu0
    %v1197 = vadd.f32 %v651, %v1196
    %1198 = vmatmul.f32.gmra.mxu0 %v1052
    %v1199 = vpop.f32.mrf.mxu0
    %v1200 = vadd.f32 %v654, %v1199
    %1201 = vmatmul.f32.gmra.mxu0 %v1054
    %v1202 = vpop.f32.mrf.mxu0
    %v1203 = vadd.f32 %v657, %v1202
    %1204 = vmatmul.f32.gmra.mxu0 %v1056
    %v1205 = vpop.f32.mrf.mxu0
    %v1206 = vadd.f32 %v660, %v1205
    %1207 = vmatmul.f32.gmra.mxu0 %v1058
    %v1208 = vpop.f32.mrf.mxu0
    %v1209 = vadd.f32 %v663, %v1208
    %1210 = vmatmul.f32.gmra.mxu0 %v1060
    %v1211 = vpop.f32.mrf.mxu0
    %v1212 = vadd.f32 %v666, %v1211
    %1213 = vmatmul.f32.gmra.mxu0 %v1062
    %v1214 = vpop.f32.mrf.mxu0
    %v1215 = vadd.f32 %v669, %v1214
    %1216 = vmatmul.f32.gmra.mxu0 %v1064
    %v1217 = vpop.f32.mrf.mxu0
    %v1218 = vadd.f32 %v672, %v1217
    %1219 = vmatmul.f32.gmra.mxu0 %v1066
    %v1220 = vpop.f32.mrf.mxu0
    %v1221 = vadd.f32 %v675, %v1220
    %1222 = vmatmul.f32.gmra.mxu0 %v1068
    %v1223 = vpop.f32.mrf.mxu0
    %v1224 = vadd.f32 %v678, %v1223
    %1225 = vmatmul.f32.gmra.mxu0 %v1070
    %v1226 = vpop.f32.mrf.mxu0
    %v1227 = vadd.f32 %v681, %v1226
    %1228 = vmatmul.f32.gmra.mxu0 %v1072
    %v1229 = vpop.f32.mrf.mxu0
    %v1230 = vadd.f32 %v684, %v1229
    %1231 = vmatmul.f32.gmra.mxu0 %v1074
    %v1232 = vpop.f32.mrf.mxu0
    %v1233 = vadd.f32 %v687, %v1232
    %1234 = vmatmul.f32.gmra.mxu0 %v1076
    %v1235 = vpop.f32.mrf.mxu0
    %v1236 = vadd.f32 %v690, %v1235
    %1237 = vmatmul.f32.gmra.mxu0 %v1078
    %v1238 = vpop.f32.mrf.mxu0
    %v1239 = vadd.f32 %v693, %v1238
    %1240 = vmatmul.f32.gmra.mxu0 %v1080
    %v1241 = vpop.f32.mrf.mxu0
    %v1242 = vadd.f32 %v696, %v1241
    %1243 = vmatmul.f32.gmra.mxu0 %v1082
    %v1244 = vpop.f32.mrf.mxu0
    %v1245 = vadd.f32 %v699, %v1244
    %1246 = vmatmul.f32.gmra.mxu0 %v1084
    %v1247 = vpop.f32.mrf.mxu0
    %v1248 = vadd.f32 %v702, %v1247
    %1249 = vmatmul.f32.gmra.mxu0 %v1086
    %v1250 = vpop.f32.mrf.mxu0
    %v1251 = vadd.f32 %v705, %v1250
    %1252 = vmatmul.f32.gmra.mxu0 %v1088
    %v1253 = vpop.f32.mrf.mxu0
    %v1254 = vadd.f32 %v708, %v1253
    %1255 = vmatmul.f32.gmra.mxu0 %v1090
    %v1256 = vpop.f32.mrf.mxu0
    %v1257 = vadd.f32 %v711, %v1256
    %1258 = vmatmul.f32.gmra.mxu0 %v1092
    %v1259 = vpop.f32.mrf.mxu0
    %v1260 = vadd.f32 %v714, %v1259
    %1261 = vmatmul.f32.gmra.mxu0 %v1094
    %v1262 = vpop.f32.mrf.mxu0
    %v1263 = vadd.f32 %v717, %v1262
    %1264 = vmatmul.f32.gmra.mxu0 %v1096
    %v1265 = vpop.f32.mrf.mxu0
    %v1266 = vadd.f32 %v720, %v1265
    %1267 = vmatmul.f32.gmra.mxu0 %v1098
    %v1268 = vpop.f32.mrf.mxu0
    %v1269 = vadd.f32 %v723, %v1268
    %1270 = vmatmul.f32.gmra.mxu0 %v1100
    %v1271 = vpop.f32.mrf.mxu0
    %v1272 = vadd.f32 %v726, %v1271
    %1273 = vmatmul.f32.gmra.mxu0 %v1102
    %v1274 = vpop.f32.mrf.mxu0
    %v1275 = vadd.f32 %v729, %v1274
    %1276 = vmatmul.f32.gmra.mxu0 %v1104
    %v1277 = vpop.f32.mrf.mxu0
    %v1278 = vadd.f32 %v732, %v1277
    %1279 = vmatmul.f32.gmra.mxu0 %v1106
    %v1280 = vpop.f32.mrf.mxu0
    %v1281 = vadd.f32 %v735, %v1280
    %1282 = vmatmul.f32.gmra.mxu0 %v1108
    %v1283 = vpop.f32.mrf.mxu0
    %v1284 = vadd.f32 %v738, %v1283
    %1285 = vmatmul.f32.gmra.mxu0 %v1110
    %v1286 = vpop.f32.mrf.mxu0
    %v1287 = vadd.f32 %v741, %v1286
    %1288 = vmatmul.f32.gmra.mxu0 %v1112
    %v1289 = vpop.f32.mrf.mxu0
    %v1290 = vadd.f32 %v744, %v1289
    %1291 = vmatmul.f32.gmra.mxu0 %v1114
    %v1292 = vpop.f32.mrf.mxu0
    %v1293 = vadd.f32 %v747, %v1292
    %1294 = vmatmul.f32.gmra.mxu0 %v1116
    %v1295 = vpop.f32.mrf.mxu0
    %v1296 = vadd.f32 %v750, %v1295
    %1297 = vmatmul.f32.gmra.mxu0 %v1118
    %v1298 = vpop.f32.mrf.mxu0
    %v1299 = vadd.f32 %v753, %v1298
    %1300 = vmatmul.f32.gmra.mxu0 %v1120
    %v1301 = vpop.f32.mrf.mxu0
    %v1302 = vadd.f32 %v756, %v1301
    %1303 = vmatmul.f32.gmra.mxu0 %v1122
    %v1304 = vpop.f32.mrf.mxu0
    %v1305 = vadd.f32 %v759, %v1304
    %1306 = vmatmul.f32.gmra.mxu0 %v1124
    %v1307 = vpop.f32.mrf.mxu0
    %v1308 = vadd.f32 %v762, %v1307
    %1309 = vmatmul.f32.gmra.mxu0 %v1126
    %v1310 = vpop.f32.mrf.mxu0
    %v1311 = vadd.f32 %v765, %v1310
    %1312 = vmatmul.f32.gmra.mxu0 %v1128
    %v1313 = vpop.f32.mrf.mxu0
    %v1314 = vadd.f32 %v768, %v1313
    %1315 = vmatmul.f32.gmra.mxu0 %v1130
    %v1316 = vpop.f32.mrf.mxu0
    %v1317 = vadd.f32 %v771, %v1316
    %1318 = vmatmul.f32.gmra.mxu0 %v1132
    %v1319 = vpop.f32.mrf.mxu0
    %v1320 = vadd.f32 %v774, %v1319
    %1321 = vmatmul.f32.gmra.mxu0 %v1134
    %v1322 = vpop.f32.mrf.mxu0
    %v1323 = vadd.f32 %v777, %v1322
    %1324 = vmatmul.f32.gmra.mxu0 %v1136
    %v1325 = vpop.f32.mrf.mxu0
    %v1326 = vadd.f32 %v780, %v1325
    %1327 = vmatmul.f32.gmra.mxu0 %v1138
    %v1328 = vpop.f32.mrf.mxu0
    %v1329 = vadd.f32 %v783, %v1328
    %1330 = vmatmul.f32.gmra.mxu0 %v1140
    %v1331 = vpop.f32.mrf.mxu0
    %v1332 = vadd.f32 %v786, %v1331
    %1333 = vmatmul.f32.gmra.mxu0 %v1142
    %v1334 = vpop.f32.mrf.mxu0
    %v1335 = vadd.f32 %v789, %v1334
    %1336 = vmatmul.f32.gmra.mxu0 %v1144
    %v1337 = vpop.f32.mrf.mxu0
    %v1338 = vadd.f32 %v792, %v1337
    %1339 = vmatmul.f32.gmra.mxu0 %v1146
    %v1340 = vpop.f32.mrf.mxu0
    %v1341 = vadd.f32 %v795, %v1340
    %1342 = vmatmul.f32.gmra.mxu0 %v1148
    %v1343 = vpop.f32.mrf.mxu0
    %v1344 = vadd.f32 %v798, %v1343
    %1345 = vmatmul.f32.gmra.mxu0 %v1150
    %v1346 = vpop.f32.mrf.mxu0
    %v1347 = vadd.f32 %v801, %v1346
    %1348 = vmatmul.f32.gmra.mxu0 %v1152
    %v1349 = vpop.f32.mrf.mxu0
    %v1350 = vadd.f32 %v804, %v1349
    %1351 = vmatmul.f32.gmra.mxu0 %v1154
    %v1352 = vpop.f32.mrf.mxu0
    %v1353 = vadd.f32 %v807, %v1352
    %1354 = vmatmul.f32.gmra.mxu0 %v1156
    %v1355 = vpop.f32.mrf.mxu0
    %v1356 = vadd.f32 %v810, %v1355
    %1357 = vmatmul.f32.gmra.mxu0 %v1158
    %v1358 = vpop.f32.mrf.mxu0
    %v1359 = vadd.f32 %v813, %v1358
    %1360 = vmatmul.f32.gmra.mxu0 %v1160
    %v1361 = vpop.f32.mrf.mxu0
    %v1362 = vadd.f32 %v816, %v1361
    %1363 = vmatmul.f32.gmra.mxu0 %v1162
    %v1364 = vpop.f32.mrf.mxu0
    %v1365 = vadd.f32 %v819, %v1364
    %1366 = vmatmul.f32.gmra.mxu0 %v1164
    %v1367 = vpop.f32.mrf.mxu0
    %v1368 = vadd.f32 %v822, %v1367
    %1369 = vmatmul.f32.gmra.mxu0 %v1166
    %v1370 = vpop.f32.mrf.mxu0
    %v1371 = vadd.f32 %v825, %v1370
    %1372 = vmatmul.f32.gmra.mxu0 %v1168
    %v1373 = vpop.f32.mrf.mxu0
    %v1374 = vadd.f32 %v828, %v1373
    %1375 = vmatmul.f32.gmra.mxu0 %v1170
    %v1376 = vpop.f32.mrf.mxu0
    %v1377 = vadd.f32 %v831, %v1376
    %1378 = vmatmul.f32.gmra.mxu0 %v1172
    %v1379 = vpop.f32.mrf.mxu0
    %v1380 = vadd.f32 %v834, %v1379
    %1381 = vmatmul.f32.gmra.mxu0 %v1174
    %v1382 = vpop.f32.mrf.mxu0
    %v1383 = vadd.f32 %v837, %v1382
    %1384 = vdwg.mxu0
    %1385 = vmatpush.msra.mxu0 0.0
    %1386 = vmatpush.msra.mxu0 0.0
    %1387 = vmatpush.msra.mxu0 0.0
    %1388 = vmatpush.msra.mxu0 0.0
    %1389 = vmatpush.msra.mxu0 0.0
    %1390 = vmatpush.msra.mxu0 0.0
    %1391 = vmatpush.msra.mxu0 0.0
    %1392 = vmatpush.msra.mxu0 0.0
    %1393 = vmatpush.msra.mxu0 0.0
    %1394 = vmatpush.msra.mxu0 0.0
    %1395 = vmatpush.msra.mxu0 0.0
    %1396 = vmatpush.msra.mxu0 0.0
    %1397 = vmatpush.msra.mxu0 0.0
    %1398 = vmatpush.msra.mxu0 0.0
    %1399 = vmatpush.msra.mxu0 0.0
    %1400 = vmatpush.msra.mxu0 %v176
    %1401 = vmatmul.f32.gmra.mxu0 %v1048
    %v1402 = vpop.f32.mrf.mxu0
    %v1403 = vadd.f32 %v857, %v1402
    %1404 = vmatmul.f32.gmra.mxu0 %v1050
    %v1405 = vpop.f32.mrf.mxu0
    %v1406 = vadd.f32 %v860, %v1405
    %1407 = vmatmul.f32.gmra.mxu0 %v1052
    %v1408 = vpop.f32.mrf.mxu0
    %v1409 = vadd.f32 %v863, %v1408
    %1410 = vmatmul.f32.gmra.mxu0 %v1054
    %v1411 = vpop.f32.mrf.mxu0
    %v1412 = vadd.f32 %v866, %v1411
    %1413 = vmatmul.f32.gmra.mxu0 %v1056
    %v1414 = vpop.f32.mrf.mxu0
    %v1415 = vadd.f32 %v869, %v1414
    %1416 = vmatmul.f32.gmra.mxu0 %v1058
    %v1417 = vpop.f32.mrf.mxu0
    %v1418 = vadd.f32 %v872, %v1417
    %1419 = vmatmul.f32.gmra.mxu0 %v1060
    %v1420 = vpop.f32.mrf.mxu0
    %v1421 = vadd.f32 %v875, %v1420
    %1422 = vmatmul.f32.gmra.mxu0 %v1062
    %v1423 = vpop.f32.mrf.mxu0
    %v1424 = vadd.f32 %v878, %v1423
    %1425 = vmatmul.f32.gmra.mxu0 %v1064
    %v1426 = vpop.f32.mrf.mxu0
    %v1427 = vadd.f32 %v881, %v1426
    %1428 = vmatmul.f32.gmra.mxu0 %v1066
    %v1429 = vpop.f32.mrf.mxu0
    %v1430 = vadd.f32 %v884, %v1429
    %1431 = vmatmul.f32.gmra.mxu0 %v1068
    %v1432 = vpop.f32.mrf.mxu0
    %v1433 = vadd.f32 %v887, %v1432
    %1434 = vmatmul.f32.gmra.mxu0 %v1070
    %v1435 = vpop.f32.mrf.mxu0
    %v1436 = vadd.f32 %v890, %v1435
    %1437 = vmatmul.f32.gmra.mxu0 %v1072
    %v1438 = vpop.f32.mrf.mxu0
    %v1439 = vadd.f32 %v893, %v1438
    %1440 = vmatmul.f32.gmra.mxu0 %v1074
    %v1441 = vpop.f32.mrf.mxu0
    %v1442 = vadd.f32 %v896, %v1441
    %1443 = vmatmul.f32.gmra.mxu0 %v1076
    %v1444 = vpop.f32.mrf.mxu0
    %v1445 = vadd.f32 %v899, %v1444
    %1446 = vmatmul.f32.gmra.mxu0 %v1078
    %v1447 = vpop.f32.mrf.mxu0
    %v1448 = vadd.f32 %v902, %v1447
    %1449 = vmatmul.f32.gmra.mxu0 %v1080
    %v1450 = vpop.f32.mrf.mxu0
    %v1451 = vadd.f32 %v905, %v1450
    %1452 = vmatmul.f32.gmra.mxu0 %v1082
    %v1453 = vpop.f32.mrf.mxu0
    %v1454 = vadd.f32 %v908, %v1453
    %1455 = vmatmul.f32.gmra.mxu0 %v1084
    %v1456 = vpop.f32.mrf.mxu0
    %v1457 = vadd.f32 %v911, %v1456
    %1458 = vmatmul.f32.gmra.mxu0 %v1086
    %v1459 = vpop.f32.mrf.mxu0
    %v1460 = vadd.f32 %v914, %v1459
    %1461 = vmatmul.f32.gmra.mxu0 %v1088
    %v1462 = vpop.f32.mrf.mxu0
    %v1463 = vadd.f32 %v917, %v1462
    %1464 = vmatmul.f32.gmra.mxu0 %v1090
    %v1465 = vpop.f32.mrf.mxu0
    %v1466 = vadd.f32 %v920, %v1465
    %1467 = vmatmul.f32.gmra.mxu0 %v1092
    %v1468 = vpop.f32.mrf.mxu0
    %v1469 = vadd.f32 %v923, %v1468
    %1470 = vmatmul.f32.gmra.mxu0 %v1094
    %v1471 = vpop.f32.mrf.mxu0
    %v1472 = vadd.f32 %v926, %v1471
    %1473 = vmatmul.f32.gmra.mxu0 %v1096
    %v1474 = vpop.f32.mrf.mxu0
    %v1475 = vadd.f32 %v929, %v1474
    %1476 = vmatmul.f32.gmra.mxu0 %v1098
    %v1477 = vpop.f32.mrf.mxu0
    %v1478 = vadd.f32 %v932, %v1477
    %1479 = vmatmul.f32.gmra.mxu0 %v1100
    %v1480 = vpop.f32.mrf.mxu0
    %v1481 = vadd.f32 %v935, %v1480
    %1482 = vmatmul.f32.gmra.mxu0 %v1102
    %v1483 = vpop.f32.mrf.mxu0
    %v1484 = vadd.f32 %v938, %v1483
    %1485 = vmatmul.f32.gmra.mxu0 %v1104
    %v1486 = vpop.f32.mrf.mxu0
    %v1487 = vadd.f32 %v941, %v1486
    %1488 = vmatmul.f32.gmra.mxu0 %v1106
    %v1489 = vpop.f32.mrf.mxu0
    %v1490 = vadd.f32 %v944, %v1489
    %1491 = vmatmul.f32.gmra.mxu0 %v1108
    %v1492 = vpop.f32.mrf.mxu0
    %v1493 = vadd.f32 %v947, %v1492
    %1494 = vmatmul.f32.gmra.mxu0 %v1110
    %v1495 = vpop.f32.mrf.mxu0
    %v1496 = vadd.f32 %v950, %v1495
    %1497 = vmatmul.f32.gmra.mxu0 %v1112
    %v1498 = vpop.f32.mrf.mxu0
    %v1499 = vadd.f32 %v953, %v1498
    %1500 = vmatmul.f32.gmra.mxu0 %v1114
    %v1501 = vpop.f32.mrf.mxu0
    %v1502 = vadd.f32 %v956, %v1501
    %1503 = vmatmul.f32.gmra.mxu0 %v1116
    %v1504 = vpop.f32.mrf.mxu0
    %v1505 = vadd.f32 %v959, %v1504
    %1506 = vmatmul.f32.gmra.mxu0 %v1118
    %v1507 = vpop.f32.mrf.mxu0
    %v1508 = vadd.f32 %v962, %v1507
    %1509 = vmatmul.f32.gmra.mxu0 %v1120
    %v1510 = vpop.f32.mrf.mxu0
    %v1511 = vadd.f32 %v965, %v1510
    %1512 = vmatmul.f32.gmra.mxu0 %v1122
    %v1513 = vpop.f32.mrf.mxu0
    %v1514 = vadd.f32 %v968, %v1513
    %1515 = vmatmul.f32.gmra.mxu0 %v1124
    %v1516 = vpop.f32.mrf.mxu0
    %v1517 = vadd.f32 %v971, %v1516
    %1518 = vmatmul.f32.gmra.mxu0 %v1126
    %v1519 = vpop.f32.mrf.mxu0
    %v1520 = vadd.f32 %v974, %v1519
    %1521 = vmatmul.f32.gmra.mxu0 %v1128
    %v1522 = vpop.f32.mrf.mxu0
    %v1523 = vadd.f32 %v977, %v1522
    %1524 = vmatmul.f32.gmra.mxu0 %v1130
    %v1525 = vpop.f32.mrf.mxu0
    %v1526 = vadd.f32 %v980, %v1525
    %1527 = vmatmul.f32.gmra.mxu0 %v1132
    %v1528 = vpop.f32.mrf.mxu0
    %v1529 = vadd.f32 %v983, %v1528
    %1530 = vmatmul.f32.gmra.mxu0 %v1134
    %v1531 = vpop.f32.mrf.mxu0
    %v1532 = vadd.f32 %v986, %v1531
    %1533 = vmatmul.f32.gmra.mxu0 %v1136
    %v1534 = vpop.f32.mrf.mxu0
    %v1535 = vadd.f32 %v989, %v1534
    %1536 = vmatmul.f32.gmra.mxu0 %v1138
    %v1537 = vpop.f32.mrf.mxu0
    %v1538 = vadd.f32 %v992, %v1537
    %1539 = vmatmul.f32.gmra.mxu0 %v1140
    %v1540 = vpop.f32.mrf.mxu0
    %v1541 = vadd.f32 %v995, %v1540
    %1542 = vmatmul.f32.gmra.mxu0 %v1142
    %v1543 = vpop.f32.mrf.mxu0
    %v1544 = vadd.f32 %v998, %v1543
    %1545 = vmatmul.f32.gmra.mxu0 %v1144
    %v1546 = vpop.f32.mrf.mxu0
    %v1547 = vadd.f32 %v1001, %v1546
    %1548 = vmatmul.f32.gmra.mxu0 %v1146
    %v1549 = vpop.f32.mrf.mxu0
    %v1550 = vadd.f32 %v1004, %v1549
    %1551 = vmatmul.f32.gmra.mxu0 %v1148
    %v1552 = vpop.f32.mrf.mxu0
    %v1553 = vadd.f32 %v1007, %v1552
    %1554 = vmatmul.f32.gmra.mxu0 %v1150
    %v1555 = vpop.f32.mrf.mxu0
    %v1556 = vadd.f32 %v1010, %v1555
    %1557 = vmatmul.f32.gmra.mxu0 %v1152
    %v1558 = vpop.f32.mrf.mxu0
    %v1559 = vadd.f32 %v1013, %v1558
    %1560 = vmatmul.f32.gmra.mxu0 %v1154
    %v1561 = vpop.f32.mrf.mxu0
    %v1562 = vadd.f32 %v1016, %v1561
    %1563 = vmatmul.f32.gmra.mxu0 %v1156
    %v1564 = vpop.f32.mrf.mxu0
    %v1565 = vadd.f32 %v1019, %v1564
    %1566 = vmatmul.f32.gmra.mxu0 %v1158
    %v1567 = vpop.f32.mrf.mxu0
    %v1568 = vadd.f32 %v1022, %v1567
    %1569 = vmatmul.f32.gmra.mxu0 %v1160
    %v1570 = vpop.f32.mrf.mxu0
    %v1571 = vadd.f32 %v1025, %v1570
    %1572 = vmatmul.f32.gmra.mxu0 %v1162
    %v1573 = vpop.f32.mrf.mxu0
    %v1574 = vadd.f32 %v1028, %v1573
    %1575 = vmatmul.f32.gmra.mxu0 %v1164
    %v1576 = vpop.f32.mrf.mxu0
    %v1577 = vadd.f32 %v1031, %v1576
    %1578 = vmatmul.f32.gmra.mxu0 %v1166
    %v1579 = vpop.f32.mrf.mxu0
    %v1580 = vadd.f32 %v1034, %v1579
    %1581 = vmatmul.f32.gmra.mxu0 %v1168
    %v1582 = vpop.f32.mrf.mxu0
    %v1583 = vadd.f32 %v1037, %v1582
    %1584 = vmatmul.f32.gmra.mxu0 %v1170
    %v1585 = vpop.f32.mrf.mxu0
    %v1586 = vadd.f32 %v1040, %v1585
    %1587 = vmatmul.f32.gmra.mxu0 %v1172
    %v1588 = vpop.f32.mrf.mxu0
    %v1589 = vadd.f32 %v1043, %v1588
    %1590 = vmatmul.f32.gmra.mxu0 %v1174
    %v1591 = vpop.f32.mrf.mxu0
    %v1592 = vadd.f32 %v1046, %v1591
    %1593 = vdwg.mxu0
    %vm1594 = vcmask 1045504
    %v1595 = vrot.slane %v15, 2
    %v1596 = vrot.slane %v16, 2
    %v1597 = vsel %vm1594, %v1595, %v1596
    %v1598 = vrot.slane %v17, 2
    %v1599 = vrot.slane %v18, 2
    %v1600 = vsel %vm1594, %v1598, %v1599
    %v1601 = vrot.slane %v19, 2
    %v1602 = vrot.slane %v20, 2
    %v1603 = vsel %vm1594, %v1601, %v1602
    %v1604 = vrot.slane %v21, 2
    %v1605 = vrot.slane %v22, 2
    %v1606 = vsel %vm1594, %v1604, %v1605
    %v1607 = vrot.slane %v23, 2
    %v1608 = vrot.slane %v24, 2
    %v1609 = vsel %vm1594, %v1607, %v1608
    %v1610 = vrot.slane %v25, 2
    %v1611 = vrot.slane %v26, 2
    %v1612 = vsel %vm1594, %v1610, %v1611
    %v1613 = vrot.slane %v27, 2
    %v1614 = vrot.slane %v28, 2
    %v1615 = vsel %vm1594, %v1613, %v1614
    %v1616 = vrot.slane %v29, 2
    %v1617 = vrot.slane %v30, 2
    %v1618 = vsel %vm1594, %v1616, %v1617
    %v1619 = vrot.slane %v35, 2
    %v1620 = vrot.slane %v36, 2
    %v1621 = vsel %vm1594, %v1619, %v1620
    %v1622 = vrot.slane %v37, 2
    %v1623 = vrot.slane %v38, 2
    %v1624 = vsel %vm1594, %v1622, %v1623
    %v1625 = vrot.slane %v39, 2
    %v1626 = vrot.slane %v40, 2
    %v1627 = vsel %vm1594, %v1625, %v1626
    %v1628 = vrot.slane %v41, 2
    %v1629 = vrot.slane %v42, 2
    %v1630 = vsel %vm1594, %v1628, %v1629
    %v1631 = vrot.slane %v43, 2
    %v1632 = vrot.slane %v44, 2
    %v1633 = vsel %vm1594, %v1631, %v1632
    %v1634 = vrot.slane %v45, 2
    %v1635 = vrot.slane %v46, 2
    %v1636 = vsel %vm1594, %v1634, %v1635
    %v1637 = vrot.slane %v47, 2
    %v1638 = vrot.slane %v48, 2
    %v1639 = vsel %vm1594, %v1637, %v1638
    %v1640 = vrot.slane %v49, 2
    %v1641 = vrot.slane %v50, 2
    %v1642 = vsel %vm1594, %v1640, %v1641
    %v1643 = vrot.slane %v55, 2
    %v1644 = vrot.slane %v56, 2
    %v1645 = vsel %vm1594, %v1643, %v1644
    %v1646 = vrot.slane %v57, 2
    %v1647 = vrot.slane %v58, 2
    %v1648 = vsel %vm1594, %v1646, %v1647
    %v1649 = vrot.slane %v59, 2
    %v1650 = vrot.slane %v60, 2
    %v1651 = vsel %vm1594, %v1649, %v1650
    %v1652 = vrot.slane %v61, 2
    %v1653 = vrot.slane %v62, 2
    %v1654 = vsel %vm1594, %v1652, %v1653
    %v1655 = vrot.slane %v63, 2
    %v1656 = vrot.slane %v64, 2
    %v1657 = vsel %vm1594, %v1655, %v1656
    %v1658 = vrot.slane %v65, 2
    %v1659 = vrot.slane %v66, 2
    %v1660 = vsel %vm1594, %v1658, %v1659
    %v1661 = vrot.slane %v67, 2
    %v1662 = vrot.slane %v68, 2
    %v1663 = vsel %vm1594, %v1661, %v1662
    %v1664 = vrot.slane %v69, 2
    %v1665 = vrot.slane %v70, 2
    %v1666 = vsel %vm1594, %v1664, %v1665
    %v1667 = vrot.slane %v75, 2
    %v1668 = vrot.slane %v76, 2
    %v1669 = vsel %vm1594, %v1667, %v1668
    %v1670 = vrot.slane %v77, 2
    %v1671 = vrot.slane %v78, 2
    %v1672 = vsel %vm1594, %v1670, %v1671
    %v1673 = vrot.slane %v79, 2
    %v1674 = vrot.slane %v80, 2
    %v1675 = vsel %vm1594, %v1673, %v1674
    %v1676 = vrot.slane %v81, 2
    %v1677 = vrot.slane %v82, 2
    %v1678 = vsel %vm1594, %v1676, %v1677
    %v1679 = vrot.slane %v83, 2
    %v1680 = vrot.slane %v84, 2
    %v1681 = vsel %vm1594, %v1679, %v1680
    %v1682 = vrot.slane %v85, 2
    %v1683 = vrot.slane %v86, 2
    %v1684 = vsel %vm1594, %v1682, %v1683
    %v1685 = vrot.slane %v87, 2
    %v1686 = vrot.slane %v88, 2
    %v1687 = vsel %vm1594, %v1685, %v1686
    %v1688 = vrot.slane %v89, 2
    %v1689 = vrot.slane %v90, 2
    %v1690 = vsel %vm1594, %v1688, %v1689
    %v1691 = vrot.slane %v95, 2
    %v1692 = vrot.slane %v96, 2
    %v1693 = vsel %vm1594, %v1691, %v1692
    %v1694 = vrot.slane %v97, 2
    %v1695 = vrot.slane %v98, 2
    %v1696 = vsel %vm1594, %v1694, %v1695
    %v1697 = vrot.slane %v99, 2
    %v1698 = vrot.slane %v100, 2
    %v1699 = vsel %vm1594, %v1697, %v1698
    %v1700 = vrot.slane %v101, 2
    %v1701 = vrot.slane %v102, 2
    %v1702 = vsel %vm1594, %v1700, %v1701
    %v1703 = vrot.slane %v103, 2
    %v1704 = vrot.slane %v104, 2
    %v1705 = vsel %vm1594, %v1703, %v1704
    %v1706 = vrot.slane %v105, 2
    %v1707 = vrot.slane %v106, 2
    %v1708 = vsel %vm1594, %v1706, %v1707
    %v1709 = vrot.slane %v107, 2
    %v1710 = vrot.slane %v108, 2
    %v1711 = vsel %vm1594, %v1709, %v1710
    %v1712 = vrot.slane %v109, 2
    %v1713 = vrot.slane %v110, 2
    %v1714 = vsel %vm1594, %v1712, %v1713
    %v1715 = vrot.slane %v115, 2
    %v1716 = vrot.slane %v116, 2
    %v1717 = vsel %vm1594, %v1715, %v1716
    %v1718 = vrot.slane %v117, 2
    %v1719 = vrot.slane %v118, 2
    %v1720 = vsel %vm1594, %v1718, %v1719
    %v1721 = vrot.slane %v119, 2
    %v1722 = vrot.slane %v120, 2
    %v1723 = vsel %vm1594, %v1721, %v1722
    %v1724 = vrot.slane %v121, 2
    %v1725 = vrot.slane %v122, 2
    %v1726 = vsel %vm1594, %v1724, %v1725
    %v1727 = vrot.slane %v123, 2
    %v1728 = vrot.slane %v124, 2
    %v1729 = vsel %vm1594, %v1727, %v1728
    %v1730 = vrot.slane %v125, 2
    %v1731 = vrot.slane %v126, 2
    %v1732 = vsel %vm1594, %v1730, %v1731
    %v1733 = vrot.slane %v127, 2
    %v1734 = vrot.slane %v128, 2
    %v1735 = vsel %vm1594, %v1733, %v1734
    %v1736 = vrot.slane %v129, 2
    %v1737 = vrot.slane %v130, 2
    %v1738 = vsel %vm1594, %v1736, %v1737
    %v1739 = vrot.slane %v135, 2
    %v1740 = vrot.slane %v136, 2
    %v1741 = vsel %vm1594, %v1739, %v1740
    %v1742 = vrot.slane %v137, 2
    %v1743 = vrot.slane %v138, 2
    %v1744 = vsel %vm1594, %v1742, %v1743
    %v1745 = vrot.slane %v139, 2
    %v1746 = vrot.slane %v140, 2
    %v1747 = vsel %vm1594, %v1745, %v1746
    %v1748 = vrot.slane %v141, 2
    %v1749 = vrot.slane %v142, 2
    %v1750 = vsel %vm1594, %v1748, %v1749
    %v1751 = vrot.slane %v143, 2
    %v1752 = vrot.slane %v144, 2
    %v1753 = vsel %vm1594, %v1751, %v1752
    %v1754 = vrot.slane %v145, 2
    %v1755 = vrot.slane %v146, 2
    %v1756 = vsel %vm1594, %v1754, %v1755
    %v1757 = vrot.slane %v147, 2
    %v1758 = vrot.slane %v148, 2
    %v1759 = vsel %vm1594, %v1757, %v1758
    %v1760 = vrot.slane %v149, 2
    %v1761 = vrot.slane %v150, 2
    %v1762 = vsel %vm1594, %v1760, %v1761
    %v1763 = vrot.slane %v155, 2
    %v1764 = vrot.slane %v156, 2
    %v1765 = vsel %vm1594, %v1763, %v1764
    %v1766 = vrot.slane %v157, 2
    %v1767 = vrot.slane %v158, 2
    %v1768 = vsel %vm1594, %v1766, %v1767
    %v1769 = vrot.slane %v159, 2
    %v1770 = vrot.slane %v160, 2
    %v1771 = vsel %vm1594, %v1769, %v1770
    %v1772 = vrot.slane %v161, 2
    %v1773 = vrot.slane %v162, 2
    %v1774 = vsel %vm1594, %v1772, %v1773
    %v1775 = vrot.slane %v163, 2
    %v1776 = vrot.slane %v164, 2
    %v1777 = vsel %vm1594, %v1775, %v1776
    %v1778 = vrot.slane %v165, 2
    %v1779 = vrot.slane %v166, 2
    %v1780 = vsel %vm1594, %v1778, %v1779
    %v1781 = vrot.slane %v167, 2
    %v1782 = vrot.slane %v168, 2
    %v1783 = vsel %vm1594, %v1781, %v1782
    %v1784 = vrot.slane %v169, 2
    %v1785 = vrot.slane %v170, 2
    %v1786 = vsel %vm1594, %v1784, %v1785
    %s1787 = scalar_lea.vmem %s1, 32
    %v1788 = vld [vmem:[%s1787] sm:$0xff]
    %v1789 = vld [vmem:[%s1787 + $0x8] sm:$0xff]
    %v1790 = vsel %vm501, %v1597, 0
    %v1792 = vsel %vm501, %v1600, 0
    %v1794 = vsel %vm501, %v1603, 0
    %v1796 = vsel %vm501, %v1606, 0
    %v1798 = vsel %vm501, %v1609, 0
    %v1800 = vsel %vm501, %v1612, 0
    %v1802 = vsel %vm501, %v1615, 0
    %v1804 = vsel %vm501, %v1618, 0
    %v1806 = vsel %vm501, %v1621, 0
    %v1808 = vsel %vm501, %v1624, 0
    %v1810 = vsel %vm501, %v1627, 0
    %v1812 = vsel %vm501, %v1630, 0
    %v1814 = vsel %vm501, %v1633, 0
    %v1816 = vsel %vm501, %v1636, 0
    %v1818 = vsel %vm501, %v1639, 0
    %v1820 = vsel %vm501, %v1642, 0
    %v1822 = vsel %vm501, %v1645, 0
    %v1824 = vsel %vm501, %v1648, 0
    %v1826 = vsel %vm501, %v1651, 0
    %v1828 = vsel %vm501, %v1654, 0
    %v1830 = vsel %vm501, %v1657, 0
    %v1832 = vsel %vm501, %v1660, 0
    %v1834 = vsel %vm501, %v1663, 0
    %v1836 = vsel %vm501, %v1666, 0
    %v1838 = vsel %vm501, %v1669, 0
    %v1840 = vsel %vm501, %v1672, 0
    %v1842 = vsel %vm501, %v1675, 0
    %v1844 = vsel %vm501, %v1678, 0
    %v1846 = vsel %vm501, %v1681, 0
    %v1848 = vsel %vm501, %v1684, 0
    %v1850 = vsel %vm501, %v1687, 0
    %v1852 = vsel %vm501, %v1690, 0
    %v1854 = vsel %vm501, %v1693, 0
    %v1856 = vsel %vm501, %v1696, 0
    %v1858 = vsel %vm501, %v1699, 0
    %v1860 = vsel %vm501, %v1702, 0
    %v1862 = vsel %vm501, %v1705, 0
    %v1864 = vsel %vm501, %v1708, 0
    %v1866 = vsel %vm501, %v1711, 0
    %v1868 = vsel %vm501, %v1714, 0
    %v1870 = vsel %vm501, %v1717, 0
    %v1872 = vsel %vm501, %v1720, 0
    %v1874 = vsel %vm501, %v1723, 0
    %v1876 = vsel %vm501, %v1726, 0
    %v1878 = vsel %vm501, %v1729, 0
    %v1880 = vsel %vm501, %v1732, 0
    %v1882 = vsel %vm501, %v1735, 0
    %v1884 = vsel %vm501, %v1738, 0
    %v1886 = vsel %vm501, %v1741, 0
    %v1888 = vsel %vm501, %v1744, 0
    %v1890 = vsel %vm501, %v1747, 0
    %v1892 = vsel %vm501, %v1750, 0
    %v1894 = vsel %vm501, %v1753, 0
    %v1896 = vsel %vm501, %v1756, 0
    %v1898 = vsel %vm501, %v1759, 0
    %v1900 = vsel %vm501, %v1762, 0
    %v1902 = vsel %vm501, %v1765, 0
    %v1904 = vsel %vm501, %v1768, 0
    %v1906 = vsel %vm501, %v1771, 0
    %v1908 = vsel %vm501, %v1774, 0
    %v1910 = vsel %vm501, %v1777, 0
    %v1912 = vsel %vm501, %v1780, 0
    %v1914 = vsel %vm501, %v1783, 0
    %v1916 = vsel %vm501, %v1786, 0
    %1918 = vmatpush.msra.mxu0 0.0
    %1919 = vmatpush.msra.mxu0 0.0
    %1920 = vmatpush.msra.mxu0 0.0
    %1921 = vmatpush.msra.mxu0 0.0
    %1922 = vmatpush.msra.mxu0 0.0
    %1923 = vmatpush.msra.mxu0 0.0
    %1924 = vmatpush.msra.mxu0 0.0
    %1925 = vmatpush.msra.mxu0 0.0
    %1926 = vmatpush.msra.mxu0 0.0
    %1927 = vmatpush.msra.mxu0 0.0
    %1928 = vmatpush.msra.mxu0 0.0
    %1929 = vmatpush.msra.mxu0 0.0
    %1930 = vmatpush.msra.mxu0 0.0
    %1931 = vmatpush.msra.mxu0 0.0
    %1932 = vmatpush.msra.mxu0 0.0
    %1933 = vmatpush.msra.mxu0 %v1788
    %1934 = vmatmul.f32.gmra.mxu0 %v1790
    %v1935 = vpop.f32.mrf.mxu0
    %v1936 = vadd.f32 0.0, %v1935
    %1937 = vmatmul.f32.gmra.mxu0 %v1792
    %v1938 = vpop.f32.mrf.mxu0
    %v1939 = vadd.f32 0.0, %v1938
    %1940 = vmatmul.f32.gmra.mxu0 %v1794
    %v1941 = vpop.f32.mrf.mxu0
    %v1942 = vadd.f32 0.0, %v1941
    %1943 = vmatmul.f32.gmra.mxu0 %v1796
    %v1944 = vpop.f32.mrf.mxu0
    %v1945 = vadd.f32 0.0, %v1944
    %1946 = vmatmul.f32.gmra.mxu0 %v1798
    %v1947 = vpop.f32.mrf.mxu0
    %v1948 = vadd.f32 0.0, %v1947
    %1949 = vmatmul.f32.gmra.mxu0 %v1800
    %v1950 = vpop.f32.mrf.mxu0
    %v1951 = vadd.f32 0.0, %v1950
    %1952 = vmatmul.f32.gmra.mxu0 %v1802
    %v1953 = vpop.f32.mrf.mxu0
    %v1954 = vadd.f32 0.0, %v1953
    %1955 = vmatmul.f32.gmra.mxu0 %v1804
    %v1956 = vpop.f32.mrf.mxu0
    %v1957 = vadd.f32 0.0, %v1956
    %1958 = vmatmul.f32.gmra.mxu0 %v1806
    %v1959 = vpop.f32.mrf.mxu0
    %v1960 = vadd.f32 0.0, %v1959
    %1961 = vmatmul.f32.gmra.mxu0 %v1808
    %v1962 = vpop.f32.mrf.mxu0
    %v1963 = vadd.f32 0.0, %v1962
    %1964 = vmatmul.f32.gmra.mxu0 %v1810
    %v1965 = vpop.f32.mrf.mxu0
    %v1966 = vadd.f32 0.0, %v1965
    %1967 = vmatmul.f32.gmra.mxu0 %v1812
    %v1968 = vpop.f32.mrf.mxu0
    %v1969 = vadd.f32 0.0, %v1968
    %1970 = vmatmul.f32.gmra.mxu0 %v1814
    %v1971 = vpop.f32.mrf.mxu0
    %v1972 = vadd.f32 0.0, %v1971
    %1973 = vmatmul.f32.gmra.mxu0 %v1816
    %v1974 = vpop.f32.mrf.mxu0
    %v1975 = vadd.f32 0.0, %v1974
    %1976 = vmatmul.f32.gmra.mxu0 %v1818
    %v1977 = vpop.f32.mrf.mxu0
    %v1978 = vadd.f32 0.0, %v1977
    %1979 = vmatmul.f32.gmra.mxu0 %v1820
    %v1980 = vpop.f32.mrf.mxu0
    %v1981 = vadd.f32 0.0, %v1980
    %1982 = vmatmul.f32.gmra.mxu0 %v1822
    %v1983 = vpop.f32.mrf.mxu0
    %v1984 = vadd.f32 0.0, %v1983
    %1985 = vmatmul.f32.gmra.mxu0 %v1824
    %v1986 = vpop.f32.mrf.mxu0
    %v1987 = vadd.f32 0.0, %v1986
    %1988 = vmatmul.f32.gmra.mxu0 %v1826
    %v1989 = vpop.f32.mrf.mxu0
    %v1990 = vadd.f32 0.0, %v1989
    %1991 = vmatmul.f32.gmra.mxu0 %v1828
    %v1992 = vpop.f32.mrf.mxu0
    %v1993 = vadd.f32 0.0, %v1992
    %1994 = vmatmul.f32.gmra.mxu0 %v1830
    %v1995 = vpop.f32.mrf.mxu0
    %v1996 = vadd.f32 0.0, %v1995
    %1997 = vmatmul.f32.gmra.mxu0 %v1832
    %v1998 = vpop.f32.mrf.mxu0
    %v1999 = vadd.f32 0.0, %v1998
    %2000 = vmatmul.f32.gmra.mxu0 %v1834
    %v2001 = vpop.f32.mrf.mxu0
    %v2002 = vadd.f32 0.0, %v2001
    %2003 = vmatmul.f32.gmra.mxu0 %v1836
    %v2004 = vpop.f32.mrf.mxu0
    %v2005 = vadd.f32 0.0, %v2004
    %2006 = vmatmul.f32.gmra.mxu0 %v1838
    %v2007 = vpop.f32.mrf.mxu0
    %v2008 = vadd.f32 0.0, %v2007
    %2009 = vmatmul.f32.gmra.mxu0 %v1840
    %v2010 = vpop.f32.mrf.mxu0
    %v2011 = vadd.f32 0.0, %v2010
    %2012 = vmatmul.f32.gmra.mxu0 %v1842
    %v2013 = vpop.f32.mrf.mxu0
    %v2014 = vadd.f32 0.0, %v2013
    %2015 = vmatmul.f32.gmra.mxu0 %v1844
    %v2016 = vpop.f32.mrf.mxu0
    %v2017 = vadd.f32 0.0, %v2016
    %2018 = vmatmul.f32.gmra.mxu0 %v1846
    %v2019 = vpop.f32.mrf.mxu0
    %v2020 = vadd.f32 0.0, %v2019
    %2021 = vmatmul.f32.gmra.mxu0 %v1848
    %v2022 = vpop.f32.mrf.mxu0
    %v2023 = vadd.f32 0.0, %v2022
    %2024 = vmatmul.f32.gmra.mxu0 %v1850
    %v2025 = vpop.f32.mrf.mxu0
    %v2026 = vadd.f32 0.0, %v2025
    %2027 = vmatmul.f32.gmra.mxu0 %v1852
    %v2028 = vpop.f32.mrf.mxu0
    %v2029 = vadd.f32 0.0, %v2028
    %2030 = vmatmul.f32.gmra.mxu0 %v1854
    %v2031 = vpop.f32.mrf.mxu0
    %v2032 = vadd.f32 0.0, %v2031
    %2033 = vmatmul.f32.gmra.mxu0 %v1856
    %v2034 = vpop.f32.mrf.mxu0
    %v2035 = vadd.f32 0.0, %v2034
    %2036 = vmatmul.f32.gmra.mxu0 %v1858
    %v2037 = vpop.f32.mrf.mxu0
    %v2038 = vadd.f32 0.0, %v2037
    %2039 = vmatmul.f32.gmra.mxu0 %v1860
    %v2040 = vpop.f32.mrf.mxu0
    %v2041 = vadd.f32 0.0, %v2040
    %2042 = vmatmul.f32.gmra.mxu0 %v1862
    %v2043 = vpop.f32.mrf.mxu0
    %v2044 = vadd.f32 0.0, %v2043
    %2045 = vmatmul.f32.gmra.mxu0 %v1864
    %v2046 = vpop.f32.mrf.mxu0
    %v2047 = vadd.f32 0.0, %v2046
    %2048 = vmatmul.f32.gmra.mxu0 %v1866
    %v2049 = vpop.f32.mrf.mxu0
    %v2050 = vadd.f32 0.0, %v2049
    %2051 = vmatmul.f32.gmra.mxu0 %v1868
    %v2052 = vpop.f32.mrf.mxu0
    %v2053 = vadd.f32 0.0, %v2052
    %2054 = vmatmul.f32.gmra.mxu0 %v1870
    %v2055 = vpop.f32.mrf.mxu0
    %v2056 = vadd.f32 0.0, %v2055
    %2057 = vmatmul.f32.gmra.mxu0 %v1872
    %v2058 = vpop.f32.mrf.mxu0
    %v2059 = vadd.f32 0.0, %v2058
    %2060 = vmatmul.f32.gmra.mxu0 %v1874
    %v2061 = vpop.f32.mrf.mxu0
    %v2062 = vadd.f32 0.0, %v2061
    %2063 = vmatmul.f32.gmra.mxu0 %v1876
    %v2064 = vpop.f32.mrf.mxu0
    %v2065 = vadd.f32 0.0, %v2064
    %2066 = vmatmul.f32.gmra.mxu0 %v1878
    %v2067 = vpop.f32.mrf.mxu0
    %v2068 = vadd.f32 0.0, %v2067
    %2069 = vmatmul.f32.gmra.mxu0 %v1880
    %v2070 = vpop.f32.mrf.mxu0
    %v2071 = vadd.f32 0.0, %v2070
    %2072 = vmatmul.f32.gmra.mxu0 %v1882
    %v2073 = vpop.f32.mrf.mxu0
    %v2074 = vadd.f32 0.0, %v2073
    %2075 = vmatmul.f32.gmra.mxu0 %v1884
    %v2076 = vpop.f32.mrf.mxu0
    %v2077 = vadd.f32 0.0, %v2076
    %2078 = vmatmul.f32.gmra.mxu0 %v1886
    %v2079 = vpop.f32.mrf.mxu0
    %v2080 = vadd.f32 0.0, %v2079
    %2081 = vmatmul.f32.gmra.mxu0 %v1888
    %v2082 = vpop.f32.mrf.mxu0
    %v2083 = vadd.f32 0.0, %v2082
    %2084 = vmatmul.f32.gmra.mxu0 %v1890
    %v2085 = vpop.f32.mrf.mxu0
    %v2086 = vadd.f32 0.0, %v2085
    %2087 = vmatmul.f32.gmra.mxu0 %v1892
    %v2088 = vpop.f32.mrf.mxu0
    %v2089 = vadd.f32 0.0, %v2088
    %2090 = vmatmul.f32.gmra.mxu0 %v1894
    %v2091 = vpop.f32.mrf.mxu0
    %v2092 = vadd.f32 0.0, %v2091
    %2093 = vmatmul.f32.gmra.mxu0 %v1896
    %v2094 = vpop.f32.mrf.mxu0
    %v2095 = vadd.f32 0.0, %v2094
    %2096 = vmatmul.f32.gmra.mxu0 %v1898
    %v2097 = vpop.f32.mrf.mxu0
    %v2098 = vadd.f32 0.0, %v2097
    %2099 = vmatmul.f32.gmra.mxu0 %v1900
    %v2100 = vpop.f32.mrf.mxu0
    %v2101 = vadd.f32 0.0, %v2100
    %2102 = vmatmul.f32.gmra.mxu0 %v1902
    %v2103 = vpop.f32.mrf.mxu0
    %v2104 = vadd.f32 0.0, %v2103
    %2105 = vmatmul.f32.gmra.mxu0 %v1904
    %v2106 = vpop.f32.mrf.mxu0
    %v2107 = vadd.f32 0.0, %v2106
    %2108 = vmatmul.f32.gmra.mxu0 %v1906
    %v2109 = vpop.f32.mrf.mxu0
    %v2110 = vadd.f32 0.0, %v2109
    %2111 = vmatmul.f32.gmra.mxu0 %v1908
    %v2112 = vpop.f32.mrf.mxu0
    %v2113 = vadd.f32 0.0, %v2112
    %2114 = vmatmul.f32.gmra.mxu0 %v1910
    %v2115 = vpop.f32.mrf.mxu0
    %v2116 = vadd.f32 0.0, %v2115
    %2117 = vmatmul.f32.gmra.mxu0 %v1912
    %v2118 = vpop.f32.mrf.mxu0
    %v2119 = vadd.f32 0.0, %v2118
    %2120 = vmatmul.f32.gmra.mxu0 %v1914
    %v2121 = vpop.f32.mrf.mxu0
    %v2122 = vadd.f32 0.0, %v2121
    %2123 = vmatmul.f32.gmra.mxu0 %v1916
    %v2124 = vpop.f32.mrf.mxu0
    %v2125 = vadd.f32 0.0, %v2124
    %2126 = vdwg.mxu0
    %2127 = vmatpush.msra.mxu0 0.0
    %2128 = vmatpush.msra.mxu0 0.0
    %2129 = vmatpush.msra.mxu0 0.0
    %2130 = vmatpush.msra.mxu0 0.0
    %2131 = vmatpush.msra.mxu0 0.0
    %2132 = vmatpush.msra.mxu0 0.0
    %2133 = vmatpush.msra.mxu0 0.0
    %2134 = vmatpush.msra.mxu0 0.0
    %2135 = vmatpush.msra.mxu0 0.0
    %2136 = vmatpush.msra.mxu0 0.0
    %2137 = vmatpush.msra.mxu0 0.0
    %2138 = vmatpush.msra.mxu0 0.0
    %2139 = vmatpush.msra.mxu0 0.0
    %2140 = vmatpush.msra.mxu0 0.0
    %2141 = vmatpush.msra.mxu0 0.0
    %2142 = vmatpush.msra.mxu0 %v1789
    %2143 = vmatmul.f32.gmra.mxu0 %v1790
    %v2144 = vpop.f32.mrf.mxu0
    %v2145 = vadd.f32 0.0, %v2144
    %2146 = vmatmul.f32.gmra.mxu0 %v1792
    %v2147 = vpop.f32.mrf.mxu0
    %v2148 = vadd.f32 0.0, %v2147
    %2149 = vmatmul.f32.gmra.mxu0 %v1794
    %v2150 = vpop.f32.mrf.mxu0
    %v2151 = vadd.f32 0.0, %v2150
    %2152 = vmatmul.f32.gmra.mxu0 %v1796
    %v2153 = vpop.f32.mrf.mxu0
    %v2154 = vadd.f32 0.0, %v2153
    %2155 = vmatmul.f32.gmra.mxu0 %v1798
    %v2156 = vpop.f32.mrf.mxu0
    %v2157 = vadd.f32 0.0, %v2156
    %2158 = vmatmul.f32.gmra.mxu0 %v1800
    %v2159 = vpop.f32.mrf.mxu0
    %v2160 = vadd.f32 0.0, %v2159
    %2161 = vmatmul.f32.gmra.mxu0 %v1802
    %v2162 = vpop.f32.mrf.mxu0
    %v2163 = vadd.f32 0.0, %v2162
    %2164 = vmatmul.f32.gmra.mxu0 %v1804
    %v2165 = vpop.f32.mrf.mxu0
    %v2166 = vadd.f32 0.0, %v2165
    %2167 = vmatmul.f32.gmra.mxu0 %v1806
    %v2168 = vpop.f32.mrf.mxu0
    %v2169 = vadd.f32 0.0, %v2168
    %2170 = vmatmul.f32.gmra.mxu0 %v1808
    %v2171 = vpop.f32.mrf.mxu0
    %v2172 = vadd.f32 0.0, %v2171
    %2173 = vmatmul.f32.gmra.mxu0 %v1810
    %v2174 = vpop.f32.mrf.mxu0
    %v2175 = vadd.f32 0.0, %v2174
    %2176 = vmatmul.f32.gmra.mxu0 %v1812
    %v2177 = vpop.f32.mrf.mxu0
    %v2178 = vadd.f32 0.0, %v2177
    %2179 = vmatmul.f32.gmra.mxu0 %v1814
    %v2180 = vpop.f32.mrf.mxu0
    %v2181 = vadd.f32 0.0, %v2180
    %2182 = vmatmul.f32.gmra.mxu0 %v1816
    %v2183 = vpop.f32.mrf.mxu0
    %v2184 = vadd.f32 0.0, %v2183
    %2185 = vmatmul.f32.gmra.mxu0 %v1818
    %v2186 = vpop.f32.mrf.mxu0
    %v2187 = vadd.f32 0.0, %v2186
    %2188 = vmatmul.f32.gmra.mxu0 %v1820
    %v2189 = vpop.f32.mrf.mxu0
    %v2190 = vadd.f32 0.0, %v2189
    %2191 = vmatmul.f32.gmra.mxu0 %v1822
    %v2192 = vpop.f32.mrf.mxu0
    %v2193 = vadd.f32 0.0, %v2192
    %2194 = vmatmul.f32.gmra.mxu0 %v1824
    %v2195 = vpop.f32.mrf.mxu0
    %v2196 = vadd.f32 0.0, %v2195
    %2197 = vmatmul.f32.gmra.mxu0 %v1826
    %v2198 = vpop.f32.mrf.mxu0
    %v2199 = vadd.f32 0.0, %v2198
    %2200 = vmatmul.f32.gmra.mxu0 %v1828
    %v2201 = vpop.f32.mrf.mxu0
    %v2202 = vadd.f32 0.0, %v2201
    %2203 = vmatmul.f32.gmra.mxu0 %v1830
    %v2204 = vpop.f32.mrf.mxu0
    %v2205 = vadd.f32 0.0, %v2204
    %2206 = vmatmul.f32.gmra.mxu0 %v1832
    %v2207 = vpop.f32.mrf.mxu0
    %v2208 = vadd.f32 0.0, %v2207
    %2209 = vmatmul.f32.gmra.mxu0 %v1834
    %v2210 = vpop.f32.mrf.mxu0
    %v2211 = vadd.f32 0.0, %v2210
    %2212 = vmatmul.f32.gmra.mxu0 %v1836
    %v2213 = vpop.f32.mrf.mxu0
    %v2214 = vadd.f32 0.0, %v2213
    %2215 = vmatmul.f32.gmra.mxu0 %v1838
    %v2216 = vpop.f32.mrf.mxu0
    %v2217 = vadd.f32 0.0, %v2216
    %2218 = vmatmul.f32.gmra.mxu0 %v1840
    %v2219 = vpop.f32.mrf.mxu0
    %v2220 = vadd.f32 0.0, %v2219
    %2221 = vmatmul.f32.gmra.mxu0 %v1842
    %v2222 = vpop.f32.mrf.mxu0
    %v2223 = vadd.f32 0.0, %v2222
    %2224 = vmatmul.f32.gmra.mxu0 %v1844
    %v2225 = vpop.f32.mrf.mxu0
    %v2226 = vadd.f32 0.0, %v2225
    %2227 = vmatmul.f32.gmra.mxu0 %v1846
    %v2228 = vpop.f32.mrf.mxu0
    %v2229 = vadd.f32 0.0, %v2228
    %2230 = vmatmul.f32.gmra.mxu0 %v1848
    %v2231 = vpop.f32.mrf.mxu0
    %v2232 = vadd.f32 0.0, %v2231
    %2233 = vmatmul.f32.gmra.mxu0 %v1850
    %v2234 = vpop.f32.mrf.mxu0
    %v2235 = vadd.f32 0.0, %v2234
    %2236 = vmatmul.f32.gmra.mxu0 %v1852
    %v2237 = vpop.f32.mrf.mxu0
    %v2238 = vadd.f32 0.0, %v2237
    %2239 = vmatmul.f32.gmra.mxu0 %v1854
    %v2240 = vpop.f32.mrf.mxu0
    %v2241 = vadd.f32 0.0, %v2240
    %2242 = vmatmul.f32.gmra.mxu0 %v1856
    %v2243 = vpop.f32.mrf.mxu0
    %v2244 = vadd.f32 0.0, %v2243
    %2245 = vmatmul.f32.gmra.mxu0 %v1858
    %v2246 = vpop.f32.mrf.mxu0
    %v2247 = vadd.f32 0.0, %v2246
    %2248 = vmatmul.f32.gmra.mxu0 %v1860
    %v2249 = vpop.f32.mrf.mxu0
    %v2250 = vadd.f32 0.0, %v2249
    %2251 = vmatmul.f32.gmra.mxu0 %v1862
    %v2252 = vpop.f32.mrf.mxu0
    %v2253 = vadd.f32 0.0, %v2252
    %2254 = vmatmul.f32.gmra.mxu0 %v1864
    %v2255 = vpop.f32.mrf.mxu0
    %v2256 = vadd.f32 0.0, %v2255
    %2257 = vmatmul.f32.gmra.mxu0 %v1866
    %v2258 = vpop.f32.mrf.mxu0
    %v2259 = vadd.f32 0.0, %v2258
    %2260 = vmatmul.f32.gmra.mxu0 %v1868
    %v2261 = vpop.f32.mrf.mxu0
    %v2262 = vadd.f32 0.0, %v2261
    %2263 = vmatmul.f32.gmra.mxu0 %v1870
    %v2264 = vpop.f32.mrf.mxu0
    %v2265 = vadd.f32 0.0, %v2264
    %2266 = vmatmul.f32.gmra.mxu0 %v1872
    %v2267 = vpop.f32.mrf.mxu0
    %v2268 = vadd.f32 0.0, %v2267
    %2269 = vmatmul.f32.gmra.mxu0 %v1874
    %v2270 = vpop.f32.mrf.mxu0
    %v2271 = vadd.f32 0.0, %v2270
    %2272 = vmatmul.f32.gmra.mxu0 %v1876
    %v2273 = vpop.f32.mrf.mxu0
    %v2274 = vadd.f32 0.0, %v2273
    %2275 = vmatmul.f32.gmra.mxu0 %v1878
    %v2276 = vpop.f32.mrf.mxu0
    %v2277 = vadd.f32 0.0, %v2276
    %2278 = vmatmul.f32.gmra.mxu0 %v1880
    %v2279 = vpop.f32.mrf.mxu0
    %v2280 = vadd.f32 0.0, %v2279
    %2281 = vmatmul.f32.gmra.mxu0 %v1882
    %v2282 = vpop.f32.mrf.mxu0
    %v2283 = vadd.f32 0.0, %v2282
    %2284 = vmatmul.f32.gmra.mxu0 %v1884
    %v2285 = vpop.f32.mrf.mxu0
    %v2286 = vadd.f32 0.0, %v2285
    %2287 = vmatmul.f32.gmra.mxu0 %v1886
    %v2288 = vpop.f32.mrf.mxu0
    %v2289 = vadd.f32 0.0, %v2288
    %2290 = vmatmul.f32.gmra.mxu0 %v1888
    %v2291 = vpop.f32.mrf.mxu0
    %v2292 = vadd.f32 0.0, %v2291
    %2293 = vmatmul.f32.gmra.mxu0 %v1890
    %v2294 = vpop.f32.mrf.mxu0
    %v2295 = vadd.f32 0.0, %v2294
    %2296 = vmatmul.f32.gmra.mxu0 %v1892
    %v2297 = vpop.f32.mrf.mxu0
    %v2298 = vadd.f32 0.0, %v2297
    %2299 = vmatmul.f32.gmra.mxu0 %v1894
    %v2300 = vpop.f32.mrf.mxu0
    %v2301 = vadd.f32 0.0, %v2300
    %2302 = vmatmul.f32.gmra.mxu0 %v1896
    %v2303 = vpop.f32.mrf.mxu0
    %v2304 = vadd.f32 0.0, %v2303
    %2305 = vmatmul.f32.gmra.mxu0 %v1898
    %v2306 = vpop.f32.mrf.mxu0
    %v2307 = vadd.f32 0.0, %v2306
    %2308 = vmatmul.f32.gmra.mxu0 %v1900
    %v2309 = vpop.f32.mrf.mxu0
    %v2310 = vadd.f32 0.0, %v2309
    %2311 = vmatmul.f32.gmra.mxu0 %v1902
    %v2312 = vpop.f32.mrf.mxu0
    %v2313 = vadd.f32 0.0, %v2312
    %2314 = vmatmul.f32.gmra.mxu0 %v1904
    %v2315 = vpop.f32.mrf.mxu0
    %v2316 = vadd.f32 0.0, %v2315
    %2317 = vmatmul.f32.gmra.mxu0 %v1906
    %v2318 = vpop.f32.mrf.mxu0
    %v2319 = vadd.f32 0.0, %v2318
    %2320 = vmatmul.f32.gmra.mxu0 %v1908
    %v2321 = vpop.f32.mrf.mxu0
    %v2322 = vadd.f32 0.0, %v2321
    %2323 = vmatmul.f32.gmra.mxu0 %v1910
    %v2324 = vpop.f32.mrf.mxu0
    %v2325 = vadd.f32 0.0, %v2324
    %2326 = vmatmul.f32.gmra.mxu0 %v1912
    %v2327 = vpop.f32.mrf.mxu0
    %v2328 = vadd.f32 0.0, %v2327
    %2329 = vmatmul.f32.gmra.mxu0 %v1914
    %v2330 = vpop.f32.mrf.mxu0
    %v2331 = vadd.f32 0.0, %v2330
    %2332 = vmatmul.f32.gmra.mxu0 %v1916
    %v2333 = vpop.f32.mrf.mxu0
    %v2334 = vadd.f32 0.0, %v2333
    %2335 = vdwg.mxu0
    %v2336 = vadd.f32 %v1194, %v1936
    %v2337 = vadd.f32 %v1403, %v2145
    %v2338 = vadd.f32 %v1197, %v1939
    %v2339 = vadd.f32 %v1406, %v2148
    %v2340 = vadd.f32 %v1200, %v1942
    %v2341 = vadd.f32 %v1409, %v2151
    %v2342 = vadd.f32 %v1203, %v1945
    %v2343 = vadd.f32 %v1412, %v2154
    %v2344 = vadd.f32 %v1206, %v1948
    %v2345 = vadd.f32 %v1415, %v2157
    %v2346 = vadd.f32 %v1209, %v1951
    %v2347 = vadd.f32 %v1418, %v2160
    %v2348 = vadd.f32 %v1212, %v1954
    %v2349 = vadd.f32 %v1421, %v2163
    %v2350 = vadd.f32 %v1215, %v1957
    %v2351 = vadd.f32 %v1424, %v2166
    %v2352 = vadd.f32 %v1218, %v1960
    %v2353 = vadd.f32 %v1427, %v2169
    %v2354 = vadd.f32 %v1221, %v1963
    %v2355 = vadd.f32 %v1430, %v2172
    %v2356 = vadd.f32 %v1224, %v1966
    %v2357 = vadd.f32 %v1433, %v2175
    %v2358 = vadd.f32 %v1227, %v1969
    %v2359 = vadd.f32 %v1436, %v2178
    %v2360 = vadd.f32 %v1230, %v1972
    %v2361 = vadd.f32 %v1439, %v2181
    %v2362 = vadd.f32 %v1233, %v1975
    %v2363 = vadd.f32 %v1442, %v2184
    %v2364 = vadd.f32 %v1236, %v1978
    %v2365 = vadd.f32 %v1445, %v2187
    %v2366 = vadd.f32 %v1239, %v1981
    %v2367 = vadd.f32 %v1448, %v2190
    %v2368 = vadd.f32 %v1242, %v1984
    %v2369 = vadd.f32 %v1451, %v2193
    %v2370 = vadd.f32 %v1245, %v1987
    %v2371 = vadd.f32 %v1454, %v2196
    %v2372 = vadd.f32 %v1248, %v1990
    %v2373 = vadd.f32 %v1457, %v2199
    %v2374 = vadd.f32 %v1251, %v1993
    %v2375 = vadd.f32 %v1460, %v2202
    %v2376 = vadd.f32 %v1254, %v1996
    %v2377 = vadd.f32 %v1463, %v2205
    %v2378 = vadd.f32 %v1257, %v1999
    %v2379 = vadd.f32 %v1466, %v2208
    %v2380 = vadd.f32 %v1260, %v2002
    %v2381 = vadd.f32 %v1469, %v2211
    %v2382 = vadd.f32 %v1263, %v2005
    %v2383 = vadd.f32 %v1472, %v2214
    %v2384 = vadd.f32 %v1266, %v2008
    %v2385 = vadd.f32 %v1475, %v2217
    %v2386 = vadd.f32 %v1269, %v2011
    %v2387 = vadd.f32 %v1478, %v2220
    %v2388 = vadd.f32 %v1272, %v2014
    %v2389 = vadd.f32 %v1481, %v2223
    %v2390 = vadd.f32 %v1275, %v2017
    %v2391 = vadd.f32 %v1484, %v2226
    %v2392 = vadd.f32 %v1278, %v2020
    %v2393 = vadd.f32 %v1487, %v2229
    %v2394 = vadd.f32 %v1281, %v2023
    %v2395 = vadd.f32 %v1490, %v2232
    %v2396 = vadd.f32 %v1284, %v2026
    %v2397 = vadd.f32 %v1493, %v2235
    %v2398 = vadd.f32 %v1287, %v2029
    %v2399 = vadd.f32 %v1496, %v2238
    %v2400 = vadd.f32 %v1290, %v2032
    %v2401 = vadd.f32 %v1499, %v2241
    %v2402 = vadd.f32 %v1293, %v2035
    %v2403 = vadd.f32 %v1502, %v2244
    %v2404 = vadd.f32 %v1296, %v2038
    %v2405 = vadd.f32 %v1505, %v2247
    %v2406 = vadd.f32 %v1299, %v2041
    %v2407 = vadd.f32 %v1508, %v2250
    %v2408 = vadd.f32 %v1302, %v2044
    %v2409 = vadd.f32 %v1511, %v2253
    %v2410 = vadd.f32 %v1305, %v2047
    %v2411 = vadd.f32 %v1514, %v2256
    %v2412 = vadd.f32 %v1308, %v2050
    %v2413 = vadd.f32 %v1517, %v2259
    %v2414 = vadd.f32 %v1311, %v2053
    %v2415 = vadd.f32 %v1520, %v2262
    %v2416 = vadd.f32 %v1314, %v2056
    %v2417 = vadd.f32 %v1523, %v2265
    %v2418 = vadd.f32 %v1317, %v2059
    %v2419 = vadd.f32 %v1526, %v2268
    %v2420 = vadd.f32 %v1320, %v2062
    %v2421 = vadd.f32 %v1529, %v2271
    %v2422 = vadd.f32 %v1323, %v2065
    %v2423 = vadd.f32 %v1532, %v2274
    %v2424 = vadd.f32 %v1326, %v2068
    %v2425 = vadd.f32 %v1535, %v2277
    %v2426 = vadd.f32 %v1329, %v2071
    %v2427 = vadd.f32 %v1538, %v2280
    %v2428 = vadd.f32 %v1332, %v2074
    %v2429 = vadd.f32 %v1541, %v2283
    %v2430 = vadd.f32 %v1335, %v2077
    %v2431 = vadd.f32 %v1544, %v2286
    %v2432 = vadd.f32 %v1338, %v2080
    %v2433 = vadd.f32 %v1547, %v2289
    %v2434 = vadd.f32 %v1341, %v2083
    %v2435 = vadd.f32 %v1550, %v2292
    %v2436 = vadd.f32 %v1344, %v2086
    %v2437 = vadd.f32 %v1553, %v2295
    %v2438 = vadd.f32 %v1347, %v2089
    %v2439 = vadd.f32 %v1556, %v2298
    %v2440 = vadd.f32 %v1350, %v2092
    %v2441 = vadd.f32 %v1559, %v2301
    %v2442 = vadd.f32 %v1353, %v2095
    %v2443 = vadd.f32 %v1562, %v2304
    %v2444 = vadd.f32 %v1356, %v2098
    %v2445 = vadd.f32 %v1565, %v2307
    %v2446 = vadd.f32 %v1359, %v2101
    %v2447 = vadd.f32 %v1568, %v2310
    %v2448 = vadd.f32 %v1362, %v2104
    %v2449 = vadd.f32 %v1571, %v2313
    %v2450 = vadd.f32 %v1365, %v2107
    %v2451 = vadd.f32 %v1574, %v2316
    %v2452 = vadd.f32 %v1368, %v2110
    %v2453 = vadd.f32 %v1577, %v2319
    %v2454 = vadd.f32 %v1371, %v2113
    %v2455 = vadd.f32 %v1580, %v2322
    %v2456 = vadd.f32 %v1374, %v2116
    %v2457 = vadd.f32 %v1583, %v2325
    %v2458 = vadd.f32 %v1377, %v2119
    %v2459 = vadd.f32 %v1586, %v2328
    %v2460 = vadd.f32 %v1380, %v2122
    %v2461 = vadd.f32 %v1589, %v2331
    %v2462 = vadd.f32 %v1383, %v2125
    %v2463 = vadd.f32 %v1592, %v2334
    %s2464 = scalar_lea.vmem %s1, 48
    %v2465 = vld [vmem:[%s2464] sm:$0xff]
    %v2466 = vld [vmem:[%s2464 + $0x8] sm:$0xff]
    %v2468 = vsel %vm501, %v31, 0
    %v2471 = vsel %vm501, %v51, 0
    %v2474 = vsel %vm501, %v71, 0
    %v2477 = vsel %vm501, %v91, 0
    %v2480 = vsel %vm501, %v111, 0
    %v2483 = vsel %vm501, %v131, 0
    %v2486 = vsel %vm501, %v151, 0
    %v2489 = vsel %vm501, %v171, 0
    %2491 = vmatpush.msra.mxu0 0.0
    %2492 = vmatpush.msra.mxu0 0.0
    %2493 = vmatpush.msra.mxu0 0.0
    %2494 = vmatpush.msra.mxu0 0.0
    %2495 = vmatpush.msra.mxu0 0.0
    %2496 = vmatpush.msra.mxu0 0.0
    %2497 = vmatpush.msra.mxu0 0.0
    %2498 = vmatpush.msra.mxu0 0.0
    %2499 = vmatpush.msra.mxu0 0.0
    %2500 = vmatpush.msra.mxu0 0.0
    %2501 = vmatpush.msra.mxu0 0.0
    %2502 = vmatpush.msra.mxu0 0.0
    %2503 = vmatpush.msra.mxu0 0.0
    %2504 = vmatpush.msra.mxu0 0.0
    %2505 = vmatpush.msra.mxu0 0.0
    %2506 = vmatpush.msra.mxu0 %v2465
    %2507 = vmatmul.f32.gmra.mxu0 %v1050
    %v2508 = vpop.f32.mrf.mxu0
    %v2509 = vadd.f32 0.0, %v2508
    %2510 = vmatmul.f32.gmra.mxu0 %v1052
    %v2511 = vpop.f32.mrf.mxu0
    %v2512 = vadd.f32 0.0, %v2511
    %2513 = vmatmul.f32.gmra.mxu0 %v1054
    %v2514 = vpop.f32.mrf.mxu0
    %v2515 = vadd.f32 0.0, %v2514
    %2516 = vmatmul.f32.gmra.mxu0 %v1056
    %v2517 = vpop.f32.mrf.mxu0
    %v2518 = vadd.f32 0.0, %v2517
    %2519 = vmatmul.f32.gmra.mxu0 %v1058
    %v2520 = vpop.f32.mrf.mxu0
    %v2521 = vadd.f32 0.0, %v2520
    %2522 = vmatmul.f32.gmra.mxu0 %v1060
    %v2523 = vpop.f32.mrf.mxu0
    %v2524 = vadd.f32 0.0, %v2523
    %2525 = vmatmul.f32.gmra.mxu0 %v1062
    %v2526 = vpop.f32.mrf.mxu0
    %v2527 = vadd.f32 0.0, %v2526
    %2528 = vmatmul.f32.gmra.mxu0 %v2468
    %v2529 = vpop.f32.mrf.mxu0
    %v2530 = vadd.f32 0.0, %v2529
    %2531 = vmatmul.f32.gmra.mxu0 %v1066
    %v2532 = vpop.f32.mrf.mxu0
    %v2533 = vadd.f32 0.0, %v2532
    %2534 = vmatmul.f32.gmra.mxu0 %v1068
    %v2535 = vpop.f32.mrf.mxu0
    %v2536 = vadd.f32 0.0, %v2535
    %2537 = vmatmul.f32.gmra.mxu0 %v1070
    %v2538 = vpop.f32.mrf.mxu0
    %v2539 = vadd.f32 0.0, %v2538
    %2540 = vmatmul.f32.gmra.mxu0 %v1072
    %v2541 = vpop.f32.mrf.mxu0
    %v2542 = vadd.f32 0.0, %v2541
    %2543 = vmatmul.f32.gmra.mxu0 %v1074
    %v2544 = vpop.f32.mrf.mxu0
    %v2545 = vadd.f32 0.0, %v2544
    %2546 = vmatmul.f32.gmra.mxu0 %v1076
    %v2547 = vpop.f32.mrf.mxu0
    %v2548 = vadd.f32 0.0, %v2547
    %2549 = vmatmul.f32.gmra.mxu0 %v1078
    %v2550 = vpop.f32.mrf.mxu0
    %v2551 = vadd.f32 0.0, %v2550
    %2552 = vmatmul.f32.gmra.mxu0 %v2471
    %v2553 = vpop.f32.mrf.mxu0
    %v2554 = vadd.f32 0.0, %v2553
    %2555 = vmatmul.f32.gmra.mxu0 %v1082
    %v2556 = vpop.f32.mrf.mxu0
    %v2557 = vadd.f32 0.0, %v2556
    %2558 = vmatmul.f32.gmra.mxu0 %v1084
    %v2559 = vpop.f32.mrf.mxu0
    %v2560 = vadd.f32 0.0, %v2559
    %2561 = vmatmul.f32.gmra.mxu0 %v1086
    %v2562 = vpop.f32.mrf.mxu0
    %v2563 = vadd.f32 0.0, %v2562
    %2564 = vmatmul.f32.gmra.mxu0 %v1088
    %v2565 = vpop.f32.mrf.mxu0
    %v2566 = vadd.f32 0.0, %v2565
    %2567 = vmatmul.f32.gmra.mxu0 %v1090
    %v2568 = vpop.f32.mrf.mxu0
    %v2569 = vadd.f32 0.0, %v2568
    %2570 = vmatmul.f32.gmra.mxu0 %v1092
    %v2571 = vpop.f32.mrf.mxu0
    %v2572 = vadd.f32 0.0, %v2571
    %2573 = vmatmul.f32.gmra.mxu0 %v1094
    %v2574 = vpop.f32.mrf.mxu0
    %v2575 = vadd.f32 0.0, %v2574
    %2576 = vmatmul.f32.gmra.mxu0 %v2474
    %v2577 = vpop.f32.mrf.mxu0
    %v2578 = vadd.f32 0.0, %v2577
    %2579 = vmatmul.f32.gmra.mxu0 %v1098
    %v2580 = vpop.f32.mrf.mxu0
    %v2581 = vadd.f32 0.0, %v2580
    %2582 = vmatmul.f32.gmra.mxu0 %v1100
    %v2583 = vpop.f32.mrf.mxu0
    %v2584 = vadd.f32 0.0, %v2583
    %2585 = vmatmul.f32.gmra.mxu0 %v1102
    %v2586 = vpop.f32.mrf.mxu0
    %v2587 = vadd.f32 0.0, %v2586
    %2588 = vmatmul.f32.gmra.mxu0 %v1104
    %v2589 = vpop.f32.mrf.mxu0
    %v2590 = vadd.f32 0.0, %v2589
    %2591 = vmatmul.f32.gmra.mxu0 %v1106
    %v2592 = vpop.f32.mrf.mxu0
    %v2593 = vadd.f32 0.0, %v2592
    %2594 = vmatmul.f32.gmra.mxu0 %v1108
    %v2595 = vpop.f32.mrf.mxu0
    %v2596 = vadd.f32 0.0, %v2595
    %2597 = vmatmul.f32.gmra.mxu0 %v1110
    %v2598 = vpop.f32.mrf.mxu0
    %v2599 = vadd.f32 0.0, %v2598
    %2600 = vmatmul.f32.gmra.mxu0 %v2477
    %v2601 = vpop.f32.mrf.mxu0
    %v2602 = vadd.f32 0.0, %v2601
    %2603 = vmatmul.f32.gmra.mxu0 %v1114
    %v2604 = vpop.f32.mrf.mxu0
    %v2605 = vadd.f32 0.0, %v2604
    %2606 = vmatmul.f32.gmra.mxu0 %v1116
    %v2607 = vpop.f32.mrf.mxu0
    %v2608 = vadd.f32 0.0, %v2607
    %2609 = vmatmul.f32.gmra.mxu0 %v1118
    %v2610 = vpop.f32.mrf.mxu0
    %v2611 = vadd.f32 0.0, %v2610
    %2612 = vmatmul.f32.gmra.mxu0 %v1120
    %v2613 = vpop.f32.mrf.mxu0
    %v2614 = vadd.f32 0.0, %v2613
    %2615 = vmatmul.f32.gmra.mxu0 %v1122
    %v2616 = vpop.f32.mrf.mxu0
    %v2617 = vadd.f32 0.0, %v2616
    %2618 = vmatmul.f32.gmra.mxu0 %v1124
    %v2619 = vpop.f32.mrf.mxu0
    %v2620 = vadd.f32 0.0, %v2619
    %2621 = vmatmul.f32.gmra.mxu0 %v1126
    %v2622 = vpop.f32.mrf.mxu0
    %v2623 = vadd.f32 0.0, %v2622
    %2624 = vmatmul.f32.gmra.mxu0 %v2480
    %v2625 = vpop.f32.mrf.mxu0
    %v2626 = vadd.f32 0.0, %v2625
    %2627 = vmatmul.f32.gmra.mxu0 %v1130
    %v2628 = vpop.f32.mrf.mxu0
    %v2629 = vadd.f32 0.0, %v2628
    %2630 = vmatmul.f32.gmra.mxu0 %v1132
    %v2631 = vpop.f32.mrf.mxu0
    %v2632 = vadd.f32 0.0, %v2631
    %2633 = vmatmul.f32.gmra.mxu0 %v1134
    %v2634 = vpop.f32.mrf.mxu0
    %v2635 = vadd.f32 0.0, %v2634
    %2636 = vmatmul.f32.gmra.mxu0 %v1136
    %v2637 = vpop.f32.mrf.mxu0
    %v2638 = vadd.f32 0.0, %v2637
    %2639 = vmatmul.f32.gmra.mxu0 %v1138
    %v2640 = vpop.f32.mrf.mxu0
    %v2641 = vadd.f32 0.0, %v2640
    %2642 = vmatmul.f32.gmra.mxu0 %v1140
    %v2643 = vpop.f32.mrf.mxu0
    %v2644 = vadd.f32 0.0, %v2643
    %2645 = vmatmul.f32.gmra.mxu0 %v1142
    %v2646 = vpop.f32.mrf.mxu0
    %v2647 = vadd.f32 0.0, %v2646
    %2648 = vmatmul.f32.gmra.mxu0 %v2483
    %v2649 = vpop.f32.mrf.mxu0
    %v2650 = vadd.f32 0.0, %v2649
    %2651 = vmatmul.f32.gmra.mxu0 %v1146
    %v2652 = vpop.f32.mrf.mxu0
    %v2653 = vadd.f32 0.0, %v2652
    %2654 = vmatmul.f32.gmra.mxu0 %v1148
    %v2655 = vpop.f32.mrf.mxu0
    %v2656 = vadd.f32 0.0, %v2655
    %2657 = vmatmul.f32.gmra.mxu0 %v1150
    %v2658 = vpop.f32.mrf.mxu0
    %v2659 = vadd.f32 0.0, %v2658
    %2660 = vmatmul.f32.gmra.mxu0 %v1152
    %v2661 = vpop.f32.mrf.mxu0
    %v2662 = vadd.f32 0.0, %v2661
    %2663 = vmatmul.f32.gmra.mxu0 %v1154
    %v2664 = vpop.f32.mrf.mxu0
    %v2665 = vadd.f32 0.0, %v2664
    %2666 = vmatmul.f32.gmra.mxu0 %v1156
    %v2667 = vpop.f32.mrf.mxu0
    %v2668 = vadd.f32 0.0, %v2667
    %2669 = vmatmul.f32.gmra.mxu0 %v1158
    %v2670 = vpop.f32.mrf.mxu0
    %v2671 = vadd.f32 0.0, %v2670
    %2672 = vmatmul.f32.gmra.mxu0 %v2486
    %v2673 = vpop.f32.mrf.mxu0
    %v2674 = vadd.f32 0.0, %v2673
    %2675 = vmatmul.f32.gmra.mxu0 %v1162
    %v2676 = vpop.f32.mrf.mxu0
    %v2677 = vadd.f32 0.0, %v2676
    %2678 = vmatmul.f32.gmra.mxu0 %v1164
    %v2679 = vpop.f32.mrf.mxu0
    %v2680 = vadd.f32 0.0, %v2679
    %2681 = vmatmul.f32.gmra.mxu0 %v1166
    %v2682 = vpop.f32.mrf.mxu0
    %v2683 = vadd.f32 0.0, %v2682
    %2684 = vmatmul.f32.gmra.mxu0 %v1168
    %v2685 = vpop.f32.mrf.mxu0
    %v2686 = vadd.f32 0.0, %v2685
    %2687 = vmatmul.f32.gmra.mxu0 %v1170
    %v2688 = vpop.f32.mrf.mxu0
    %v2689 = vadd.f32 0.0, %v2688
    %2690 = vmatmul.f32.gmra.mxu0 %v1172
    %v2691 = vpop.f32.mrf.mxu0
    %v2692 = vadd.f32 0.0, %v2691
    %2693 = vmatmul.f32.gmra.mxu0 %v1174
    %v2694 = vpop.f32.mrf.mxu0
    %v2695 = vadd.f32 0.0, %v2694
    %2696 = vmatmul.f32.gmra.mxu0 %v2489
    %v2697 = vpop.f32.mrf.mxu0
    %v2698 = vadd.f32 0.0, %v2697
    %2699 = vdwg.mxu0
    %2700 = vmatpush.msra.mxu0 0.0
    %2701 = vmatpush.msra.mxu0 0.0
    %2702 = vmatpush.msra.mxu0 0.0
    %2703 = vmatpush.msra.mxu0 0.0
    %2704 = vmatpush.msra.mxu0 0.0
    %2705 = vmatpush.msra.mxu0 0.0
    %2706 = vmatpush.msra.mxu0 0.0
    %2707 = vmatpush.msra.mxu0 0.0
    %2708 = vmatpush.msra.mxu0 0.0
    %2709 = vmatpush.msra.mxu0 0.0
    %2710 = vmatpush.msra.mxu0 0.0
    %2711 = vmatpush.msra.mxu0 0.0
    %2712 = vmatpush.msra.mxu0 0.0
    %2713 = vmatpush.msra.mxu0 0.0
    %2714 = vmatpush.msra.mxu0 0.0
    %2715 = vmatpush.msra.mxu0 %v2466
    %2716 = vmatmul.f32.gmra.mxu0 %v1050
    %v2717 = vpop.f32.mrf.mxu0
    %v2718 = vadd.f32 0.0, %v2717
    %2719 = vmatmul.f32.gmra.mxu0 %v1052
    %v2720 = vpop.f32.mrf.mxu0
    %v2721 = vadd.f32 0.0, %v2720
    %2722 = vmatmul.f32.gmra.mxu0 %v1054
    %v2723 = vpop.f32.mrf.mxu0
    %v2724 = vadd.f32 0.0, %v2723
    %2725 = vmatmul.f32.gmra.mxu0 %v1056
    %v2726 = vpop.f32.mrf.mxu0
    %v2727 = vadd.f32 0.0, %v2726
    %2728 = vmatmul.f32.gmra.mxu0 %v1058
    %v2729 = vpop.f32.mrf.mxu0
    %v2730 = vadd.f32 0.0, %v2729
    %2731 = vmatmul.f32.gmra.mxu0 %v1060
    %v2732 = vpop.f32.mrf.mxu0
    %v2733 = vadd.f32 0.0, %v2732
    %2734 = vmatmul.f32.gmra.mxu0 %v1062
    %v2735 = vpop.f32.mrf.mxu0
    %v2736 = vadd.f32 0.0, %v2735
    %2737 = vmatmul.f32.gmra.mxu0 %v2468
    %v2738 = vpop.f32.mrf.mxu0
    %v2739 = vadd.f32 0.0, %v2738
    %2740 = vmatmul.f32.gmra.mxu0 %v1066
    %v2741 = vpop.f32.mrf.mxu0
    %v2742 = vadd.f32 0.0, %v2741
    %2743 = vmatmul.f32.gmra.mxu0 %v1068
    %v2744 = vpop.f32.mrf.mxu0
    %v2745 = vadd.f32 0.0, %v2744
    %2746 = vmatmul.f32.gmra.mxu0 %v1070
    %v2747 = vpop.f32.mrf.mxu0
    %v2748 = vadd.f32 0.0, %v2747
    %2749 = vmatmul.f32.gmra.mxu0 %v1072
    %v2750 = vpop.f32.mrf.mxu0
    %v2751 = vadd.f32 0.0, %v2750
    %2752 = vmatmul.f32.gmra.mxu0 %v1074
    %v2753 = vpop.f32.mrf.mxu0
    %v2754 = vadd.f32 0.0, %v2753
    %2755 = vmatmul.f32.gmra.mxu0 %v1076
    %v2756 = vpop.f32.mrf.mxu0
    %v2757 = vadd.f32 0.0, %v2756
    %2758 = vmatmul.f32.gmra.mxu0 %v1078
    %v2759 = vpop.f32.mrf.mxu0
    %v2760 = vadd.f32 0.0, %v2759
    %2761 = vmatmul.f32.gmra.mxu0 %v2471
    %v2762 = vpop.f32.mrf.mxu0
    %v2763 = vadd.f32 0.0, %v2762
    %2764 = vmatmul.f32.gmra.mxu0 %v1082
    %v2765 = vpop.f32.mrf.mxu0
    %v2766 = vadd.f32 0.0, %v2765
    %2767 = vmatmul.f32.gmra.mxu0 %v1084
    %v2768 = vpop.f32.mrf.mxu0
    %v2769 = vadd.f32 0.0, %v2768
    %2770 = vmatmul.f32.gmra.mxu0 %v1086
    %v2771 = vpop.f32.mrf.mxu0
    %v2772 = vadd.f32 0.0, %v2771
    %2773 = vmatmul.f32.gmra.mxu0 %v1088
    %v2774 = vpop.f32.mrf.mxu0
    %v2775 = vadd.f32 0.0, %v2774
    %2776 = vmatmul.f32.gmra.mxu0 %v1090
    %v2777 = vpop.f32.mrf.mxu0
    %v2778 = vadd.f32 0.0, %v2777
    %2779 = vmatmul.f32.gmra.mxu0 %v1092
    %v2780 = vpop.f32.mrf.mxu0
    %v2781 = vadd.f32 0.0, %v2780
    %2782 = vmatmul.f32.gmra.mxu0 %v1094
    %v2783 = vpop.f32.mrf.mxu0
    %v2784 = vadd.f32 0.0, %v2783
    %2785 = vmatmul.f32.gmra.mxu0 %v2474
    %v2786 = vpop.f32.mrf.mxu0
    %v2787 = vadd.f32 0.0, %v2786
    %2788 = vmatmul.f32.gmra.mxu0 %v1098
    %v2789 = vpop.f32.mrf.mxu0
    %v2790 = vadd.f32 0.0, %v2789
    %2791 = vmatmul.f32.gmra.mxu0 %v1100
    %v2792 = vpop.f32.mrf.mxu0
    %v2793 = vadd.f32 0.0, %v2792
    %2794 = vmatmul.f32.gmra.mxu0 %v1102
    %v2795 = vpop.f32.mrf.mxu0
    %v2796 = vadd.f32 0.0, %v2795
    %2797 = vmatmul.f32.gmra.mxu0 %v1104
    %v2798 = vpop.f32.mrf.mxu0
    %v2799 = vadd.f32 0.0, %v2798
    %2800 = vmatmul.f32.gmra.mxu0 %v1106
    %v2801 = vpop.f32.mrf.mxu0
    %v2802 = vadd.f32 0.0, %v2801
    %2803 = vmatmul.f32.gmra.mxu0 %v1108
    %v2804 = vpop.f32.mrf.mxu0
    %v2805 = vadd.f32 0.0, %v2804
    %2806 = vmatmul.f32.gmra.mxu0 %v1110
    %v2807 = vpop.f32.mrf.mxu0
    %v2808 = vadd.f32 0.0, %v2807
    %2809 = vmatmul.f32.gmra.mxu0 %v2477
    %v2810 = vpop.f32.mrf.mxu0
    %v2811 = vadd.f32 0.0, %v2810
    %2812 = vmatmul.f32.gmra.mxu0 %v1114
    %v2813 = vpop.f32.mrf.mxu0
    %v2814 = vadd.f32 0.0, %v2813
    %2815 = vmatmul.f32.gmra.mxu0 %v1116
    %v2816 = vpop.f32.mrf.mxu0
    %v2817 = vadd.f32 0.0, %v2816
    %2818 = vmatmul.f32.gmra.mxu0 %v1118
    %v2819 = vpop.f32.mrf.mxu0
    %v2820 = vadd.f32 0.0, %v2819
    %2821 = vmatmul.f32.gmra.mxu0 %v1120
    %v2822 = vpop.f32.mrf.mxu0
    %v2823 = vadd.f32 0.0, %v2822
    %2824 = vmatmul.f32.gmra.mxu0 %v1122
    %v2825 = vpop.f32.mrf.mxu0
    %v2826 = vadd.f32 0.0, %v2825
    %2827 = vmatmul.f32.gmra.mxu0 %v1124
    %v2828 = vpop.f32.mrf.mxu0
    %v2829 = vadd.f32 0.0, %v2828
    %2830 = vmatmul.f32.gmra.mxu0 %v1126
    %v2831 = vpop.f32.mrf.mxu0
    %v2832 = vadd.f32 0.0, %v2831
    %2833 = vmatmul.f32.gmra.mxu0 %v2480
    %v2834 = vpop.f32.mrf.mxu0
    %v2835 = vadd.f32 0.0, %v2834
    %2836 = vmatmul.f32.gmra.mxu0 %v1130
    %v2837 = vpop.f32.mrf.mxu0
    %v2838 = vadd.f32 0.0, %v2837
    %2839 = vmatmul.f32.gmra.mxu0 %v1132
    %v2840 = vpop.f32.mrf.mxu0
    %v2841 = vadd.f32 0.0, %v2840
    %2842 = vmatmul.f32.gmra.mxu0 %v1134
    %v2843 = vpop.f32.mrf.mxu0
    %v2844 = vadd.f32 0.0, %v2843
    %2845 = vmatmul.f32.gmra.mxu0 %v1136
    %v2846 = vpop.f32.mrf.mxu0
    %v2847 = vadd.f32 0.0, %v2846
    %2848 = vmatmul.f32.gmra.mxu0 %v1138
    %v2849 = vpop.f32.mrf.mxu0
    %v2850 = vadd.f32 0.0, %v2849
    %2851 = vmatmul.f32.gmra.mxu0 %v1140
    %v2852 = vpop.f32.mrf.mxu0
    %v2853 = vadd.f32 0.0, %v2852
    %2854 = vmatmul.f32.gmra.mxu0 %v1142
    %v2855 = vpop.f32.mrf.mxu0
    %v2856 = vadd.f32 0.0, %v2855
    %2857 = vmatmul.f32.gmra.mxu0 %v2483
    %v2858 = vpop.f32.mrf.mxu0
    %v2859 = vadd.f32 0.0, %v2858
    %2860 = vmatmul.f32.gmra.mxu0 %v1146
    %v2861 = vpop.f32.mrf.mxu0
    %v2862 = vadd.f32 0.0, %v2861
    %2863 = vmatmul.f32.gmra.mxu0 %v1148
    %v2864 = vpop.f32.mrf.mxu0
    %v2865 = vadd.f32 0.0, %v2864
    %2866 = vmatmul.f32.gmra.mxu0 %v1150
    %v2867 = vpop.f32.mrf.mxu0
    %v2868 = vadd.f32 0.0, %v2867
    %2869 = vmatmul.f32.gmra.mxu0 %v1152
    %v2870 = vpop.f32.mrf.mxu0
    %v2871 = vadd.f32 0.0, %v2870
    %2872 = vmatmul.f32.gmra.mxu0 %v1154
    %v2873 = vpop.f32.mrf.mxu0
    %v2874 = vadd.f32 0.0, %v2873
    %2875 = vmatmul.f32.gmra.mxu0 %v1156
    %v2876 = vpop.f32.mrf.mxu0
    %v2877 = vadd.f32 0.0, %v2876
    %2878 = vmatmul.f32.gmra.mxu0 %v1158
    %v2879 = vpop.f32.mrf.mxu0
    %v2880 = vadd.f32 0.0, %v2879
    %2881 = vmatmul.f32.gmra.mxu0 %v2486
    %v2882 = vpop.f32.mrf.mxu0
    %v2883 = vadd.f32 0.0, %v2882
    %2884 = vmatmul.f32.gmra.mxu0 %v1162
    %v2885 = vpop.f32.mrf.mxu0
    %v2886 = vadd.f32 0.0, %v2885
    %2887 = vmatmul.f32.gmra.mxu0 %v1164
    %v2888 = vpop.f32.mrf.mxu0
    %v2889 = vadd.f32 0.0, %v2888
    %2890 = vmatmul.f32.gmra.mxu0 %v1166
    %v2891 = vpop.f32.mrf.mxu0
    %v2892 = vadd.f32 0.0, %v2891
    %2893 = vmatmul.f32.gmra.mxu0 %v1168
    %v2894 = vpop.f32.mrf.mxu0
    %v2895 = vadd.f32 0.0, %v2894
    %2896 = vmatmul.f32.gmra.mxu0 %v1170
    %v2897 = vpop.f32.mrf.mxu0
    %v2898 = vadd.f32 0.0, %v2897
    %2899 = vmatmul.f32.gmra.mxu0 %v1172
    %v2900 = vpop.f32.mrf.mxu0
    %v2901 = vadd.f32 0.0, %v2900
    %2902 = vmatmul.f32.gmra.mxu0 %v1174
    %v2903 = vpop.f32.mrf.mxu0
    %v2904 = vadd.f32 0.0, %v2903
    %2905 = vmatmul.f32.gmra.mxu0 %v2489
    %v2906 = vpop.f32.mrf.mxu0
    %v2907 = vadd.f32 0.0, %v2906
    %2908 = vdwg.mxu0
    %v2909 = vadd.f32 %v2336, %v2509
    %v2910 = vadd.f32 %v2337, %v2718
    %v2911 = vadd.f32 %v2338, %v2512
    %v2912 = vadd.f32 %v2339, %v2721
    %v2913 = vadd.f32 %v2340, %v2515
    %v2914 = vadd.f32 %v2341, %v2724
    %v2915 = vadd.f32 %v2342, %v2518
    %v2916 = vadd.f32 %v2343, %v2727
    %v2917 = vadd.f32 %v2344, %v2521
    %v2918 = vadd.f32 %v2345, %v2730
    %v2919 = vadd.f32 %v2346, %v2524
    %v2920 = vadd.f32 %v2347, %v2733
    %v2921 = vadd.f32 %v2348, %v2527
    %v2922 = vadd.f32 %v2349, %v2736
    %v2923 = vadd.f32 %v2350, %v2530
    %v2924 = vadd.f32 %v2351, %v2739
    %v2925 = vadd.f32 %v2352, %v2533
    %v2926 = vadd.f32 %v2353, %v2742
    %v2927 = vadd.f32 %v2354, %v2536
    %v2928 = vadd.f32 %v2355, %v2745
    %v2929 = vadd.f32 %v2356, %v2539
    %v2930 = vadd.f32 %v2357, %v2748
    %v2931 = vadd.f32 %v2358, %v2542
    %v2932 = vadd.f32 %v2359, %v2751
    %v2933 = vadd.f32 %v2360, %v2545
    %v2934 = vadd.f32 %v2361, %v2754
    %v2935 = vadd.f32 %v2362, %v2548
    %v2936 = vadd.f32 %v2363, %v2757
    %v2937 = vadd.f32 %v2364, %v2551
    %v2938 = vadd.f32 %v2365, %v2760
    %v2939 = vadd.f32 %v2366, %v2554
    %v2940 = vadd.f32 %v2367, %v2763
    %v2941 = vadd.f32 %v2368, %v2557
    %v2942 = vadd.f32 %v2369, %v2766
    %v2943 = vadd.f32 %v2370, %v2560
    %v2944 = vadd.f32 %v2371, %v2769
    %v2945 = vadd.f32 %v2372, %v2563
    %v2946 = vadd.f32 %v2373, %v2772
    %v2947 = vadd.f32 %v2374, %v2566
    %v2948 = vadd.f32 %v2375, %v2775
    %v2949 = vadd.f32 %v2376, %v2569
    %v2950 = vadd.f32 %v2377, %v2778
    %v2951 = vadd.f32 %v2378, %v2572
    %v2952 = vadd.f32 %v2379, %v2781
    %v2953 = vadd.f32 %v2380, %v2575
    %v2954 = vadd.f32 %v2381, %v2784
    %v2955 = vadd.f32 %v2382, %v2578
    %v2956 = vadd.f32 %v2383, %v2787
    %v2957 = vadd.f32 %v2384, %v2581
    %v2958 = vadd.f32 %v2385, %v2790
    %v2959 = vadd.f32 %v2386, %v2584
    %v2960 = vadd.f32 %v2387, %v2793
    %v2961 = vadd.f32 %v2388, %v2587
    %v2962 = vadd.f32 %v2389, %v2796
    %v2963 = vadd.f32 %v2390, %v2590
    %v2964 = vadd.f32 %v2391, %v2799
    %v2965 = vadd.f32 %v2392, %v2593
    %v2966 = vadd.f32 %v2393, %v2802
    %v2967 = vadd.f32 %v2394, %v2596
    %v2968 = vadd.f32 %v2395, %v2805
    %v2969 = vadd.f32 %v2396, %v2599
    %v2970 = vadd.f32 %v2397, %v2808
    %v2971 = vadd.f32 %v2398, %v2602
    %v2972 = vadd.f32 %v2399, %v2811
    %v2973 = vadd.f32 %v2400, %v2605
    %v2974 = vadd.f32 %v2401, %v2814
    %v2975 = vadd.f32 %v2402, %v2608
    %v2976 = vadd.f32 %v2403, %v2817
    %v2977 = vadd.f32 %v2404, %v2611
    %v2978 = vadd.f32 %v2405, %v2820
    %v2979 = vadd.f32 %v2406, %v2614
    %v2980 = vadd.f32 %v2407, %v2823
    %v2981 = vadd.f32 %v2408, %v2617
    %v2982 = vadd.f32 %v2409, %v2826
    %v2983 = vadd.f32 %v2410, %v2620
    %v2984 = vadd.f32 %v2411, %v2829
    %v2985 = vadd.f32 %v2412, %v2623
    %v2986 = vadd.f32 %v2413, %v2832
    %v2987 = vadd.f32 %v2414, %v2626
    %v2988 = vadd.f32 %v2415, %v2835
    %v2989 = vadd.f32 %v2416, %v2629
    %v2990 = vadd.f32 %v2417, %v2838
    %v2991 = vadd.f32 %v2418, %v2632
    %v2992 = vadd.f32 %v2419, %v2841
    %v2993 = vadd.f32 %v2420, %v2635
    %v2994 = vadd.f32 %v2421, %v2844
    %v2995 = vadd.f32 %v2422, %v2638
    %v2996 = vadd.f32 %v2423, %v2847
    %v2997 = vadd.f32 %v2424, %v2641
    %v2998 = vadd.f32 %v2425, %v2850
    %v2999 = vadd.f32 %v2426, %v2644
    %v3000 = vadd.f32 %v2427, %v2853
    %v3001 = vadd.f32 %v2428, %v2647
    %v3002 = vadd.f32 %v2429, %v2856
    %v3003 = vadd.f32 %v2430, %v2650
    %v3004 = vadd.f32 %v2431, %v2859
    %v3005 = vadd.f32 %v2432, %v2653
    %v3006 = vadd.f32 %v2433, %v2862
    %v3007 = vadd.f32 %v2434, %v2656
    %v3008 = vadd.f32 %v2435, %v2865
    %v3009 = vadd.f32 %v2436, %v2659
    %v3010 = vadd.f32 %v2437, %v2868
    %v3011 = vadd.f32 %v2438, %v2662
    %v3012 = vadd.f32 %v2439, %v2871
    %v3013 = vadd.f32 %v2440, %v2665
    %v3014 = vadd.f32 %v2441, %v2874
    %v3015 = vadd.f32 %v2442, %v2668
    %v3016 = vadd.f32 %v2443, %v2877
    %v3017 = vadd.f32 %v2444, %v2671
    %v3018 = vadd.f32 %v2445, %v2880
    %v3019 = vadd.f32 %v2446, %v2674
    %v3020 = vadd.f32 %v2447, %v2883
    %v3021 = vadd.f32 %v2448, %v2677
    %v3022 = vadd.f32 %v2449, %v2886
    %v3023 = vadd.f32 %v2450, %v2680
    %v3024 = vadd.f32 %v2451, %v2889
    %v3025 = vadd.f32 %v2452, %v2683
    %v3026 = vadd.f32 %v2453, %v2892
    %v3027 = vadd.f32 %v2454, %v2686
    %v3028 = vadd.f32 %v2455, %v2895
    %v3029 = vadd.f32 %v2456, %v2689
    %v3030 = vadd.f32 %v2457, %v2898
    %v3031 = vadd.f32 %v2458, %v2692
    %v3032 = vadd.f32 %v2459, %v2901
    %v3033 = vadd.f32 %v2460, %v2695
    %v3034 = vadd.f32 %v2461, %v2904
    %v3035 = vadd.f32 %v2462, %v2698
    %v3036 = vadd.f32 %v2463, %v2907
    %v3045 = vrot.slane %v31, 1
    %v3046 = vrot.slane %v32, 1
    %v3047 = vsel %vm305, %v3045, %v3046
    %v3048 = vrot.slane %v51, 1
    %v3049 = vrot.slane %v52, 1
    %v3050 = vsel %vm305, %v3048, %v3049
    %v3051 = vrot.slane %v71, 1
    %v3052 = vrot.slane %v72, 1
    %v3053 = vsel %vm305, %v3051, %v3052
    %v3054 = vrot.slane %v91, 1
    %v3055 = vrot.slane %v92, 1
    %v3056 = vsel %vm305, %v3054, %v3055
    %v3057 = vrot.slane %v111, 1
    %v3058 = vrot.slane %v112, 1
    %v3059 = vsel %vm305, %v3057, %v3058
    %v3060 = vrot.slane %v131, 1
    %v3061 = vrot.slane %v132, 1
    %v3062 = vsel %vm305, %v3060, %v3061
    %v3063 = vrot.slane %v151, 1
    %v3064 = vrot.slane %v152, 1
    %v3065 = vsel %vm305, %v3063, %v3064
    %v3066 = vrot.slane %v171, 1
    %v3067 = vrot.slane %v172, 1
    %v3068 = vsel %vm305, %v3066, %v3067
    %s3069 = scalar_lea.vmem %s1, 64
    %v3070 = vld [vmem:[%s3069] sm:$0xff]
    %v3071 = vld [vmem:[%s3069 + $0x8] sm:$0xff]
    %v3072 = vsel %vm501, %v3047, 0
    %v3074 = vsel %vm501, %v3050, 0
    %v3076 = vsel %vm501, %v3053, 0
    %v3078 = vsel %vm501, %v3056, 0
    %v3080 = vsel %vm501, %v3059, 0
    %v3082 = vsel %vm501, %v3062, 0
    %v3084 = vsel %vm501, %v3065, 0
    %v3086 = vsel %vm501, %v3068, 0
    %3088 = vmatpush.msra.mxu0 0.0
    %3089 = vmatpush.msra.mxu0 0.0
    %3090 = vmatpush.msra.mxu0 0.0
    %3091 = vmatpush.msra.mxu0 0.0
    %3092 = vmatpush.msra.mxu0 0.0
    %3093 = vmatpush.msra.mxu0 0.0
    %3094 = vmatpush.msra.mxu0 0.0
    %3095 = vmatpush.msra.mxu0 0.0
    %3096 = vmatpush.msra.mxu0 0.0
    %3097 = vmatpush.msra.mxu0 0.0
    %3098 = vmatpush.msra.mxu0 0.0
    %3099 = vmatpush.msra.mxu0 0.0
    %3100 = vmatpush.msra.mxu0 0.0
    %3101 = vmatpush.msra.mxu0 0.0
    %3102 = vmatpush.msra.mxu0 0.0
    %3103 = vmatpush.msra.mxu0 %v3070
    %3104 = vmatmul.f32.gmra.mxu0 %v504
    %v3105 = vpop.f32.mrf.mxu0
    %v3106 = vadd.f32 0.0, %v3105
    %3107 = vmatmul.f32.gmra.mxu0 %v506
    %v3108 = vpop.f32.mrf.mxu0
    %v3109 = vadd.f32 0.0, %v3108
    %3110 = vmatmul.f32.gmra.mxu0 %v508
    %v3111 = vpop.f32.mrf.mxu0
    %v3112 = vadd.f32 0.0, %v3111
    %3113 = vmatmul.f32.gmra.mxu0 %v510
    %v3114 = vpop.f32.mrf.mxu0
    %v3115 = vadd.f32 0.0, %v3114
    %3116 = vmatmul.f32.gmra.mxu0 %v512
    %v3117 = vpop.f32.mrf.mxu0
    %v3118 = vadd.f32 0.0, %v3117
    %3119 = vmatmul.f32.gmra.mxu0 %v514
    %v3120 = vpop.f32.mrf.mxu0
    %v3121 = vadd.f32 0.0, %v3120
    %3122 = vmatmul.f32.gmra.mxu0 %v516
    %v3123 = vpop.f32.mrf.mxu0
    %v3124 = vadd.f32 0.0, %v3123
    %3125 = vmatmul.f32.gmra.mxu0 %v3072
    %v3126 = vpop.f32.mrf.mxu0
    %v3127 = vadd.f32 0.0, %v3126
    %3128 = vmatmul.f32.gmra.mxu0 %v520
    %v3129 = vpop.f32.mrf.mxu0
    %v3130 = vadd.f32 0.0, %v3129
    %3131 = vmatmul.f32.gmra.mxu0 %v522
    %v3132 = vpop.f32.mrf.mxu0
    %v3133 = vadd.f32 0.0, %v3132
    %3134 = vmatmul.f32.gmra.mxu0 %v524
    %v3135 = vpop.f32.mrf.mxu0
    %v3136 = vadd.f32 0.0, %v3135
    %3137 = vmatmul.f32.gmra.mxu0 %v526
    %v3138 = vpop.f32.mrf.mxu0
    %v3139 = vadd.f32 0.0, %v3138
    %3140 = vmatmul.f32.gmra.mxu0 %v528
    %v3141 = vpop.f32.mrf.mxu0
    %v3142 = vadd.f32 0.0, %v3141
    %3143 = vmatmul.f32.gmra.mxu0 %v530
    %v3144 = vpop.f32.mrf.mxu0
    %v3145 = vadd.f32 0.0, %v3144
    %3146 = vmatmul.f32.gmra.mxu0 %v532
    %v3147 = vpop.f32.mrf.mxu0
    %v3148 = vadd.f32 0.0, %v3147
    %3149 = vmatmul.f32.gmra.mxu0 %v3074
    %v3150 = vpop.f32.mrf.mxu0
    %v3151 = vadd.f32 0.0, %v3150
    %3152 = vmatmul.f32.gmra.mxu0 %v536
    %v3153 = vpop.f32.mrf.mxu0
    %v3154 = vadd.f32 0.0, %v3153
    %3155 = vmatmul.f32.gmra.mxu0 %v538
    %v3156 = vpop.f32.mrf.mxu0
    %v3157 = vadd.f32 0.0, %v3156
    %3158 = vmatmul.f32.gmra.mxu0 %v540
    %v3159 = vpop.f32.mrf.mxu0
    %v3160 = vadd.f32 0.0, %v3159
    %3161 = vmatmul.f32.gmra.mxu0 %v542
    %v3162 = vpop.f32.mrf.mxu0
    %v3163 = vadd.f32 0.0, %v3162
    %3164 = vmatmul.f32.gmra.mxu0 %v544
    %v3165 = vpop.f32.mrf.mxu0
    %v3166 = vadd.f32 0.0, %v3165
    %3167 = vmatmul.f32.gmra.mxu0 %v546
    %v3168 = vpop.f32.mrf.mxu0
    %v3169 = vadd.f32 0.0, %v3168
    %3170 = vmatmul.f32.gmra.mxu0 %v548
    %v3171 = vpop.f32.mrf.mxu0
    %v3172 = vadd.f32 0.0, %v3171
    %3173 = vmatmul.f32.gmra.mxu0 %v3076
    %v3174 = vpop.f32.mrf.mxu0
    %v3175 = vadd.f32 0.0, %v3174
    %3176 = vmatmul.f32.gmra.mxu0 %v552
    %v3177 = vpop.f32.mrf.mxu0
    %v3178 = vadd.f32 0.0, %v3177
    %3179 = vmatmul.f32.gmra.mxu0 %v554
    %v3180 = vpop.f32.mrf.mxu0
    %v3181 = vadd.f32 0.0, %v3180
    %3182 = vmatmul.f32.gmra.mxu0 %v556
    %v3183 = vpop.f32.mrf.mxu0
    %v3184 = vadd.f32 0.0, %v3183
    %3185 = vmatmul.f32.gmra.mxu0 %v558
    %v3186 = vpop.f32.mrf.mxu0
    %v3187 = vadd.f32 0.0, %v3186
    %3188 = vmatmul.f32.gmra.mxu0 %v560
    %v3189 = vpop.f32.mrf.mxu0
    %v3190 = vadd.f32 0.0, %v3189
    %3191 = vmatmul.f32.gmra.mxu0 %v562
    %v3192 = vpop.f32.mrf.mxu0
    %v3193 = vadd.f32 0.0, %v3192
    %3194 = vmatmul.f32.gmra.mxu0 %v564
    %v3195 = vpop.f32.mrf.mxu0
    %v3196 = vadd.f32 0.0, %v3195
    %3197 = vmatmul.f32.gmra.mxu0 %v3078
    %v3198 = vpop.f32.mrf.mxu0
    %v3199 = vadd.f32 0.0, %v3198
    %3200 = vmatmul.f32.gmra.mxu0 %v568
    %v3201 = vpop.f32.mrf.mxu0
    %v3202 = vadd.f32 0.0, %v3201
    %3203 = vmatmul.f32.gmra.mxu0 %v570
    %v3204 = vpop.f32.mrf.mxu0
    %v3205 = vadd.f32 0.0, %v3204
    %3206 = vmatmul.f32.gmra.mxu0 %v572
    %v3207 = vpop.f32.mrf.mxu0
    %v3208 = vadd.f32 0.0, %v3207
    %3209 = vmatmul.f32.gmra.mxu0 %v574
    %v3210 = vpop.f32.mrf.mxu0
    %v3211 = vadd.f32 0.0, %v3210
    %3212 = vmatmul.f32.gmra.mxu0 %v576
    %v3213 = vpop.f32.mrf.mxu0
    %v3214 = vadd.f32 0.0, %v3213
    %3215 = vmatmul.f32.gmra.mxu0 %v578
    %v3216 = vpop.f32.mrf.mxu0
    %v3217 = vadd.f32 0.0, %v3216
    %3218 = vmatmul.f32.gmra.mxu0 %v580
    %v3219 = vpop.f32.mrf.mxu0
    %v3220 = vadd.f32 0.0, %v3219
    %3221 = vmatmul.f32.gmra.mxu0 %v3080
    %v3222 = vpop.f32.mrf.mxu0
    %v3223 = vadd.f32 0.0, %v3222
    %3224 = vmatmul.f32.gmra.mxu0 %v584
    %v3225 = vpop.f32.mrf.mxu0
    %v3226 = vadd.f32 0.0, %v3225
    %3227 = vmatmul.f32.gmra.mxu0 %v586
    %v3228 = vpop.f32.mrf.mxu0
    %v3229 = vadd.f32 0.0, %v3228
    %3230 = vmatmul.f32.gmra.mxu0 %v588
    %v3231 = vpop.f32.mrf.mxu0
    %v3232 = vadd.f32 0.0, %v3231
    %3233 = vmatmul.f32.gmra.mxu0 %v590
    %v3234 = vpop.f32.mrf.mxu0
    %v3235 = vadd.f32 0.0, %v3234
    %3236 = vmatmul.f32.gmra.mxu0 %v592
    %v3237 = vpop.f32.mrf.mxu0
    %v3238 = vadd.f32 0.0, %v3237
    %3239 = vmatmul.f32.gmra.mxu0 %v594
    %v3240 = vpop.f32.mrf.mxu0
    %v3241 = vadd.f32 0.0, %v3240
    %3242 = vmatmul.f32.gmra.mxu0 %v596
    %v3243 = vpop.f32.mrf.mxu0
    %v3244 = vadd.f32 0.0, %v3243
    %3245 = vmatmul.f32.gmra.mxu0 %v3082
    %v3246 = vpop.f32.mrf.mxu0
    %v3247 = vadd.f32 0.0, %v3246
    %3248 = vmatmul.f32.gmra.mxu0 %v600
    %v3249 = vpop.f32.mrf.mxu0
    %v3250 = vadd.f32 0.0, %v3249
    %3251 = vmatmul.f32.gmra.mxu0 %v602
    %v3252 = vpop.f32.mrf.mxu0
    %v3253 = vadd.f32 0.0, %v3252
    %3254 = vmatmul.f32.gmra.mxu0 %v604
    %v3255 = vpop.f32.mrf.mxu0
    %v3256 = vadd.f32 0.0, %v3255
    %3257 = vmatmul.f32.gmra.mxu0 %v606
    %v3258 = vpop.f32.mrf.mxu0
    %v3259 = vadd.f32 0.0, %v3258
    %3260 = vmatmul.f32.gmra.mxu0 %v608
    %v3261 = vpop.f32.mrf.mxu0
    %v3262 = vadd.f32 0.0, %v3261
    %3263 = vmatmul.f32.gmra.mxu0 %v610
    %v3264 = vpop.f32.mrf.mxu0
    %v3265 = vadd.f32 0.0, %v3264
    %3266 = vmatmul.f32.gmra.mxu0 %v612
    %v3267 = vpop.f32.mrf.mxu0
    %v3268 = vadd.f32 0.0, %v3267
    %3269 = vmatmul.f32.gmra.mxu0 %v3084
    %v3270 = vpop.f32.mrf.mxu0
    %v3271 = vadd.f32 0.0, %v3270
    %3272 = vmatmul.f32.gmra.mxu0 %v616
    %v3273 = vpop.f32.mrf.mxu0
    %v3274 = vadd.f32 0.0, %v3273
    %3275 = vmatmul.f32.gmra.mxu0 %v618
    %v3276 = vpop.f32.mrf.mxu0
    %v3277 = vadd.f32 0.0, %v3276
    %3278 = vmatmul.f32.gmra.mxu0 %v620
    %v3279 = vpop.f32.mrf.mxu0
    %v3280 = vadd.f32 0.0, %v3279
    %3281 = vmatmul.f32.gmra.mxu0 %v622
    %v3282 = vpop.f32.mrf.mxu0
    %v3283 = vadd.f32 0.0, %v3282
    %3284 = vmatmul.f32.gmra.mxu0 %v624
    %v3285 = vpop.f32.mrf.mxu0
    %v3286 = vadd.f32 0.0, %v3285
    %3287 = vmatmul.f32.gmra.mxu0 %v626
    %v3288 = vpop.f32.mrf.mxu0
    %v3289 = vadd.f32 0.0, %v3288
    %3290 = vmatmul.f32.gmra.mxu0 %v628
    %v3291 = vpop.f32.mrf.mxu0
    %v3292 = vadd.f32 0.0, %v3291
    %3293 = vmatmul.f32.gmra.mxu0 %v3086
    %v3294 = vpop.f32.mrf.mxu0
    %v3295 = vadd.f32 0.0, %v3294
    %3296 = vdwg.mxu0
    %3297 = vmatpush.msra.mxu0 0.0
    %3298 = vmatpush.msra.mxu0 0.0
    %3299 = vmatpush.msra.mxu0 0.0
    %3300 = vmatpush.msra.mxu0 0.0
    %3301 = vmatpush.msra.mxu0 0.0
    %3302 = vmatpush.msra.mxu0 0.0
    %3303 = vmatpush.msra.mxu0 0.0
    %3304 = vmatpush.msra.mxu0 0.0
    %3305 = vmatpush.msra.mxu0 0.0
    %3306 = vmatpush.msra.mxu0 0.0
    %3307 = vmatpush.msra.mxu0 0.0
    %3308 = vmatpush.msra.mxu0 0.0
    %3309 = vmatpush.msra.mxu0 0.0
    %3310 = vmatpush.msra.mxu0 0.0
    %3311 = vmatpush.msra.mxu0 0.0
    %3312 = vmatpush.msra.mxu0 %v3071
    %3313 = vmatmul.f32.gmra.mxu0 %v504
    %v3314 = vpop.f32.mrf.mxu0
    %v3315 = vadd.f32 0.0, %v3314
    %3316 = vmatmul.f32.gmra.mxu0 %v506
    %v3317 = vpop.f32.mrf.mxu0
    %v3318 = vadd.f32 0.0, %v3317
    %3319 = vmatmul.f32.gmra.mxu0 %v508
    %v3320 = vpop.f32.mrf.mxu0
    %v3321 = vadd.f32 0.0, %v3320
    %3322 = vmatmul.f32.gmra.mxu0 %v510
    %v3323 = vpop.f32.mrf.mxu0
    %v3324 = vadd.f32 0.0, %v3323
    %3325 = vmatmul.f32.gmra.mxu0 %v512
    %v3326 = vpop.f32.mrf.mxu0
    %v3327 = vadd.f32 0.0, %v3326
    %3328 = vmatmul.f32.gmra.mxu0 %v514
    %v3329 = vpop.f32.mrf.mxu0
    %v3330 = vadd.f32 0.0, %v3329
    %3331 = vmatmul.f32.gmra.mxu0 %v516
    %v3332 = vpop.f32.mrf.mxu0
    %v3333 = vadd.f32 0.0, %v3332
    %3334 = vmatmul.f32.gmra.mxu0 %v3072
    %v3335 = vpop.f32.mrf.mxu0
    %v3336 = vadd.f32 0.0, %v3335
    %3337 = vmatmul.f32.gmra.mxu0 %v520
    %v3338 = vpop.f32.mrf.mxu0
    %v3339 = vadd.f32 0.0, %v3338
    %3340 = vmatmul.f32.gmra.mxu0 %v522
    %v3341 = vpop.f32.mrf.mxu0
    %v3342 = vadd.f32 0.0, %v3341
    %3343 = vmatmul.f32.gmra.mxu0 %v524
    %v3344 = vpop.f32.mrf.mxu0
    %v3345 = vadd.f32 0.0, %v3344
    %3346 = vmatmul.f32.gmra.mxu0 %v526
    %v3347 = vpop.f32.mrf.mxu0
    %v3348 = vadd.f32 0.0, %v3347
    %3349 = vmatmul.f32.gmra.mxu0 %v528
    %v3350 = vpop.f32.mrf.mxu0
    %v3351 = vadd.f32 0.0, %v3350
    %3352 = vmatmul.f32.gmra.mxu0 %v530
    %v3353 = vpop.f32.mrf.mxu0
    %v3354 = vadd.f32 0.0, %v3353
    %3355 = vmatmul.f32.gmra.mxu0 %v532
    %v3356 = vpop.f32.mrf.mxu0
    %v3357 = vadd.f32 0.0, %v3356
    %3358 = vmatmul.f32.gmra.mxu0 %v3074
    %v3359 = vpop.f32.mrf.mxu0
    %v3360 = vadd.f32 0.0, %v3359
    %3361 = vmatmul.f32.gmra.mxu0 %v536
    %v3362 = vpop.f32.mrf.mxu0
    %v3363 = vadd.f32 0.0, %v3362
    %3364 = vmatmul.f32.gmra.mxu0 %v538
    %v3365 = vpop.f32.mrf.mxu0
    %v3366 = vadd.f32 0.0, %v3365
    %3367 = vmatmul.f32.gmra.mxu0 %v540
    %v3368 = vpop.f32.mrf.mxu0
    %v3369 = vadd.f32 0.0, %v3368
    %3370 = vmatmul.f32.gmra.mxu0 %v542
    %v3371 = vpop.f32.mrf.mxu0
    %v3372 = vadd.f32 0.0, %v3371
    %3373 = vmatmul.f32.gmra.mxu0 %v544
    %v3374 = vpop.f32.mrf.mxu0
    %v3375 = vadd.f32 0.0, %v3374
    %3376 = vmatmul.f32.gmra.mxu0 %v546
    %v3377 = vpop.f32.mrf.mxu0
    %v3378 = vadd.f32 0.0, %v3377
    %3379 = vmatmul.f32.gmra.mxu0 %v548
    %v3380 = vpop.f32.mrf.mxu0
    %v3381 = vadd.f32 0.0, %v3380
    %3382 = vmatmul.f32.gmra.mxu0 %v3076
    %v3383 = vpop.f32.mrf.mxu0
    %v3384 = vadd.f32 0.0, %v3383
    %3385 = vmatmul.f32.gmra.mxu0 %v552
    %v3386 = vpop.f32.mrf.mxu0
    %v3387 = vadd.f32 0.0, %v3386
    %3388 = vmatmul.f32.gmra.mxu0 %v554
    %v3389 = vpop.f32.mrf.mxu0
    %v3390 = vadd.f32 0.0, %v3389
    %3391 = vmatmul.f32.gmra.mxu0 %v556
    %v3392 = vpop.f32.mrf.mxu0
    %v3393 = vadd.f32 0.0, %v3392
    %3394 = vmatmul.f32.gmra.mxu0 %v558
    %v3395 = vpop.f32.mrf.mxu0
    %v3396 = vadd.f32 0.0, %v3395
    %3397 = vmatmul.f32.gmra.mxu0 %v560
    %v3398 = vpop.f32.mrf.mxu0
    %v3399 = vadd.f32 0.0, %v3398
    %3400 = vmatmul.f32.gmra.mxu0 %v562
    %v3401 = vpop.f32.mrf.mxu0
    %v3402 = vadd.f32 0.0, %v3401
    %3403 = vmatmul.f32.gmra.mxu0 %v564
    %v3404 = vpop.f32.mrf.mxu0
    %v3405 = vadd.f32 0.0, %v3404
    %3406 = vmatmul.f32.gmra.mxu0 %v3078
    %v3407 = vpop.f32.mrf.mxu0
    %v3408 = vadd.f32 0.0, %v3407
    %3409 = vmatmul.f32.gmra.mxu0 %v568
    %v3410 = vpop.f32.mrf.mxu0
    %v3411 = vadd.f32 0.0, %v3410
    %3412 = vmatmul.f32.gmra.mxu0 %v570
    %v3413 = vpop.f32.mrf.mxu0
    %v3414 = vadd.f32 0.0, %v3413
    %3415 = vmatmul.f32.gmra.mxu0 %v572
    %v3416 = vpop.f32.mrf.mxu0
    %v3417 = vadd.f32 0.0, %v3416
    %3418 = vmatmul.f32.gmra.mxu0 %v574
    %v3419 = vpop.f32.mrf.mxu0
    %v3420 = vadd.f32 0.0, %v3419
    %3421 = vmatmul.f32.gmra.mxu0 %v576
    %v3422 = vpop.f32.mrf.mxu0
    %v3423 = vadd.f32 0.0, %v3422
    %3424 = vmatmul.f32.gmra.mxu0 %v578
    %v3425 = vpop.f32.mrf.mxu0
    %v3426 = vadd.f32 0.0, %v3425
    %3427 = vmatmul.f32.gmra.mxu0 %v580
    %v3428 = vpop.f32.mrf.mxu0
    %v3429 = vadd.f32 0.0, %v3428
    %3430 = vmatmul.f32.gmra.mxu0 %v3080
    %v3431 = vpop.f32.mrf.mxu0
    %v3432 = vadd.f32 0.0, %v3431
    %3433 = vmatmul.f32.gmra.mxu0 %v584
    %v3434 = vpop.f32.mrf.mxu0
    %v3435 = vadd.f32 0.0, %v3434
    %3436 = vmatmul.f32.gmra.mxu0 %v586
    %v3437 = vpop.f32.mrf.mxu0
    %v3438 = vadd.f32 0.0, %v3437
    %3439 = vmatmul.f32.gmra.mxu0 %v588
    %v3440 = vpop.f32.mrf.mxu0
    %v3441 = vadd.f32 0.0, %v3440
    %3442 = vmatmul.f32.gmra.mxu0 %v590
    %v3443 = vpop.f32.mrf.mxu0
    %v3444 = vadd.f32 0.0, %v3443
    %3445 = vmatmul.f32.gmra.mxu0 %v592
    %v3446 = vpop.f32.mrf.mxu0
    %v3447 = vadd.f32 0.0, %v3446
    %3448 = vmatmul.f32.gmra.mxu0 %v594
    %v3449 = vpop.f32.mrf.mxu0
    %v3450 = vadd.f32 0.0, %v3449
    %3451 = vmatmul.f32.gmra.mxu0 %v596
    %v3452 = vpop.f32.mrf.mxu0
    %v3453 = vadd.f32 0.0, %v3452
    %3454 = vmatmul.f32.gmra.mxu0 %v3082
    %v3455 = vpop.f32.mrf.mxu0
    %v3456 = vadd.f32 0.0, %v3455
    %3457 = vmatmul.f32.gmra.mxu0 %v600
    %v3458 = vpop.f32.mrf.mxu0
    %v3459 = vadd.f32 0.0, %v3458
    %3460 = vmatmul.f32.gmra.mxu0 %v602
    %v3461 = vpop.f32.mrf.mxu0
    %v3462 = vadd.f32 0.0, %v3461
    %3463 = vmatmul.f32.gmra.mxu0 %v604
    %v3464 = vpop.f32.mrf.mxu0
    %v3465 = vadd.f32 0.0, %v3464
    %3466 = vmatmul.f32.gmra.mxu0 %v606
    %v3467 = vpop.f32.mrf.mxu0
    %v3468 = vadd.f32 0.0, %v3467
    %3469 = vmatmul.f32.gmra.mxu0 %v608
    %v3470 = vpop.f32.mrf.mxu0
    %v3471 = vadd.f32 0.0, %v3470
    %3472 = vmatmul.f32.gmra.mxu0 %v610
    %v3473 = vpop.f32.mrf.mxu0
    %v3474 = vadd.f32 0.0, %v3473
    %3475 = vmatmul.f32.gmra.mxu0 %v612
    %v3476 = vpop.f32.mrf.mxu0
    %v3477 = vadd.f32 0.0, %v3476
    %3478 = vmatmul.f32.gmra.mxu0 %v3084
    %v3479 = vpop.f32.mrf.mxu0
    %v3480 = vadd.f32 0.0, %v3479
    %3481 = vmatmul.f32.gmra.mxu0 %v616
    %v3482 = vpop.f32.mrf.mxu0
    %v3483 = vadd.f32 0.0, %v3482
    %3484 = vmatmul.f32.gmra.mxu0 %v618
    %v3485 = vpop.f32.mrf.mxu0
    %v3486 = vadd.f32 0.0, %v3485
    %3487 = vmatmul.f32.gmra.mxu0 %v620
    %v3488 = vpop.f32.mrf.mxu0
    %v3489 = vadd.f32 0.0, %v3488
    %3490 = vmatmul.f32.gmra.mxu0 %v622
    %v3491 = vpop.f32.mrf.mxu0
    %v3492 = vadd.f32 0.0, %v3491
    %3493 = vmatmul.f32.gmra.mxu0 %v624
    %v3494 = vpop.f32.mrf.mxu0
    %v3495 = vadd.f32 0.0, %v3494
    %3496 = vmatmul.f32.gmra.mxu0 %v626
    %v3497 = vpop.f32.mrf.mxu0
    %v3498 = vadd.f32 0.0, %v3497
    %3499 = vmatmul.f32.gmra.mxu0 %v628
    %v3500 = vpop.f32.mrf.mxu0
    %v3501 = vadd.f32 0.0, %v3500
    %3502 = vmatmul.f32.gmra.mxu0 %v3086
    %v3503 = vpop.f32.mrf.mxu0
    %v3504 = vadd.f32 0.0, %v3503
    %3505 = vdwg.mxu0
    %v3506 = vadd.f32 %v2909, %v3106
    %v3507 = vadd.f32 %v2910, %v3315
    %v3508 = vadd.f32 %v2911, %v3109
    %v3509 = vadd.f32 %v2912, %v3318
    %v3510 = vadd.f32 %v2913, %v3112
    %v3511 = vadd.f32 %v2914, %v3321
    %v3512 = vadd.f32 %v2915, %v3115
    %v3513 = vadd.f32 %v2916, %v3324
    %v3514 = vadd.f32 %v2917, %v3118
    %v3515 = vadd.f32 %v2918, %v3327
    %v3516 = vadd.f32 %v2919, %v3121
    %v3517 = vadd.f32 %v2920, %v3330
    %v3518 = vadd.f32 %v2921, %v3124
    %v3519 = vadd.f32 %v2922, %v3333
    %v3520 = vadd.f32 %v2923, %v3127
    %v3521 = vadd.f32 %v2924, %v3336
    %v3522 = vadd.f32 %v2925, %v3130
    %v3523 = vadd.f32 %v2926, %v3339
    %v3524 = vadd.f32 %v2927, %v3133
    %v3525 = vadd.f32 %v2928, %v3342
    %v3526 = vadd.f32 %v2929, %v3136
    %v3527 = vadd.f32 %v2930, %v3345
    %v3528 = vadd.f32 %v2931, %v3139
    %v3529 = vadd.f32 %v2932, %v3348
    %v3530 = vadd.f32 %v2933, %v3142
    %v3531 = vadd.f32 %v2934, %v3351
    %v3532 = vadd.f32 %v2935, %v3145
    %v3533 = vadd.f32 %v2936, %v3354
    %v3534 = vadd.f32 %v2937, %v3148
    %v3535 = vadd.f32 %v2938, %v3357
    %v3536 = vadd.f32 %v2939, %v3151
    %v3537 = vadd.f32 %v2940, %v3360
    %v3538 = vadd.f32 %v2941, %v3154
    %v3539 = vadd.f32 %v2942, %v3363
    %v3540 = vadd.f32 %v2943, %v3157
    %v3541 = vadd.f32 %v2944, %v3366
    %v3542 = vadd.f32 %v2945, %v3160
    %v3543 = vadd.f32 %v2946, %v3369
    %v3544 = vadd.f32 %v2947, %v3163
    %v3545 = vadd.f32 %v2948, %v3372
    %v3546 = vadd.f32 %v2949, %v3166
    %v3547 = vadd.f32 %v2950, %v3375
    %v3548 = vadd.f32 %v2951, %v3169
    %v3549 = vadd.f32 %v2952, %v3378
    %v3550 = vadd.f32 %v2953, %v3172
    %v3551 = vadd.f32 %v2954, %v3381
    %v3552 = vadd.f32 %v2955, %v3175
    %v3553 = vadd.f32 %v2956, %v3384
    %v3554 = vadd.f32 %v2957, %v3178
    %v3555 = vadd.f32 %v2958, %v3387
    %v3556 = vadd.f32 %v2959, %v3181
    %v3557 = vadd.f32 %v2960, %v3390
    %v3558 = vadd.f32 %v2961, %v3184
    %v3559 = vadd.f32 %v2962, %v3393
    %v3560 = vadd.f32 %v2963, %v3187
    %v3561 = vadd.f32 %v2964, %v3396
    %v3562 = vadd.f32 %v2965, %v3190
    %v3563 = vadd.f32 %v2966, %v3399
    %v3564 = vadd.f32 %v2967, %v3193
    %v3565 = vadd.f32 %v2968, %v3402
    %v3566 = vadd.f32 %v2969, %v3196
    %v3567 = vadd.f32 %v2970, %v3405
    %v3568 = vadd.f32 %v2971, %v3199
    %v3569 = vadd.f32 %v2972, %v3408
    %v3570 = vadd.f32 %v2973, %v3202
    %v3571 = vadd.f32 %v2974, %v3411
    %v3572 = vadd.f32 %v2975, %v3205
    %v3573 = vadd.f32 %v2976, %v3414
    %v3574 = vadd.f32 %v2977, %v3208
    %v3575 = vadd.f32 %v2978, %v3417
    %v3576 = vadd.f32 %v2979, %v3211
    %v3577 = vadd.f32 %v2980, %v3420
    %v3578 = vadd.f32 %v2981, %v3214
    %v3579 = vadd.f32 %v2982, %v3423
    %v3580 = vadd.f32 %v2983, %v3217
    %v3581 = vadd.f32 %v2984, %v3426
    %v3582 = vadd.f32 %v2985, %v3220
    %v3583 = vadd.f32 %v2986, %v3429
    %v3584 = vadd.f32 %v2987, %v3223
    %v3585 = vadd.f32 %v2988, %v3432
    %v3586 = vadd.f32 %v2989, %v3226
    %v3587 = vadd.f32 %v2990, %v3435
    %v3588 = vadd.f32 %v2991, %v3229
    %v3589 = vadd.f32 %v2992, %v3438
    %v3590 = vadd.f32 %v2993, %v3232
    %v3591 = vadd.f32 %v2994, %v3441
    %v3592 = vadd.f32 %v2995, %v3235
    %v3593 = vadd.f32 %v2996, %v3444
    %v3594 = vadd.f32 %v2997, %v3238
    %v3595 = vadd.f32 %v2998, %v3447
    %v3596 = vadd.f32 %v2999, %v3241
    %v3597 = vadd.f32 %v3000, %v3450
    %v3598 = vadd.f32 %v3001, %v3244
    %v3599 = vadd.f32 %v3002, %v3453
    %v3600 = vadd.f32 %v3003, %v3247
    %v3601 = vadd.f32 %v3004, %v3456
    %v3602 = vadd.f32 %v3005, %v3250
    %v3603 = vadd.f32 %v3006, %v3459
    %v3604 = vadd.f32 %v3007, %v3253
    %v3605 = vadd.f32 %v3008, %v3462
    %v3606 = vadd.f32 %v3009, %v3256
    %v3607 = vadd.f32 %v3010, %v3465
    %v3608 = vadd.f32 %v3011, %v3259
    %v3609 = vadd.f32 %v3012, %v3468
    %v3610 = vadd.f32 %v3013, %v3262
    %v3611 = vadd.f32 %v3014, %v3471
    %v3612 = vadd.f32 %v3015, %v3265
    %v3613 = vadd.f32 %v3016, %v3474
    %v3614 = vadd.f32 %v3017, %v3268
    %v3615 = vadd.f32 %v3018, %v3477
    %v3616 = vadd.f32 %v3019, %v3271
    %v3617 = vadd.f32 %v3020, %v3480
    %v3618 = vadd.f32 %v3021, %v3274
    %v3619 = vadd.f32 %v3022, %v3483
    %v3620 = vadd.f32 %v3023, %v3277
    %v3621 = vadd.f32 %v3024, %v3486
    %v3622 = vadd.f32 %v3025, %v3280
    %v3623 = vadd.f32 %v3026, %v3489
    %v3624 = vadd.f32 %v3027, %v3283
    %v3625 = vadd.f32 %v3028, %v3492
    %v3626 = vadd.f32 %v3029, %v3286
    %v3627 = vadd.f32 %v3030, %v3495
    %v3628 = vadd.f32 %v3031, %v3289
    %v3629 = vadd.f32 %v3032, %v3498
    %v3630 = vadd.f32 %v3033, %v3292
    %v3631 = vadd.f32 %v3034, %v3501
    %v3632 = vadd.f32 %v3035, %v3295
    %v3633 = vadd.f32 %v3036, %v3504
    %v3634 = vrot.slane %v31, 2
    %v3635 = vrot.slane %v32, 2
    %v3636 = vsel %vm1594, %v3634, %v3635
    %v3637 = vrot.slane %v51, 2
    %v3638 = vrot.slane %v52, 2
    %v3639 = vsel %vm1594, %v3637, %v3638
    %v3640 = vrot.slane %v71, 2
    %v3641 = vrot.slane %v72, 2
    %v3642 = vsel %vm1594, %v3640, %v3641
    %v3643 = vrot.slane %v91, 2
    %v3644 = vrot.slane %v92, 2
    %v3645 = vsel %vm1594, %v3643, %v3644
    %v3646 = vrot.slane %v111, 2
    %v3647 = vrot.slane %v112, 2
    %v3648 = vsel %vm1594, %v3646, %v3647
    %v3649 = vrot.slane %v131, 2
    %v3650 = vrot.slane %v132, 2
    %v3651 = vsel %vm1594, %v3649, %v3650
    %v3652 = vrot.slane %v151, 2
    %v3653 = vrot.slane %v152, 2
    %v3654 = vsel %vm1594, %v3652, %v3653
    %v3655 = vrot.slane %v171, 2
    %v3656 = vrot.slane %v172, 2
    %v3657 = vsel %vm1594, %v3655, %v3656
    %s3658 = scalar_lea.vmem %s1, 80
    %v3659 = vld [vmem:[%s3658] sm:$0xff]
    %v3660 = vld [vmem:[%s3658 + $0x8] sm:$0xff]
    %v3661 = vsel %vm501, %v3636, 0
    %v3663 = vsel %vm501, %v3639, 0
    %v3665 = vsel %vm501, %v3642, 0
    %v3667 = vsel %vm501, %v3645, 0
    %v3669 = vsel %vm501, %v3648, 0
    %v3671 = vsel %vm501, %v3651, 0
    %v3673 = vsel %vm501, %v3654, 0
    %v3675 = vsel %vm501, %v3657, 0
    %3677 = vmatpush.msra.mxu0 0.0
    %3678 = vmatpush.msra.mxu0 0.0
    %3679 = vmatpush.msra.mxu0 0.0
    %3680 = vmatpush.msra.mxu0 0.0
    %3681 = vmatpush.msra.mxu0 0.0
    %3682 = vmatpush.msra.mxu0 0.0
    %3683 = vmatpush.msra.mxu0 0.0
    %3684 = vmatpush.msra.mxu0 0.0
    %3685 = vmatpush.msra.mxu0 0.0
    %3686 = vmatpush.msra.mxu0 0.0
    %3687 = vmatpush.msra.mxu0 0.0
    %3688 = vmatpush.msra.mxu0 0.0
    %3689 = vmatpush.msra.mxu0 0.0
    %3690 = vmatpush.msra.mxu0 0.0
    %3691 = vmatpush.msra.mxu0 0.0
    %3692 = vmatpush.msra.mxu0 %v3659
    %3693 = vmatmul.f32.gmra.mxu0 %v1792
    %v3694 = vpop.f32.mrf.mxu0
    %v3695 = vadd.f32 0.0, %v3694
    %3696 = vmatmul.f32.gmra.mxu0 %v1794
    %v3697 = vpop.f32.mrf.mxu0
    %v3698 = vadd.f32 0.0, %v3697
    %3699 = vmatmul.f32.gmra.mxu0 %v1796
    %v3700 = vpop.f32.mrf.mxu0
    %v3701 = vadd.f32 0.0, %v3700
    %3702 = vmatmul.f32.gmra.mxu0 %v1798
    %v3703 = vpop.f32.mrf.mxu0
    %v3704 = vadd.f32 0.0, %v3703
    %3705 = vmatmul.f32.gmra.mxu0 %v1800
    %v3706 = vpop.f32.mrf.mxu0
    %v3707 = vadd.f32 0.0, %v3706
    %3708 = vmatmul.f32.gmra.mxu0 %v1802
    %v3709 = vpop.f32.mrf.mxu0
    %v3710 = vadd.f32 0.0, %v3709
    %3711 = vmatmul.f32.gmra.mxu0 %v1804
    %v3712 = vpop.f32.mrf.mxu0
    %v3713 = vadd.f32 0.0, %v3712
    %3714 = vmatmul.f32.gmra.mxu0 %v3661
    %v3715 = vpop.f32.mrf.mxu0
    %v3716 = vadd.f32 0.0, %v3715
    %3717 = vmatmul.f32.gmra.mxu0 %v1808
    %v3718 = vpop.f32.mrf.mxu0
    %v3719 = vadd.f32 0.0, %v3718
    %3720 = vmatmul.f32.gmra.mxu0 %v1810
    %v3721 = vpop.f32.mrf.mxu0
    %v3722 = vadd.f32 0.0, %v3721
    %3723 = vmatmul.f32.gmra.mxu0 %v1812
    %v3724 = vpop.f32.mrf.mxu0
    %v3725 = vadd.f32 0.0, %v3724
    %3726 = vmatmul.f32.gmra.mxu0 %v1814
    %v3727 = vpop.f32.mrf.mxu0
    %v3728 = vadd.f32 0.0, %v3727
    %3729 = vmatmul.f32.gmra.mxu0 %v1816
    %v3730 = vpop.f32.mrf.mxu0
    %v3731 = vadd.f32 0.0, %v3730
    %3732 = vmatmul.f32.gmra.mxu0 %v1818
    %v3733 = vpop.f32.mrf.mxu0
    %v3734 = vadd.f32 0.0, %v3733
    %3735 = vmatmul.f32.gmra.mxu0 %v1820
    %v3736 = vpop.f32.mrf.mxu0
    %v3737 = vadd.f32 0.0, %v3736
    %3738 = vmatmul.f32.gmra.mxu0 %v3663
    %v3739 = vpop.f32.mrf.mxu0
    %v3740 = vadd.f32 0.0, %v3739
    %3741 = vmatmul.f32.gmra.mxu0 %v1824
    %v3742 = vpop.f32.mrf.mxu0
    %v3743 = vadd.f32 0.0, %v3742
    %3744 = vmatmul.f32.gmra.mxu0 %v1826
    %v3745 = vpop.f32.mrf.mxu0
    %v3746 = vadd.f32 0.0, %v3745
    %3747 = vmatmul.f32.gmra.mxu0 %v1828
    %v3748 = vpop.f32.mrf.mxu0
    %v3749 = vadd.f32 0.0, %v3748
    %3750 = vmatmul.f32.gmra.mxu0 %v1830
    %v3751 = vpop.f32.mrf.mxu0
    %v3752 = vadd.f32 0.0, %v3751
    %3753 = vmatmul.f32.gmra.mxu0 %v1832
    %v3754 = vpop.f32.mrf.mxu0
    %v3755 = vadd.f32 0.0, %v3754
    %3756 = vmatmul.f32.gmra.mxu0 %v1834
    %v3757 = vpop.f32.mrf.mxu0
    %v3758 = vadd.f32 0.0, %v3757
    %3759 = vmatmul.f32.gmra.mxu0 %v1836
    %v3760 = vpop.f32.mrf.mxu0
    %v3761 = vadd.f32 0.0, %v3760
    %3762 = vmatmul.f32.gmra.mxu0 %v3665
    %v3763 = vpop.f32.mrf.mxu0
    %v3764 = vadd.f32 0.0, %v3763
    %3765 = vmatmul.f32.gmra.mxu0 %v1840
    %v3766 = vpop.f32.mrf.mxu0
    %v3767 = vadd.f32 0.0, %v3766
    %3768 = vmatmul.f32.gmra.mxu0 %v1842
    %v3769 = vpop.f32.mrf.mxu0
    %v3770 = vadd.f32 0.0, %v3769
    %3771 = vmatmul.f32.gmra.mxu0 %v1844
    %v3772 = vpop.f32.mrf.mxu0
    %v3773 = vadd.f32 0.0, %v3772
    %3774 = vmatmul.f32.gmra.mxu0 %v1846
    %v3775 = vpop.f32.mrf.mxu0
    %v3776 = vadd.f32 0.0, %v3775
    %3777 = vmatmul.f32.gmra.mxu0 %v1848
    %v3778 = vpop.f32.mrf.mxu0
    %v3779 = vadd.f32 0.0, %v3778
    %3780 = vmatmul.f32.gmra.mxu0 %v1850
    %v3781 = vpop.f32.mrf.mxu0
    %v3782 = vadd.f32 0.0, %v3781
    %3783 = vmatmul.f32.gmra.mxu0 %v1852
    %v3784 = vpop.f32.mrf.mxu0
    %v3785 = vadd.f32 0.0, %v3784
    %3786 = vmatmul.f32.gmra.mxu0 %v3667
    %v3787 = vpop.f32.mrf.mxu0
    %v3788 = vadd.f32 0.0, %v3787
    %3789 = vmatmul.f32.gmra.mxu0 %v1856
    %v3790 = vpop.f32.mrf.mxu0
    %v3791 = vadd.f32 0.0, %v3790
    %3792 = vmatmul.f32.gmra.mxu0 %v1858
    %v3793 = vpop.f32.mrf.mxu0
    %v3794 = vadd.f32 0.0, %v3793
    %3795 = vmatmul.f32.gmra.mxu0 %v1860
    %v3796 = vpop.f32.mrf.mxu0
    %v3797 = vadd.f32 0.0, %v3796
    %3798 = vmatmul.f32.gmra.mxu0 %v1862
    %v3799 = vpop.f32.mrf.mxu0
    %v3800 = vadd.f32 0.0, %v3799
    %3801 = vmatmul.f32.gmra.mxu0 %v1864
    %v3802 = vpop.f32.mrf.mxu0
    %v3803 = vadd.f32 0.0, %v3802
    %3804 = vmatmul.f32.gmra.mxu0 %v1866
    %v3805 = vpop.f32.mrf.mxu0
    %v3806 = vadd.f32 0.0, %v3805
    %3807 = vmatmul.f32.gmra.mxu0 %v1868
    %v3808 = vpop.f32.mrf.mxu0
    %v3809 = vadd.f32 0.0, %v3808
    %3810 = vmatmul.f32.gmra.mxu0 %v3669
    %v3811 = vpop.f32.mrf.mxu0
    %v3812 = vadd.f32 0.0, %v3811
    %3813 = vmatmul.f32.gmra.mxu0 %v1872
    %v3814 = vpop.f32.mrf.mxu0
    %v3815 = vadd.f32 0.0, %v3814
    %3816 = vmatmul.f32.gmra.mxu0 %v1874
    %v3817 = vpop.f32.mrf.mxu0
    %v3818 = vadd.f32 0.0, %v3817
    %3819 = vmatmul.f32.gmra.mxu0 %v1876
    %v3820 = vpop.f32.mrf.mxu0
    %v3821 = vadd.f32 0.0, %v3820
    %3822 = vmatmul.f32.gmra.mxu0 %v1878
    %v3823 = vpop.f32.mrf.mxu0
    %v3824 = vadd.f32 0.0, %v3823
    %3825 = vmatmul.f32.gmra.mxu0 %v1880
    %v3826 = vpop.f32.mrf.mxu0
    %v3827 = vadd.f32 0.0, %v3826
    %3828 = vmatmul.f32.gmra.mxu0 %v1882
    %v3829 = vpop.f32.mrf.mxu0
    %v3830 = vadd.f32 0.0, %v3829
    %3831 = vmatmul.f32.gmra.mxu0 %v1884
    %v3832 = vpop.f32.mrf.mxu0
    %v3833 = vadd.f32 0.0, %v3832
    %3834 = vmatmul.f32.gmra.mxu0 %v3671
    %v3835 = vpop.f32.mrf.mxu0
    %v3836 = vadd.f32 0.0, %v3835
    %3837 = vmatmul.f32.gmra.mxu0 %v1888
    %v3838 = vpop.f32.mrf.mxu0
    %v3839 = vadd.f32 0.0, %v3838
    %3840 = vmatmul.f32.gmra.mxu0 %v1890
    %v3841 = vpop.f32.mrf.mxu0
    %v3842 = vadd.f32 0.0, %v3841
    %3843 = vmatmul.f32.gmra.mxu0 %v1892
    %v3844 = vpop.f32.mrf.mxu0
    %v3845 = vadd.f32 0.0, %v3844
    %3846 = vmatmul.f32.gmra.mxu0 %v1894
    %v3847 = vpop.f32.mrf.mxu0
    %v3848 = vadd.f32 0.0, %v3847
    %3849 = vmatmul.f32.gmra.mxu0 %v1896
    %v3850 = vpop.f32.mrf.mxu0
    %v3851 = vadd.f32 0.0, %v3850
    %3852 = vmatmul.f32.gmra.mxu0 %v1898
    %v3853 = vpop.f32.mrf.mxu0
    %v3854 = vadd.f32 0.0, %v3853
    %3855 = vmatmul.f32.gmra.mxu0 %v1900
    %v3856 = vpop.f32.mrf.mxu0
    %v3857 = vadd.f32 0.0, %v3856
    %3858 = vmatmul.f32.gmra.mxu0 %v3673
    %v3859 = vpop.f32.mrf.mxu0
    %v3860 = vadd.f32 0.0, %v3859
    %3861 = vmatmul.f32.gmra.mxu0 %v1904
    %v3862 = vpop.f32.mrf.mxu0
    %v3863 = vadd.f32 0.0, %v3862
    %3864 = vmatmul.f32.gmra.mxu0 %v1906
    %v3865 = vpop.f32.mrf.mxu0
    %v3866 = vadd.f32 0.0, %v3865
    %3867 = vmatmul.f32.gmra.mxu0 %v1908
    %v3868 = vpop.f32.mrf.mxu0
    %v3869 = vadd.f32 0.0, %v3868
    %3870 = vmatmul.f32.gmra.mxu0 %v1910
    %v3871 = vpop.f32.mrf.mxu0
    %v3872 = vadd.f32 0.0, %v3871
    %3873 = vmatmul.f32.gmra.mxu0 %v1912
    %v3874 = vpop.f32.mrf.mxu0
    %v3875 = vadd.f32 0.0, %v3874
    %3876 = vmatmul.f32.gmra.mxu0 %v1914
    %v3877 = vpop.f32.mrf.mxu0
    %v3878 = vadd.f32 0.0, %v3877
    %3879 = vmatmul.f32.gmra.mxu0 %v1916
    %v3880 = vpop.f32.mrf.mxu0
    %v3881 = vadd.f32 0.0, %v3880
    %3882 = vmatmul.f32.gmra.mxu0 %v3675
    %v3883 = vpop.f32.mrf.mxu0
    %v3884 = vadd.f32 0.0, %v3883
    %3885 = vdwg.mxu0
    %3886 = vmatpush.msra.mxu0 0.0
    %3887 = vmatpush.msra.mxu0 0.0
    %3888 = vmatpush.msra.mxu0 0.0
    %3889 = vmatpush.msra.mxu0 0.0
    %3890 = vmatpush.msra.mxu0 0.0
    %3891 = vmatpush.msra.mxu0 0.0
    %3892 = vmatpush.msra.mxu0 0.0
    %3893 = vmatpush.msra.mxu0 0.0
    %3894 = vmatpush.msra.mxu0 0.0
    %3895 = vmatpush.msra.mxu0 0.0
    %3896 = vmatpush.msra.mxu0 0.0
    %3897 = vmatpush.msra.mxu0 0.0
    %3898 = vmatpush.msra.mxu0 0.0
    %3899 = vmatpush.msra.mxu0 0.0
    %3900 = vmatpush.msra.mxu0 0.0
    %3901 = vmatpush.msra.mxu0 %v3660
    %3902 = vmatmul.f32.gmra.mxu0 %v1792
    %v3903 = vpop.f32.mrf.mxu0
    %v3904 = vadd.f32 0.0, %v3903
    %3905 = vmatmul.f32.gmra.mxu0 %v1794
    %v3906 = vpop.f32.mrf.mxu0
    %v3907 = vadd.f32 0.0, %v3906
    %3908 = vmatmul.f32.gmra.mxu0 %v1796
    %v3909 = vpop.f32.mrf.mxu0
    %v3910 = vadd.f32 0.0, %v3909
    %3911 = vmatmul.f32.gmra.mxu0 %v1798
    %v3912 = vpop.f32.mrf.mxu0
    %v3913 = vadd.f32 0.0, %v3912
    %3914 = vmatmul.f32.gmra.mxu0 %v1800
    %v3915 = vpop.f32.mrf.mxu0
    %v3916 = vadd.f32 0.0, %v3915
    %3917 = vmatmul.f32.gmra.mxu0 %v1802
    %v3918 = vpop.f32.mrf.mxu0
    %v3919 = vadd.f32 0.0, %v3918
    %3920 = vmatmul.f32.gmra.mxu0 %v1804
    %v3921 = vpop.f32.mrf.mxu0
    %v3922 = vadd.f32 0.0, %v3921
    %3923 = vmatmul.f32.gmra.mxu0 %v3661
    %v3924 = vpop.f32.mrf.mxu0
    %v3925 = vadd.f32 0.0, %v3924
    %3926 = vmatmul.f32.gmra.mxu0 %v1808
    %v3927 = vpop.f32.mrf.mxu0
    %v3928 = vadd.f32 0.0, %v3927
    %3929 = vmatmul.f32.gmra.mxu0 %v1810
    %v3930 = vpop.f32.mrf.mxu0
    %v3931 = vadd.f32 0.0, %v3930
    %3932 = vmatmul.f32.gmra.mxu0 %v1812
    %v3933 = vpop.f32.mrf.mxu0
    %v3934 = vadd.f32 0.0, %v3933
    %3935 = vmatmul.f32.gmra.mxu0 %v1814
    %v3936 = vpop.f32.mrf.mxu0
    %v3937 = vadd.f32 0.0, %v3936
    %3938 = vmatmul.f32.gmra.mxu0 %v1816
    %v3939 = vpop.f32.mrf.mxu0
    %v3940 = vadd.f32 0.0, %v3939
    %3941 = vmatmul.f32.gmra.mxu0 %v1818
    %v3942 = vpop.f32.mrf.mxu0
    %v3943 = vadd.f32 0.0, %v3942
    %3944 = vmatmul.f32.gmra.mxu0 %v1820
    %v3945 = vpop.f32.mrf.mxu0
    %v3946 = vadd.f32 0.0, %v3945
    %3947 = vmatmul.f32.gmra.mxu0 %v3663
    %v3948 = vpop.f32.mrf.mxu0
    %v3949 = vadd.f32 0.0, %v3948
    %3950 = vmatmul.f32.gmra.mxu0 %v1824
    %v3951 = vpop.f32.mrf.mxu0
    %v3952 = vadd.f32 0.0, %v3951
    %3953 = vmatmul.f32.gmra.mxu0 %v1826
    %v3954 = vpop.f32.mrf.mxu0
    %v3955 = vadd.f32 0.0, %v3954
    %3956 = vmatmul.f32.gmra.mxu0 %v1828
    %v3957 = vpop.f32.mrf.mxu0
    %v3958 = vadd.f32 0.0, %v3957
    %3959 = vmatmul.f32.gmra.mxu0 %v1830
    %v3960 = vpop.f32.mrf.mxu0
    %v3961 = vadd.f32 0.0, %v3960
    %3962 = vmatmul.f32.gmra.mxu0 %v1832
    %v3963 = vpop.f32.mrf.mxu0
    %v3964 = vadd.f32 0.0, %v3963
    %3965 = vmatmul.f32.gmra.mxu0 %v1834
    %v3966 = vpop.f32.mrf.mxu0
    %v3967 = vadd.f32 0.0, %v3966
    %3968 = vmatmul.f32.gmra.mxu0 %v1836
    %v3969 = vpop.f32.mrf.mxu0
    %v3970 = vadd.f32 0.0, %v3969
    %3971 = vmatmul.f32.gmra.mxu0 %v3665
    %v3972 = vpop.f32.mrf.mxu0
    %v3973 = vadd.f32 0.0, %v3972
    %3974 = vmatmul.f32.gmra.mxu0 %v1840
    %v3975 = vpop.f32.mrf.mxu0
    %v3976 = vadd.f32 0.0, %v3975
    %3977 = vmatmul.f32.gmra.mxu0 %v1842
    %v3978 = vpop.f32.mrf.mxu0
    %v3979 = vadd.f32 0.0, %v3978
    %3980 = vmatmul.f32.gmra.mxu0 %v1844
    %v3981 = vpop.f32.mrf.mxu0
    %v3982 = vadd.f32 0.0, %v3981
    %3983 = vmatmul.f32.gmra.mxu0 %v1846
    %v3984 = vpop.f32.mrf.mxu0
    %v3985 = vadd.f32 0.0, %v3984
    %3986 = vmatmul.f32.gmra.mxu0 %v1848
    %v3987 = vpop.f32.mrf.mxu0
    %v3988 = vadd.f32 0.0, %v3987
    %3989 = vmatmul.f32.gmra.mxu0 %v1850
    %v3990 = vpop.f32.mrf.mxu0
    %v3991 = vadd.f32 0.0, %v3990
    %3992 = vmatmul.f32.gmra.mxu0 %v1852
    %v3993 = vpop.f32.mrf.mxu0
    %v3994 = vadd.f32 0.0, %v3993
    %3995 = vmatmul.f32.gmra.mxu0 %v3667
    %v3996 = vpop.f32.mrf.mxu0
    %v3997 = vadd.f32 0.0, %v3996
    %3998 = vmatmul.f32.gmra.mxu0 %v1856
    %v3999 = vpop.f32.mrf.mxu0
    %v4000 = vadd.f32 0.0, %v3999
    %4001 = vmatmul.f32.gmra.mxu0 %v1858
    %v4002 = vpop.f32.mrf.mxu0
    %v4003 = vadd.f32 0.0, %v4002
    %4004 = vmatmul.f32.gmra.mxu0 %v1860
    %v4005 = vpop.f32.mrf.mxu0
    %v4006 = vadd.f32 0.0, %v4005
    %4007 = vmatmul.f32.gmra.mxu0 %v1862
    %v4008 = vpop.f32.mrf.mxu0
    %v4009 = vadd.f32 0.0, %v4008
    %4010 = vmatmul.f32.gmra.mxu0 %v1864
    %v4011 = vpop.f32.mrf.mxu0
    %v4012 = vadd.f32 0.0, %v4011
    %4013 = vmatmul.f32.gmra.mxu0 %v1866
    %v4014 = vpop.f32.mrf.mxu0
    %v4015 = vadd.f32 0.0, %v4014
    %4016 = vmatmul.f32.gmra.mxu0 %v1868
    %v4017 = vpop.f32.mrf.mxu0
    %v4018 = vadd.f32 0.0, %v4017
    %4019 = vmatmul.f32.gmra.mxu0 %v3669
    %v4020 = vpop.f32.mrf.mxu0
    %v4021 = vadd.f32 0.0, %v4020
    %4022 = vmatmul.f32.gmra.mxu0 %v1872
    %v4023 = vpop.f32.mrf.mxu0
    %v4024 = vadd.f32 0.0, %v4023
    %4025 = vmatmul.f32.gmra.mxu0 %v1874
    %v4026 = vpop.f32.mrf.mxu0
    %v4027 = vadd.f32 0.0, %v4026
    %4028 = vmatmul.f32.gmra.mxu0 %v1876
    %v4029 = vpop.f32.mrf.mxu0
    %v4030 = vadd.f32 0.0, %v4029
    %4031 = vmatmul.f32.gmra.mxu0 %v1878
    %v4032 = vpop.f32.mrf.mxu0
    %v4033 = vadd.f32 0.0, %v4032
    %4034 = vmatmul.f32.gmra.mxu0 %v1880
    %v4035 = vpop.f32.mrf.mxu0
    %v4036 = vadd.f32 0.0, %v4035
    %4037 = vmatmul.f32.gmra.mxu0 %v1882
    %v4038 = vpop.f32.mrf.mxu0
    %v4039 = vadd.f32 0.0, %v4038
    %4040 = vmatmul.f32.gmra.mxu0 %v1884
    %v4041 = vpop.f32.mrf.mxu0
    %v4042 = vadd.f32 0.0, %v4041
    %4043 = vmatmul.f32.gmra.mxu0 %v3671
    %v4044 = vpop.f32.mrf.mxu0
    %v4045 = vadd.f32 0.0, %v4044
    %4046 = vmatmul.f32.gmra.mxu0 %v1888
    %v4047 = vpop.f32.mrf.mxu0
    %v4048 = vadd.f32 0.0, %v4047
    %4049 = vmatmul.f32.gmra.mxu0 %v1890
    %v4050 = vpop.f32.mrf.mxu0
    %v4051 = vadd.f32 0.0, %v4050
    %4052 = vmatmul.f32.gmra.mxu0 %v1892
    %v4053 = vpop.f32.mrf.mxu0
    %v4054 = vadd.f32 0.0, %v4053
    %4055 = vmatmul.f32.gmra.mxu0 %v1894
    %v4056 = vpop.f32.mrf.mxu0
    %v4057 = vadd.f32 0.0, %v4056
    %4058 = vmatmul.f32.gmra.mxu0 %v1896
    %v4059 = vpop.f32.mrf.mxu0
    %v4060 = vadd.f32 0.0, %v4059
    %4061 = vmatmul.f32.gmra.mxu0 %v1898
    %v4062 = vpop.f32.mrf.mxu0
    %v4063 = vadd.f32 0.0, %v4062
    %4064 = vmatmul.f32.gmra.mxu0 %v1900
    %v4065 = vpop.f32.mrf.mxu0
    %v4066 = vadd.f32 0.0, %v4065
    %4067 = vmatmul.f32.gmra.mxu0 %v3673
    %v4068 = vpop.f32.mrf.mxu0
    %v4069 = vadd.f32 0.0, %v4068
    %4070 = vmatmul.f32.gmra.mxu0 %v1904
    %v4071 = vpop.f32.mrf.mxu0
    %v4072 = vadd.f32 0.0, %v4071
    %4073 = vmatmul.f32.gmra.mxu0 %v1906
    %v4074 = vpop.f32.mrf.mxu0
    %v4075 = vadd.f32 0.0, %v4074
    %4076 = vmatmul.f32.gmra.mxu0 %v1908
    %v4077 = vpop.f32.mrf.mxu0
    %v4078 = vadd.f32 0.0, %v4077
    %4079 = vmatmul.f32.gmra.mxu0 %v1910
    %v4080 = vpop.f32.mrf.mxu0
    %v4081 = vadd.f32 0.0, %v4080
    %4082 = vmatmul.f32.gmra.mxu0 %v1912
    %v4083 = vpop.f32.mrf.mxu0
    %v4084 = vadd.f32 0.0, %v4083
    %4085 = vmatmul.f32.gmra.mxu0 %v1914
    %v4086 = vpop.f32.mrf.mxu0
    %v4087 = vadd.f32 0.0, %v4086
    %4088 = vmatmul.f32.gmra.mxu0 %v1916
    %v4089 = vpop.f32.mrf.mxu0
    %v4090 = vadd.f32 0.0, %v4089
    %4091 = vmatmul.f32.gmra.mxu0 %v3675
    %v4092 = vpop.f32.mrf.mxu0
    %v4093 = vadd.f32 0.0, %v4092
    %4094 = vdwg.mxu0
    %v4095 = vadd.f32 %v3506, %v3695
    %v4096 = vadd.f32 %v3507, %v3904
    %v4097 = vadd.f32 %v3508, %v3698
    %v4098 = vadd.f32 %v3509, %v3907
    %v4099 = vadd.f32 %v3510, %v3701
    %v4100 = vadd.f32 %v3511, %v3910
    %v4101 = vadd.f32 %v3512, %v3704
    %v4102 = vadd.f32 %v3513, %v3913
    %v4103 = vadd.f32 %v3514, %v3707
    %v4104 = vadd.f32 %v3515, %v3916
    %v4105 = vadd.f32 %v3516, %v3710
    %v4106 = vadd.f32 %v3517, %v3919
    %v4107 = vadd.f32 %v3518, %v3713
    %v4108 = vadd.f32 %v3519, %v3922
    %v4109 = vadd.f32 %v3520, %v3716
    %v4110 = vadd.f32 %v3521, %v3925
    %v4111 = vadd.f32 %v3522, %v3719
    %v4112 = vadd.f32 %v3523, %v3928
    %v4113 = vadd.f32 %v3524, %v3722
    %v4114 = vadd.f32 %v3525, %v3931
    %v4115 = vadd.f32 %v3526, %v3725
    %v4116 = vadd.f32 %v3527, %v3934
    %v4117 = vadd.f32 %v3528, %v3728
    %v4118 = vadd.f32 %v3529, %v3937
    %v4119 = vadd.f32 %v3530, %v3731
    %v4120 = vadd.f32 %v3531, %v3940
    %v4121 = vadd.f32 %v3532, %v3734
    %v4122 = vadd.f32 %v3533, %v3943
    %v4123 = vadd.f32 %v3534, %v3737
    %v4124 = vadd.f32 %v3535, %v3946
    %v4125 = vadd.f32 %v3536, %v3740
    %v4126 = vadd.f32 %v3537, %v3949
    %v4127 = vadd.f32 %v3538, %v3743
    %v4128 = vadd.f32 %v3539, %v3952
    %v4129 = vadd.f32 %v3540, %v3746
    %v4130 = vadd.f32 %v3541, %v3955
    %v4131 = vadd.f32 %v3542, %v3749
    %v4132 = vadd.f32 %v3543, %v3958
    %v4133 = vadd.f32 %v3544, %v3752
    %v4134 = vadd.f32 %v3545, %v3961
    %v4135 = vadd.f32 %v3546, %v3755
    %v4136 = vadd.f32 %v3547, %v3964
    %v4137 = vadd.f32 %v3548, %v3758
    %v4138 = vadd.f32 %v3549, %v3967
    %v4139 = vadd.f32 %v3550, %v3761
    %v4140 = vadd.f32 %v3551, %v3970
    %v4141 = vadd.f32 %v3552, %v3764
    %v4142 = vadd.f32 %v3553, %v3973
    %v4143 = vadd.f32 %v3554, %v3767
    %v4144 = vadd.f32 %v3555, %v3976
    %v4145 = vadd.f32 %v3556, %v3770
    %v4146 = vadd.f32 %v3557, %v3979
    %v4147 = vadd.f32 %v3558, %v3773
    %v4148 = vadd.f32 %v3559, %v3982
    %v4149 = vadd.f32 %v3560, %v3776
    %v4150 = vadd.f32 %v3561, %v3985
    %v4151 = vadd.f32 %v3562, %v3779
    %v4152 = vadd.f32 %v3563, %v3988
    %v4153 = vadd.f32 %v3564, %v3782
    %v4154 = vadd.f32 %v3565, %v3991
    %v4155 = vadd.f32 %v3566, %v3785
    %v4156 = vadd.f32 %v3567, %v3994
    %v4157 = vadd.f32 %v3568, %v3788
    %v4158 = vadd.f32 %v3569, %v3997
    %v4159 = vadd.f32 %v3570, %v3791
    %v4160 = vadd.f32 %v3571, %v4000
    %v4161 = vadd.f32 %v3572, %v3794
    %v4162 = vadd.f32 %v3573, %v4003
    %v4163 = vadd.f32 %v3574, %v3797
    %v4164 = vadd.f32 %v3575, %v4006
    %v4165 = vadd.f32 %v3576, %v3800
    %v4166 = vadd.f32 %v3577, %v4009
    %v4167 = vadd.f32 %v3578, %v3803
    %v4168 = vadd.f32 %v3579, %v4012
    %v4169 = vadd.f32 %v3580, %v3806
    %v4170 = vadd.f32 %v3581, %v4015
    %v4171 = vadd.f32 %v3582, %v3809
    %v4172 = vadd.f32 %v3583, %v4018
    %v4173 = vadd.f32 %v3584, %v3812
    %v4174 = vadd.f32 %v3585, %v4021
    %v4175 = vadd.f32 %v3586, %v3815
    %v4176 = vadd.f32 %v3587, %v4024
    %v4177 = vadd.f32 %v3588, %v3818
    %v4178 = vadd.f32 %v3589, %v4027
    %v4179 = vadd.f32 %v3590, %v3821
    %v4180 = vadd.f32 %v3591, %v4030
    %v4181 = vadd.f32 %v3592, %v3824
    %v4182 = vadd.f32 %v3593, %v4033
    %v4183 = vadd.f32 %v3594, %v3827
    %v4184 = vadd.f32 %v3595, %v4036
    %v4185 = vadd.f32 %v3596, %v3830
    %v4186 = vadd.f32 %v3597, %v4039
    %v4187 = vadd.f32 %v3598, %v3833
    %v4188 = vadd.f32 %v3599, %v4042
    %v4189 = vadd.f32 %v3600, %v3836
    %v4190 = vadd.f32 %v3601, %v4045
    %v4191 = vadd.f32 %v3602, %v3839
    %v4192 = vadd.f32 %v3603, %v4048
    %v4193 = vadd.f32 %v3604, %v3842
    %v4194 = vadd.f32 %v3605, %v4051
    %v4195 = vadd.f32 %v3606, %v3845
    %v4196 = vadd.f32 %v3607, %v4054
    %v4197 = vadd.f32 %v3608, %v3848
    %v4198 = vadd.f32 %v3609, %v4057
    %v4199 = vadd.f32 %v3610, %v3851
    %v4200 = vadd.f32 %v3611, %v4060
    %v4201 = vadd.f32 %v3612, %v3854
    %v4202 = vadd.f32 %v3613, %v4063
    %v4203 = vadd.f32 %v3614, %v3857
    %v4204 = vadd.f32 %v3615, %v4066
    %v4205 = vadd.f32 %v3616, %v3860
    %v4206 = vadd.f32 %v3617, %v4069
    %v4207 = vadd.f32 %v3618, %v3863
    %v4208 = vadd.f32 %v3619, %v4072
    %v4209 = vadd.f32 %v3620, %v3866
    %v4210 = vadd.f32 %v3621, %v4075
    %v4211 = vadd.f32 %v3622, %v3869
    %v4212 = vadd.f32 %v3623, %v4078
    %v4213 = vadd.f32 %v3624, %v3872
    %v4214 = vadd.f32 %v3625, %v4081
    %v4215 = vadd.f32 %v3626, %v3875
    %v4216 = vadd.f32 %v3627, %v4084
    %v4217 = vadd.f32 %v3628, %v3878
    %v4218 = vadd.f32 %v3629, %v4087
    %v4219 = vadd.f32 %v3630, %v3881
    %v4220 = vadd.f32 %v3631, %v4090
    %v4221 = vadd.f32 %v3632, %v3884
    %v4222 = vadd.f32 %v3633, %v4093
    %s4223 = scalar_lea.vmem %s1, 96
    %v4224 = vld [vmem:[%s4223] sm:$0xff]
    %v4225 = vld [vmem:[%s4223 + $0x8] sm:$0xff]
    %v4227 = vsel %vm501, %v33, 0
    %v4230 = vsel %vm501, %v53, 0
    %v4233 = vsel %vm501, %v73, 0
    %v4236 = vsel %vm501, %v93, 0
    %v4239 = vsel %vm501, %v113, 0
    %v4242 = vsel %vm501, %v133, 0
    %v4245 = vsel %vm501, %v153, 0
    %v4248 = vsel %vm501, %v173, 0
    %4250 = vmatpush.msra.mxu0 0.0
    %4251 = vmatpush.msra.mxu0 0.0
    %4252 = vmatpush.msra.mxu0 0.0
    %4253 = vmatpush.msra.mxu0 0.0
    %4254 = vmatpush.msra.mxu0 0.0
    %4255 = vmatpush.msra.mxu0 0.0
    %4256 = vmatpush.msra.mxu0 0.0
    %4257 = vmatpush.msra.mxu0 0.0
    %4258 = vmatpush.msra.mxu0 0.0
    %4259 = vmatpush.msra.mxu0 0.0
    %4260 = vmatpush.msra.mxu0 0.0
    %4261 = vmatpush.msra.mxu0 0.0
    %4262 = vmatpush.msra.mxu0 0.0
    %4263 = vmatpush.msra.mxu0 0.0
    %4264 = vmatpush.msra.mxu0 0.0
    %4265 = vmatpush.msra.mxu0 %v4224
    %4266 = vmatmul.f32.gmra.mxu0 %v1052
    %v4267 = vpop.f32.mrf.mxu0
    %v4268 = vadd.f32 0.0, %v4267
    %4269 = vmatmul.f32.gmra.mxu0 %v1054
    %v4270 = vpop.f32.mrf.mxu0
    %v4271 = vadd.f32 0.0, %v4270
    %4272 = vmatmul.f32.gmra.mxu0 %v1056
    %v4273 = vpop.f32.mrf.mxu0
    %v4274 = vadd.f32 0.0, %v4273
    %4275 = vmatmul.f32.gmra.mxu0 %v1058
    %v4276 = vpop.f32.mrf.mxu0
    %v4277 = vadd.f32 0.0, %v4276
    %4278 = vmatmul.f32.gmra.mxu0 %v1060
    %v4279 = vpop.f32.mrf.mxu0
    %v4280 = vadd.f32 0.0, %v4279
    %4281 = vmatmul.f32.gmra.mxu0 %v1062
    %v4282 = vpop.f32.mrf.mxu0
    %v4283 = vadd.f32 0.0, %v4282
    %4284 = vmatmul.f32.gmra.mxu0 %v2468
    %v4285 = vpop.f32.mrf.mxu0
    %v4286 = vadd.f32 0.0, %v4285
    %4287 = vmatmul.f32.gmra.mxu0 %v4227
    %v4288 = vpop.f32.mrf.mxu0
    %v4289 = vadd.f32 0.0, %v4288
    %4290 = vmatmul.f32.gmra.mxu0 %v1068
    %v4291 = vpop.f32.mrf.mxu0
    %v4292 = vadd.f32 0.0, %v4291
    %4293 = vmatmul.f32.gmra.mxu0 %v1070
    %v4294 = vpop.f32.mrf.mxu0
    %v4295 = vadd.f32 0.0, %v4294
    %4296 = vmatmul.f32.gmra.mxu0 %v1072
    %v4297 = vpop.f32.mrf.mxu0
    %v4298 = vadd.f32 0.0, %v4297
    %4299 = vmatmul.f32.gmra.mxu0 %v1074
    %v4300 = vpop.f32.mrf.mxu0
    %v4301 = vadd.f32 0.0, %v4300
    %4302 = vmatmul.f32.gmra.mxu0 %v1076
    %v4303 = vpop.f32.mrf.mxu0
    %v4304 = vadd.f32 0.0, %v4303
    %4305 = vmatmul.f32.gmra.mxu0 %v1078
    %v4306 = vpop.f32.mrf.mxu0
    %v4307 = vadd.f32 0.0, %v4306
    %4308 = vmatmul.f32.gmra.mxu0 %v2471
    %v4309 = vpop.f32.mrf.mxu0
    %v4310 = vadd.f32 0.0, %v4309
    %4311 = vmatmul.f32.gmra.mxu0 %v4230
    %v4312 = vpop.f32.mrf.mxu0
    %v4313 = vadd.f32 0.0, %v4312
    %4314 = vmatmul.f32.gmra.mxu0 %v1084
    %v4315 = vpop.f32.mrf.mxu0
    %v4316 = vadd.f32 0.0, %v4315
    %4317 = vmatmul.f32.gmra.mxu0 %v1086
    %v4318 = vpop.f32.mrf.mxu0
    %v4319 = vadd.f32 0.0, %v4318
    %4320 = vmatmul.f32.gmra.mxu0 %v1088
    %v4321 = vpop.f32.mrf.mxu0
    %v4322 = vadd.f32 0.0, %v4321
    %4323 = vmatmul.f32.gmra.mxu0 %v1090
    %v4324 = vpop.f32.mrf.mxu0
    %v4325 = vadd.f32 0.0, %v4324
    %4326 = vmatmul.f32.gmra.mxu0 %v1092
    %v4327 = vpop.f32.mrf.mxu0
    %v4328 = vadd.f32 0.0, %v4327
    %4329 = vmatmul.f32.gmra.mxu0 %v1094
    %v4330 = vpop.f32.mrf.mxu0
    %v4331 = vadd.f32 0.0, %v4330
    %4332 = vmatmul.f32.gmra.mxu0 %v2474
    %v4333 = vpop.f32.mrf.mxu0
    %v4334 = vadd.f32 0.0, %v4333
    %4335 = vmatmul.f32.gmra.mxu0 %v4233
    %v4336 = vpop.f32.mrf.mxu0
    %v4337 = vadd.f32 0.0, %v4336
    %4338 = vmatmul.f32.gmra.mxu0 %v1100
    %v4339 = vpop.f32.mrf.mxu0
    %v4340 = vadd.f32 0.0, %v4339
    %4341 = vmatmul.f32.gmra.mxu0 %v1102
    %v4342 = vpop.f32.mrf.mxu0
    %v4343 = vadd.f32 0.0, %v4342
    %4344 = vmatmul.f32.gmra.mxu0 %v1104
    %v4345 = vpop.f32.mrf.mxu0
    %v4346 = vadd.f32 0.0, %v4345
    %4347 = vmatmul.f32.gmra.mxu0 %v1106
    %v4348 = vpop.f32.mrf.mxu0
    %v4349 = vadd.f32 0.0, %v4348
    %4350 = vmatmul.f32.gmra.mxu0 %v1108
    %v4351 = vpop.f32.mrf.mxu0
    %v4352 = vadd.f32 0.0, %v4351
    %4353 = vmatmul.f32.gmra.mxu0 %v1110
    %v4354 = vpop.f32.mrf.mxu0
    %v4355 = vadd.f32 0.0, %v4354
    %4356 = vmatmul.f32.gmra.mxu0 %v2477
    %v4357 = vpop.f32.mrf.mxu0
    %v4358 = vadd.f32 0.0, %v4357
    %4359 = vmatmul.f32.gmra.mxu0 %v4236
    %v4360 = vpop.f32.mrf.mxu0
    %v4361 = vadd.f32 0.0, %v4360
    %4362 = vmatmul.f32.gmra.mxu0 %v1116
    %v4363 = vpop.f32.mrf.mxu0
    %v4364 = vadd.f32 0.0, %v4363
    %4365 = vmatmul.f32.gmra.mxu0 %v1118
    %v4366 = vpop.f32.mrf.mxu0
    %v4367 = vadd.f32 0.0, %v4366
    %4368 = vmatmul.f32.gmra.mxu0 %v1120
    %v4369 = vpop.f32.mrf.mxu0
    %v4370 = vadd.f32 0.0, %v4369
    %4371 = vmatmul.f32.gmra.mxu0 %v1122
    %v4372 = vpop.f32.mrf.mxu0
    %v4373 = vadd.f32 0.0, %v4372
    %4374 = vmatmul.f32.gmra.mxu0 %v1124
    %v4375 = vpop.f32.mrf.mxu0
    %v4376 = vadd.f32 0.0, %v4375
    %4377 = vmatmul.f32.gmra.mxu0 %v1126
    %v4378 = vpop.f32.mrf.mxu0
    %v4379 = vadd.f32 0.0, %v4378
    %4380 = vmatmul.f32.gmra.mxu0 %v2480
    %v4381 = vpop.f32.mrf.mxu0
    %v4382 = vadd.f32 0.0, %v4381
    %4383 = vmatmul.f32.gmra.mxu0 %v4239
    %v4384 = vpop.f32.mrf.mxu0
    %v4385 = vadd.f32 0.0, %v4384
    %4386 = vmatmul.f32.gmra.mxu0 %v1132
    %v4387 = vpop.f32.mrf.mxu0
    %v4388 = vadd.f32 0.0, %v4387
    %4389 = vmatmul.f32.gmra.mxu0 %v1134
    %v4390 = vpop.f32.mrf.mxu0
    %v4391 = vadd.f32 0.0, %v4390
    %4392 = vmatmul.f32.gmra.mxu0 %v1136
    %v4393 = vpop.f32.mrf.mxu0
    %v4394 = vadd.f32 0.0, %v4393
    %4395 = vmatmul.f32.gmra.mxu0 %v1138
    %v4396 = vpop.f32.mrf.mxu0
    %v4397 = vadd.f32 0.0, %v4396
    %4398 = vmatmul.f32.gmra.mxu0 %v1140
    %v4399 = vpop.f32.mrf.mxu0
    %v4400 = vadd.f32 0.0, %v4399
    %4401 = vmatmul.f32.gmra.mxu0 %v1142
    %v4402 = vpop.f32.mrf.mxu0
    %v4403 = vadd.f32 0.0, %v4402
    %4404 = vmatmul.f32.gmra.mxu0 %v2483
    %v4405 = vpop.f32.mrf.mxu0
    %v4406 = vadd.f32 0.0, %v4405
    %4407 = vmatmul.f32.gmra.mxu0 %v4242
    %v4408 = vpop.f32.mrf.mxu0
    %v4409 = vadd.f32 0.0, %v4408
    %4410 = vmatmul.f32.gmra.mxu0 %v1148
    %v4411 = vpop.f32.mrf.mxu0
    %v4412 = vadd.f32 0.0, %v4411
    %4413 = vmatmul.f32.gmra.mxu0 %v1150
    %v4414 = vpop.f32.mrf.mxu0
    %v4415 = vadd.f32 0.0, %v4414
    %4416 = vmatmul.f32.gmra.mxu0 %v1152
    %v4417 = vpop.f32.mrf.mxu0
    %v4418 = vadd.f32 0.0, %v4417
    %4419 = vmatmul.f32.gmra.mxu0 %v1154
    %v4420 = vpop.f32.mrf.mxu0
    %v4421 = vadd.f32 0.0, %v4420
    %4422 = vmatmul.f32.gmra.mxu0 %v1156
    %v4423 = vpop.f32.mrf.mxu0
    %v4424 = vadd.f32 0.0, %v4423
    %4425 = vmatmul.f32.gmra.mxu0 %v1158
    %v4426 = vpop.f32.mrf.mxu0
    %v4427 = vadd.f32 0.0, %v4426
    %4428 = vmatmul.f32.gmra.mxu0 %v2486
    %v4429 = vpop.f32.mrf.mxu0
    %v4430 = vadd.f32 0.0, %v4429
    %4431 = vmatmul.f32.gmra.mxu0 %v4245
    %v4432 = vpop.f32.mrf.mxu0
    %v4433 = vadd.f32 0.0, %v4432
    %4434 = vmatmul.f32.gmra.mxu0 %v1164
    %v4435 = vpop.f32.mrf.mxu0
    %v4436 = vadd.f32 0.0, %v4435
    %4437 = vmatmul.f32.gmra.mxu0 %v1166
    %v4438 = vpop.f32.mrf.mxu0
    %v4439 = vadd.f32 0.0, %v4438
    %4440 = vmatmul.f32.gmra.mxu0 %v1168
    %v4441 = vpop.f32.mrf.mxu0
    %v4442 = vadd.f32 0.0, %v4441
    %4443 = vmatmul.f32.gmra.mxu0 %v1170
    %v4444 = vpop.f32.mrf.mxu0
    %v4445 = vadd.f32 0.0, %v4444
    %4446 = vmatmul.f32.gmra.mxu0 %v1172
    %v4447 = vpop.f32.mrf.mxu0
    %v4448 = vadd.f32 0.0, %v4447
    %4449 = vmatmul.f32.gmra.mxu0 %v1174
    %v4450 = vpop.f32.mrf.mxu0
    %v4451 = vadd.f32 0.0, %v4450
    %4452 = vmatmul.f32.gmra.mxu0 %v2489
    %v4453 = vpop.f32.mrf.mxu0
    %v4454 = vadd.f32 0.0, %v4453
    %4455 = vmatmul.f32.gmra.mxu0 %v4248
    %v4456 = vpop.f32.mrf.mxu0
    %v4457 = vadd.f32 0.0, %v4456
    %4458 = vdwg.mxu0
    %4459 = vmatpush.msra.mxu0 0.0
    %4460 = vmatpush.msra.mxu0 0.0
    %4461 = vmatpush.msra.mxu0 0.0
    %4462 = vmatpush.msra.mxu0 0.0
    %4463 = vmatpush.msra.mxu0 0.0
    %4464 = vmatpush.msra.mxu0 0.0
    %4465 = vmatpush.msra.mxu0 0.0
    %4466 = vmatpush.msra.mxu0 0.0
    %4467 = vmatpush.msra.mxu0 0.0
    %4468 = vmatpush.msra.mxu0 0.0
    %4469 = vmatpush.msra.mxu0 0.0
    %4470 = vmatpush.msra.mxu0 0.0
    %4471 = vmatpush.msra.mxu0 0.0
    %4472 = vmatpush.msra.mxu0 0.0
    %4473 = vmatpush.msra.mxu0 0.0
    %4474 = vmatpush.msra.mxu0 %v4225
    %4475 = vmatmul.f32.gmra.mxu0 %v1052
    %v4476 = vpop.f32.mrf.mxu0
    %v4477 = vadd.f32 0.0, %v4476
    %4478 = vmatmul.f32.gmra.mxu0 %v1054
    %v4479 = vpop.f32.mrf.mxu0
    %v4480 = vadd.f32 0.0, %v4479
    %4481 = vmatmul.f32.gmra.mxu0 %v1056
    %v4482 = vpop.f32.mrf.mxu0
    %v4483 = vadd.f32 0.0, %v4482
    %4484 = vmatmul.f32.gmra.mxu0 %v1058
    %v4485 = vpop.f32.mrf.mxu0
    %v4486 = vadd.f32 0.0, %v4485
    %4487 = vmatmul.f32.gmra.mxu0 %v1060
    %v4488 = vpop.f32.mrf.mxu0
    %v4489 = vadd.f32 0.0, %v4488
    %4490 = vmatmul.f32.gmra.mxu0 %v1062
    %v4491 = vpop.f32.mrf.mxu0
    %v4492 = vadd.f32 0.0, %v4491
    %4493 = vmatmul.f32.gmra.mxu0 %v2468
    %v4494 = vpop.f32.mrf.mxu0
    %v4495 = vadd.f32 0.0, %v4494
    %4496 = vmatmul.f32.gmra.mxu0 %v4227
    %v4497 = vpop.f32.mrf.mxu0
    %v4498 = vadd.f32 0.0, %v4497
    %4499 = vmatmul.f32.gmra.mxu0 %v1068
    %v4500 = vpop.f32.mrf.mxu0
    %v4501 = vadd.f32 0.0, %v4500
    %4502 = vmatmul.f32.gmra.mxu0 %v1070
    %v4503 = vpop.f32.mrf.mxu0
    %v4504 = vadd.f32 0.0, %v4503
    %4505 = vmatmul.f32.gmra.mxu0 %v1072
    %v4506 = vpop.f32.mrf.mxu0
    %v4507 = vadd.f32 0.0, %v4506
    %4508 = vmatmul.f32.gmra.mxu0 %v1074
    %v4509 = vpop.f32.mrf.mxu0
    %v4510 = vadd.f32 0.0, %v4509
    %4511 = vmatmul.f32.gmra.mxu0 %v1076
    %v4512 = vpop.f32.mrf.mxu0
    %v4513 = vadd.f32 0.0, %v4512
    %4514 = vmatmul.f32.gmra.mxu0 %v1078
    %v4515 = vpop.f32.mrf.mxu0
    %v4516 = vadd.f32 0.0, %v4515
    %4517 = vmatmul.f32.gmra.mxu0 %v2471
    %v4518 = vpop.f32.mrf.mxu0
    %v4519 = vadd.f32 0.0, %v4518
    %4520 = vmatmul.f32.gmra.mxu0 %v4230
    %v4521 = vpop.f32.mrf.mxu0
    %v4522 = vadd.f32 0.0, %v4521
    %4523 = vmatmul.f32.gmra.mxu0 %v1084
    %v4524 = vpop.f32.mrf.mxu0
    %v4525 = vadd.f32 0.0, %v4524
    %4526 = vmatmul.f32.gmra.mxu0 %v1086
    %v4527 = vpop.f32.mrf.mxu0
    %v4528 = vadd.f32 0.0, %v4527
    %4529 = vmatmul.f32.gmra.mxu0 %v1088
    %v4530 = vpop.f32.mrf.mxu0
    %v4531 = vadd.f32 0.0, %v4530
    %4532 = vmatmul.f32.gmra.mxu0 %v1090
    %v4533 = vpop.f32.mrf.mxu0
    %v4534 = vadd.f32 0.0, %v4533
    %4535 = vmatmul.f32.gmra.mxu0 %v1092
    %v4536 = vpop.f32.mrf.mxu0
    %v4537 = vadd.f32 0.0, %v4536
    %4538 = vmatmul.f32.gmra.mxu0 %v1094
    %v4539 = vpop.f32.mrf.mxu0
    %v4540 = vadd.f32 0.0, %v4539
    %4541 = vmatmul.f32.gmra.mxu0 %v2474
    %v4542 = vpop.f32.mrf.mxu0
    %v4543 = vadd.f32 0.0, %v4542
    %4544 = vmatmul.f32.gmra.mxu0 %v4233
    %v4545 = vpop.f32.mrf.mxu0
    %v4546 = vadd.f32 0.0, %v4545
    %4547 = vmatmul.f32.gmra.mxu0 %v1100
    %v4548 = vpop.f32.mrf.mxu0
    %v4549 = vadd.f32 0.0, %v4548
    %4550 = vmatmul.f32.gmra.mxu0 %v1102
    %v4551 = vpop.f32.mrf.mxu0
    %v4552 = vadd.f32 0.0, %v4551
    %4553 = vmatmul.f32.gmra.mxu0 %v1104
    %v4554 = vpop.f32.mrf.mxu0
    %v4555 = vadd.f32 0.0, %v4554
    %4556 = vmatmul.f32.gmra.mxu0 %v1106
    %v4557 = vpop.f32.mrf.mxu0
    %v4558 = vadd.f32 0.0, %v4557
    %4559 = vmatmul.f32.gmra.mxu0 %v1108
    %v4560 = vpop.f32.mrf.mxu0
    %v4561 = vadd.f32 0.0, %v4560
    %4562 = vmatmul.f32.gmra.mxu0 %v1110
    %v4563 = vpop.f32.mrf.mxu0
    %v4564 = vadd.f32 0.0, %v4563
    %4565 = vmatmul.f32.gmra.mxu0 %v2477
    %v4566 = vpop.f32.mrf.mxu0
    %v4567 = vadd.f32 0.0, %v4566
    %4568 = vmatmul.f32.gmra.mxu0 %v4236
    %v4569 = vpop.f32.mrf.mxu0
    %v4570 = vadd.f32 0.0, %v4569
    %4571 = vmatmul.f32.gmra.mxu0 %v1116
    %v4572 = vpop.f32.mrf.mxu0
    %v4573 = vadd.f32 0.0, %v4572
    %4574 = vmatmul.f32.gmra.mxu0 %v1118
    %v4575 = vpop.f32.mrf.mxu0
    %v4576 = vadd.f32 0.0, %v4575
    %4577 = vmatmul.f32.gmra.mxu0 %v1120
    %v4578 = vpop.f32.mrf.mxu0
    %v4579 = vadd.f32 0.0, %v4578
    %4580 = vmatmul.f32.gmra.mxu0 %v1122
    %v4581 = vpop.f32.mrf.mxu0
    %v4582 = vadd.f32 0.0, %v4581
    %4583 = vmatmul.f32.gmra.mxu0 %v1124
    %v4584 = vpop.f32.mrf.mxu0
    %v4585 = vadd.f32 0.0, %v4584
    %4586 = vmatmul.f32.gmra.mxu0 %v1126
    %v4587 = vpop.f32.mrf.mxu0
    %v4588 = vadd.f32 0.0, %v4587
    %4589 = vmatmul.f32.gmra.mxu0 %v2480
    %v4590 = vpop.f32.mrf.mxu0
    %v4591 = vadd.f32 0.0, %v4590
    %4592 = vmatmul.f32.gmra.mxu0 %v4239
    %v4593 = vpop.f32.mrf.mxu0
    %v4594 = vadd.f32 0.0, %v4593
    %4595 = vmatmul.f32.gmra.mxu0 %v1132
    %v4596 = vpop.f32.mrf.mxu0
    %v4597 = vadd.f32 0.0, %v4596
    %4598 = vmatmul.f32.gmra.mxu0 %v1134
    %v4599 = vpop.f32.mrf.mxu0
    %v4600 = vadd.f32 0.0, %v4599
    %4601 = vmatmul.f32.gmra.mxu0 %v1136
    %v4602 = vpop.f32.mrf.mxu0
    %v4603 = vadd.f32 0.0, %v4602
    %4604 = vmatmul.f32.gmra.mxu0 %v1138
    %v4605 = vpop.f32.mrf.mxu0
    %v4606 = vadd.f32 0.0, %v4605
    %4607 = vmatmul.f32.gmra.mxu0 %v1140
    %v4608 = vpop.f32.mrf.mxu0
    %v4609 = vadd.f32 0.0, %v4608
    %4610 = vmatmul.f32.gmra.mxu0 %v1142
    %v4611 = vpop.f32.mrf.mxu0
    %v4612 = vadd.f32 0.0, %v4611
    %4613 = vmatmul.f32.gmra.mxu0 %v2483
    %v4614 = vpop.f32.mrf.mxu0
    %v4615 = vadd.f32 0.0, %v4614
    %4616 = vmatmul.f32.gmra.mxu0 %v4242
    %v4617 = vpop.f32.mrf.mxu0
    %v4618 = vadd.f32 0.0, %v4617
    %4619 = vmatmul.f32.gmra.mxu0 %v1148
    %v4620 = vpop.f32.mrf.mxu0
    %v4621 = vadd.f32 0.0, %v4620
    %4622 = vmatmul.f32.gmra.mxu0 %v1150
    %v4623 = vpop.f32.mrf.mxu0
    %v4624 = vadd.f32 0.0, %v4623
    %4625 = vmatmul.f32.gmra.mxu0 %v1152
    %v4626 = vpop.f32.mrf.mxu0
    %v4627 = vadd.f32 0.0, %v4626
    %4628 = vmatmul.f32.gmra.mxu0 %v1154
    %v4629 = vpop.f32.mrf.mxu0
    %v4630 = vadd.f32 0.0, %v4629
    %4631 = vmatmul.f32.gmra.mxu0 %v1156
    %v4632 = vpop.f32.mrf.mxu0
    %v4633 = vadd.f32 0.0, %v4632
    %4634 = vmatmul.f32.gmra.mxu0 %v1158
    %v4635 = vpop.f32.mrf.mxu0
    %v4636 = vadd.f32 0.0, %v4635
    %4637 = vmatmul.f32.gmra.mxu0 %v2486
    %v4638 = vpop.f32.mrf.mxu0
    %v4639 = vadd.f32 0.0, %v4638
    %4640 = vmatmul.f32.gmra.mxu0 %v4245
    %v4641 = vpop.f32.mrf.mxu0
    %v4642 = vadd.f32 0.0, %v4641
    %4643 = vmatmul.f32.gmra.mxu0 %v1164
    %v4644 = vpop.f32.mrf.mxu0
    %v4645 = vadd.f32 0.0, %v4644
    %4646 = vmatmul.f32.gmra.mxu0 %v1166
    %v4647 = vpop.f32.mrf.mxu0
    %v4648 = vadd.f32 0.0, %v4647
    %4649 = vmatmul.f32.gmra.mxu0 %v1168
    %v4650 = vpop.f32.mrf.mxu0
    %v4651 = vadd.f32 0.0, %v4650
    %4652 = vmatmul.f32.gmra.mxu0 %v1170
    %v4653 = vpop.f32.mrf.mxu0
    %v4654 = vadd.f32 0.0, %v4653
    %4655 = vmatmul.f32.gmra.mxu0 %v1172
    %v4656 = vpop.f32.mrf.mxu0
    %v4657 = vadd.f32 0.0, %v4656
    %4658 = vmatmul.f32.gmra.mxu0 %v1174
    %v4659 = vpop.f32.mrf.mxu0
    %v4660 = vadd.f32 0.0, %v4659
    %4661 = vmatmul.f32.gmra.mxu0 %v2489
    %v4662 = vpop.f32.mrf.mxu0
    %v4663 = vadd.f32 0.0, %v4662
    %4664 = vmatmul.f32.gmra.mxu0 %v4248
    %v4665 = vpop.f32.mrf.mxu0
    %v4666 = vadd.f32 0.0, %v4665
    %4667 = vdwg.mxu0
    %v4668 = vadd.f32 %v4095, %v4268
    %v4669 = vadd.f32 %v4096, %v4477
    %v4670 = vadd.f32 %v4097, %v4271
    %v4671 = vadd.f32 %v4098, %v4480
    %v4672 = vadd.f32 %v4099, %v4274
    %v4673 = vadd.f32 %v4100, %v4483
    %v4674 = vadd.f32 %v4101, %v4277
    %v4675 = vadd.f32 %v4102, %v4486
    %v4676 = vadd.f32 %v4103, %v4280
    %v4677 = vadd.f32 %v4104, %v4489
    %v4678 = vadd.f32 %v4105, %v4283
    %v4679 = vadd.f32 %v4106, %v4492
    %v4680 = vadd.f32 %v4107, %v4286
    %v4681 = vadd.f32 %v4108, %v4495
    %v4682 = vadd.f32 %v4109, %v4289
    %v4683 = vadd.f32 %v4110, %v4498
    %v4684 = vadd.f32 %v4111, %v4292
    %v4685 = vadd.f32 %v4112, %v4501
    %v4686 = vadd.f32 %v4113, %v4295
    %v4687 = vadd.f32 %v4114, %v4504
    %v4688 = vadd.f32 %v4115, %v4298
    %v4689 = vadd.f32 %v4116, %v4507
    %v4690 = vadd.f32 %v4117, %v4301
    %v4691 = vadd.f32 %v4118, %v4510
    %v4692 = vadd.f32 %v4119, %v4304
    %v4693 = vadd.f32 %v4120, %v4513
    %v4694 = vadd.f32 %v4121, %v4307
    %v4695 = vadd.f32 %v4122, %v4516
    %v4696 = vadd.f32 %v4123, %v4310
    %v4697 = vadd.f32 %v4124, %v4519
    %v4698 = vadd.f32 %v4125, %v4313
    %v4699 = vadd.f32 %v4126, %v4522
    %v4700 = vadd.f32 %v4127, %v4316
    %v4701 = vadd.f32 %v4128, %v4525
    %v4702 = vadd.f32 %v4129, %v4319
    %v4703 = vadd.f32 %v4130, %v4528
    %v4704 = vadd.f32 %v4131, %v4322
    %v4705 = vadd.f32 %v4132, %v4531
    %v4706 = vadd.f32 %v4133, %v4325
    %v4707 = vadd.f32 %v4134, %v4534
    %v4708 = vadd.f32 %v4135, %v4328
    %v4709 = vadd.f32 %v4136, %v4537
    %v4710 = vadd.f32 %v4137, %v4331
    %v4711 = vadd.f32 %v4138, %v4540
    %v4712 = vadd.f32 %v4139, %v4334
    %v4713 = vadd.f32 %v4140, %v4543
    %v4714 = vadd.f32 %v4141, %v4337
    %v4715 = vadd.f32 %v4142, %v4546
    %v4716 = vadd.f32 %v4143, %v4340
    %v4717 = vadd.f32 %v4144, %v4549
    %v4718 = vadd.f32 %v4145, %v4343
    %v4719 = vadd.f32 %v4146, %v4552
    %v4720 = vadd.f32 %v4147, %v4346
    %v4721 = vadd.f32 %v4148, %v4555
    %v4722 = vadd.f32 %v4149, %v4349
    %v4723 = vadd.f32 %v4150, %v4558
    %v4724 = vadd.f32 %v4151, %v4352
    %v4725 = vadd.f32 %v4152, %v4561
    %v4726 = vadd.f32 %v4153, %v4355
    %v4727 = vadd.f32 %v4154, %v4564
    %v4728 = vadd.f32 %v4155, %v4358
    %v4729 = vadd.f32 %v4156, %v4567
    %v4730 = vadd.f32 %v4157, %v4361
    %v4731 = vadd.f32 %v4158, %v4570
    %v4732 = vadd.f32 %v4159, %v4364
    %v4733 = vadd.f32 %v4160, %v4573
    %v4734 = vadd.f32 %v4161, %v4367
    %v4735 = vadd.f32 %v4162, %v4576
    %v4736 = vadd.f32 %v4163, %v4370
    %v4737 = vadd.f32 %v4164, %v4579
    %v4738 = vadd.f32 %v4165, %v4373
    %v4739 = vadd.f32 %v4166, %v4582
    %v4740 = vadd.f32 %v4167, %v4376
    %v4741 = vadd.f32 %v4168, %v4585
    %v4742 = vadd.f32 %v4169, %v4379
    %v4743 = vadd.f32 %v4170, %v4588
    %v4744 = vadd.f32 %v4171, %v4382
    %v4745 = vadd.f32 %v4172, %v4591
    %v4746 = vadd.f32 %v4173, %v4385
    %v4747 = vadd.f32 %v4174, %v4594
    %v4748 = vadd.f32 %v4175, %v4388
    %v4749 = vadd.f32 %v4176, %v4597
    %v4750 = vadd.f32 %v4177, %v4391
    %v4751 = vadd.f32 %v4178, %v4600
    %v4752 = vadd.f32 %v4179, %v4394
    %v4753 = vadd.f32 %v4180, %v4603
    %v4754 = vadd.f32 %v4181, %v4397
    %v4755 = vadd.f32 %v4182, %v4606
    %v4756 = vadd.f32 %v4183, %v4400
    %v4757 = vadd.f32 %v4184, %v4609
    %v4758 = vadd.f32 %v4185, %v4403
    %v4759 = vadd.f32 %v4186, %v4612
    %v4760 = vadd.f32 %v4187, %v4406
    %v4761 = vadd.f32 %v4188, %v4615
    %v4762 = vadd.f32 %v4189, %v4409
    %v4763 = vadd.f32 %v4190, %v4618
    %v4764 = vadd.f32 %v4191, %v4412
    %v4765 = vadd.f32 %v4192, %v4621
    %v4766 = vadd.f32 %v4193, %v4415
    %v4767 = vadd.f32 %v4194, %v4624
    %v4768 = vadd.f32 %v4195, %v4418
    %v4769 = vadd.f32 %v4196, %v4627
    %v4770 = vadd.f32 %v4197, %v4421
    %v4771 = vadd.f32 %v4198, %v4630
    %v4772 = vadd.f32 %v4199, %v4424
    %v4773 = vadd.f32 %v4200, %v4633
    %v4774 = vadd.f32 %v4201, %v4427
    %v4775 = vadd.f32 %v4202, %v4636
    %v4776 = vadd.f32 %v4203, %v4430
    %v4777 = vadd.f32 %v4204, %v4639
    %v4778 = vadd.f32 %v4205, %v4433
    %v4779 = vadd.f32 %v4206, %v4642
    %v4780 = vadd.f32 %v4207, %v4436
    %v4781 = vadd.f32 %v4208, %v4645
    %v4782 = vadd.f32 %v4209, %v4439
    %v4783 = vadd.f32 %v4210, %v4648
    %v4784 = vadd.f32 %v4211, %v4442
    %v4785 = vadd.f32 %v4212, %v4651
    %v4786 = vadd.f32 %v4213, %v4445
    %v4787 = vadd.f32 %v4214, %v4654
    %v4788 = vadd.f32 %v4215, %v4448
    %v4789 = vadd.f32 %v4216, %v4657
    %v4790 = vadd.f32 %v4217, %v4451
    %v4791 = vadd.f32 %v4218, %v4660
    %v4792 = vadd.f32 %v4219, %v4454
    %v4793 = vadd.f32 %v4220, %v4663
    %v4794 = vadd.f32 %v4221, %v4457
    %v4795 = vadd.f32 %v4222, %v4666
    %v4804 = vrot.slane %v33, 1
    %v4805 = vrot.slane %v34, 1
    %v4806 = vsel %vm305, %v4804, %v4805
    %v4807 = vrot.slane %v53, 1
    %v4808 = vrot.slane %v54, 1
    %v4809 = vsel %vm305, %v4807, %v4808
    %v4810 = vrot.slane %v73, 1
    %v4811 = vrot.slane %v74, 1
    %v4812 = vsel %vm305, %v4810, %v4811
    %v4813 = vrot.slane %v93, 1
    %v4814 = vrot.slane %v94, 1
    %v4815 = vsel %vm305, %v4813, %v4814
    %v4816 = vrot.slane %v113, 1
    %v4817 = vrot.slane %v114, 1
    %v4818 = vsel %vm305, %v4816, %v4817
    %v4819 = vrot.slane %v133, 1
    %v4820 = vrot.slane %v134, 1
    %v4821 = vsel %vm305, %v4819, %v4820
    %v4822 = vrot.slane %v153, 1
    %v4823 = vrot.slane %v154, 1
    %v4824 = vsel %vm305, %v4822, %v4823
    %v4825 = vrot.slane %v173, 1
    %v4826 = vrot.slane %v174, 1
    %v4827 = vsel %vm305, %v4825, %v4826
    %s4828 = scalar_lea.vmem %s1, 112
    %v4829 = vld [vmem:[%s4828] sm:$0xff]
    %v4830 = vld [vmem:[%s4828 + $0x8] sm:$0xff]
    %v4831 = vsel %vm501, %v4806, 0
    %v4833 = vsel %vm501, %v4809, 0
    %v4835 = vsel %vm501, %v4812, 0
    %v4837 = vsel %vm501, %v4815, 0
    %v4839 = vsel %vm501, %v4818, 0
    %v4841 = vsel %vm501, %v4821, 0
    %v4843 = vsel %vm501, %v4824, 0
    %v4845 = vsel %vm501, %v4827, 0
    %4847 = vmatpush.msra.mxu0 0.0
    %4848 = vmatpush.msra.mxu0 0.0
    %4849 = vmatpush.msra.mxu0 0.0
    %4850 = vmatpush.msra.mxu0 0.0
    %4851 = vmatpush.msra.mxu0 0.0
    %4852 = vmatpush.msra.mxu0 0.0
    %4853 = vmatpush.msra.mxu0 0.0
    %4854 = vmatpush.msra.mxu0 0.0
    %4855 = vmatpush.msra.mxu0 0.0
    %4856 = vmatpush.msra.mxu0 0.0
    %4857 = vmatpush.msra.mxu0 0.0
    %4858 = vmatpush.msra.mxu0 0.0
    %4859 = vmatpush.msra.mxu0 0.0
    %4860 = vmatpush.msra.mxu0 0.0
    %4861 = vmatpush.msra.mxu0 0.0
    %4862 = vmatpush.msra.mxu0 %v4829
    %4863 = vmatmul.f32.gmra.mxu0 %v506
    %v4864 = vpop.f32.mrf.mxu0
    %v4865 = vadd.f32 0.0, %v4864
    %4866 = vmatmul.f32.gmra.mxu0 %v508
    %v4867 = vpop.f32.mrf.mxu0
    %v4868 = vadd.f32 0.0, %v4867
    %4869 = vmatmul.f32.gmra.mxu0 %v510
    %v4870 = vpop.f32.mrf.mxu0
    %v4871 = vadd.f32 0.0, %v4870
    %4872 = vmatmul.f32.gmra.mxu0 %v512
    %v4873 = vpop.f32.mrf.mxu0
    %v4874 = vadd.f32 0.0, %v4873
    %4875 = vmatmul.f32.gmra.mxu0 %v514
    %v4876 = vpop.f32.mrf.mxu0
    %v4877 = vadd.f32 0.0, %v4876
    %4878 = vmatmul.f32.gmra.mxu0 %v516
    %v4879 = vpop.f32.mrf.mxu0
    %v4880 = vadd.f32 0.0, %v4879
    %4881 = vmatmul.f32.gmra.mxu0 %v3072
    %v4882 = vpop.f32.mrf.mxu0
    %v4883 = vadd.f32 0.0, %v4882
    %4884 = vmatmul.f32.gmra.mxu0 %v4831
    %v4885 = vpop.f32.mrf.mxu0
    %v4886 = vadd.f32 0.0, %v4885
    %4887 = vmatmul.f32.gmra.mxu0 %v522
    %v4888 = vpop.f32.mrf.mxu0
    %v4889 = vadd.f32 0.0, %v4888
    %4890 = vmatmul.f32.gmra.mxu0 %v524
    %v4891 = vpop.f32.mrf.mxu0
    %v4892 = vadd.f32 0.0, %v4891
    %4893 = vmatmul.f32.gmra.mxu0 %v526
    %v4894 = vpop.f32.mrf.mxu0
    %v4895 = vadd.f32 0.0, %v4894
    %4896 = vmatmul.f32.gmra.mxu0 %v528
    %v4897 = vpop.f32.mrf.mxu0
    %v4898 = vadd.f32 0.0, %v4897
    %4899 = vmatmul.f32.gmra.mxu0 %v530
    %v4900 = vpop.f32.mrf.mxu0
    %v4901 = vadd.f32 0.0, %v4900
    %4902 = vmatmul.f32.gmra.mxu0 %v532
    %v4903 = vpop.f32.mrf.mxu0
    %v4904 = vadd.f32 0.0, %v4903
    %4905 = vmatmul.f32.gmra.mxu0 %v3074
    %v4906 = vpop.f32.mrf.mxu0
    %v4907 = vadd.f32 0.0, %v4906
    %4908 = vmatmul.f32.gmra.mxu0 %v4833
    %v4909 = vpop.f32.mrf.mxu0
    %v4910 = vadd.f32 0.0, %v4909
    %4911 = vmatmul.f32.gmra.mxu0 %v538
    %v4912 = vpop.f32.mrf.mxu0
    %v4913 = vadd.f32 0.0, %v4912
    %4914 = vmatmul.f32.gmra.mxu0 %v540
    %v4915 = vpop.f32.mrf.mxu0
    %v4916 = vadd.f32 0.0, %v4915
    %4917 = vmatmul.f32.gmra.mxu0 %v542
    %v4918 = vpop.f32.mrf.mxu0
    %v4919 = vadd.f32 0.0, %v4918
    %4920 = vmatmul.f32.gmra.mxu0 %v544
    %v4921 = vpop.f32.mrf.mxu0
    %v4922 = vadd.f32 0.0, %v4921
    %4923 = vmatmul.f32.gmra.mxu0 %v546
    %v4924 = vpop.f32.mrf.mxu0
    %v4925 = vadd.f32 0.0, %v4924
    %4926 = vmatmul.f32.gmra.mxu0 %v548
    %v4927 = vpop.f32.mrf.mxu0
    %v4928 = vadd.f32 0.0, %v4927
    %4929 = vmatmul.f32.gmra.mxu0 %v3076
    %v4930 = vpop.f32.mrf.mxu0
    %v4931 = vadd.f32 0.0, %v4930
    %4932 = vmatmul.f32.gmra.mxu0 %v4835
    %v4933 = vpop.f32.mrf.mxu0
    %v4934 = vadd.f32 0.0, %v4933
    %4935 = vmatmul.f32.gmra.mxu0 %v554
    %v4936 = vpop.f32.mrf.mxu0
    %v4937 = vadd.f32 0.0, %v4936
    %4938 = vmatmul.f32.gmra.mxu0 %v556
    %v4939 = vpop.f32.mrf.mxu0
    %v4940 = vadd.f32 0.0, %v4939
    %4941 = vmatmul.f32.gmra.mxu0 %v558
    %v4942 = vpop.f32.mrf.mxu0
    %v4943 = vadd.f32 0.0, %v4942
    %4944 = vmatmul.f32.gmra.mxu0 %v560
    %v4945 = vpop.f32.mrf.mxu0
    %v4946 = vadd.f32 0.0, %v4945
    %4947 = vmatmul.f32.gmra.mxu0 %v562
    %v4948 = vpop.f32.mrf.mxu0
    %v4949 = vadd.f32 0.0, %v4948
    %4950 = vmatmul.f32.gmra.mxu0 %v564
    %v4951 = vpop.f32.mrf.mxu0
    %v4952 = vadd.f32 0.0, %v4951
    %4953 = vmatmul.f32.gmra.mxu0 %v3078
    %v4954 = vpop.f32.mrf.mxu0
    %v4955 = vadd.f32 0.0, %v4954
    %4956 = vmatmul.f32.gmra.mxu0 %v4837
    %v4957 = vpop.f32.mrf.mxu0
    %v4958 = vadd.f32 0.0, %v4957
    %4959 = vmatmul.f32.gmra.mxu0 %v570
    %v4960 = vpop.f32.mrf.mxu0
    %v4961 = vadd.f32 0.0, %v4960
    %4962 = vmatmul.f32.gmra.mxu0 %v572
    %v4963 = vpop.f32.mrf.mxu0
    %v4964 = vadd.f32 0.0, %v4963
    %4965 = vmatmul.f32.gmra.mxu0 %v574
    %v4966 = vpop.f32.mrf.mxu0
    %v4967 = vadd.f32 0.0, %v4966
    %4968 = vmatmul.f32.gmra.mxu0 %v576
    %v4969 = vpop.f32.mrf.mxu0
    %v4970 = vadd.f32 0.0, %v4969
    %4971 = vmatmul.f32.gmra.mxu0 %v578
    %v4972 = vpop.f32.mrf.mxu0
    %v4973 = vadd.f32 0.0, %v4972
    %4974 = vmatmul.f32.gmra.mxu0 %v580
    %v4975 = vpop.f32.mrf.mxu0
    %v4976 = vadd.f32 0.0, %v4975
    %4977 = vmatmul.f32.gmra.mxu0 %v3080
    %v4978 = vpop.f32.mrf.mxu0
    %v4979 = vadd.f32 0.0, %v4978
    %4980 = vmatmul.f32.gmra.mxu0 %v4839
    %v4981 = vpop.f32.mrf.mxu0
    %v4982 = vadd.f32 0.0, %v4981
    %4983 = vmatmul.f32.gmra.mxu0 %v586
    %v4984 = vpop.f32.mrf.mxu0
    %v4985 = vadd.f32 0.0, %v4984
    %4986 = vmatmul.f32.gmra.mxu0 %v588
    %v4987 = vpop.f32.mrf.mxu0
    %v4988 = vadd.f32 0.0, %v4987
    %4989 = vmatmul.f32.gmra.mxu0 %v590
    %v4990 = vpop.f32.mrf.mxu0
    %v4991 = vadd.f32 0.0, %v4990
    %4992 = vmatmul.f32.gmra.mxu0 %v592
    %v4993 = vpop.f32.mrf.mxu0
    %v4994 = vadd.f32 0.0, %v4993
    %4995 = vmatmul.f32.gmra.mxu0 %v594
    %v4996 = vpop.f32.mrf.mxu0
    %v4997 = vadd.f32 0.0, %v4996
    %4998 = vmatmul.f32.gmra.mxu0 %v596
    %v4999 = vpop.f32.mrf.mxu0
    %v5000 = vadd.f32 0.0, %v4999
    %5001 = vmatmul.f32.gmra.mxu0 %v3082
    %v5002 = vpop.f32.mrf.mxu0
    %v5003 = vadd.f32 0.0, %v5002
    %5004 = vmatmul.f32.gmra.mxu0 %v4841
    %v5005 = vpop.f32.mrf.mxu0
    %v5006 = vadd.f32 0.0, %v5005
    %5007 = vmatmul.f32.gmra.mxu0 %v602
    %v5008 = vpop.f32.mrf.mxu0
    %v5009 = vadd.f32 0.0, %v5008
    %5010 = vmatmul.f32.gmra.mxu0 %v604
    %v5011 = vpop.f32.mrf.mxu0
    %v5012 = vadd.f32 0.0, %v5011
    %5013 = vmatmul.f32.gmra.mxu0 %v606
    %v5014 = vpop.f32.mrf.mxu0
    %v5015 = vadd.f32 0.0, %v5014
    %5016 = vmatmul.f32.gmra.mxu0 %v608
    %v5017 = vpop.f32.mrf.mxu0
    %v5018 = vadd.f32 0.0, %v5017
    %5019 = vmatmul.f32.gmra.mxu0 %v610
    %v5020 = vpop.f32.mrf.mxu0
    %v5021 = vadd.f32 0.0, %v5020
    %5022 = vmatmul.f32.gmra.mxu0 %v612
    %v5023 = vpop.f32.mrf.mxu0
    %v5024 = vadd.f32 0.0, %v5023
    %5025 = vmatmul.f32.gmra.mxu0 %v3084
    %v5026 = vpop.f32.mrf.mxu0
    %v5027 = vadd.f32 0.0, %v5026
    %5028 = vmatmul.f32.gmra.mxu0 %v4843
    %v5029 = vpop.f32.mrf.mxu0
    %v5030 = vadd.f32 0.0, %v5029
    %5031 = vmatmul.f32.gmra.mxu0 %v618
    %v5032 = vpop.f32.mrf.mxu0
    %v5033 = vadd.f32 0.0, %v5032
    %5034 = vmatmul.f32.gmra.mxu0 %v620
    %v5035 = vpop.f32.mrf.mxu0
    %v5036 = vadd.f32 0.0, %v5035
    %5037 = vmatmul.f32.gmra.mxu0 %v622
    %v5038 = vpop.f32.mrf.mxu0
    %v5039 = vadd.f32 0.0, %v5038
    %5040 = vmatmul.f32.gmra.mxu0 %v624
    %v5041 = vpop.f32.mrf.mxu0
    %v5042 = vadd.f32 0.0, %v5041
    %5043 = vmatmul.f32.gmra.mxu0 %v626
    %v5044 = vpop.f32.mrf.mxu0
    %v5045 = vadd.f32 0.0, %v5044
    %5046 = vmatmul.f32.gmra.mxu0 %v628
    %v5047 = vpop.f32.mrf.mxu0
    %v5048 = vadd.f32 0.0, %v5047
    %5049 = vmatmul.f32.gmra.mxu0 %v3086
    %v5050 = vpop.f32.mrf.mxu0
    %v5051 = vadd.f32 0.0, %v5050
    %5052 = vmatmul.f32.gmra.mxu0 %v4845
    %v5053 = vpop.f32.mrf.mxu0
    %v5054 = vadd.f32 0.0, %v5053
    %5055 = vdwg.mxu0
    %5056 = vmatpush.msra.mxu0 0.0
    %5057 = vmatpush.msra.mxu0 0.0
    %5058 = vmatpush.msra.mxu0 0.0
    %5059 = vmatpush.msra.mxu0 0.0
    %5060 = vmatpush.msra.mxu0 0.0
    %5061 = vmatpush.msra.mxu0 0.0
    %5062 = vmatpush.msra.mxu0 0.0
    %5063 = vmatpush.msra.mxu0 0.0
    %5064 = vmatpush.msra.mxu0 0.0
    %5065 = vmatpush.msra.mxu0 0.0
    %5066 = vmatpush.msra.mxu0 0.0
    %5067 = vmatpush.msra.mxu0 0.0
    %5068 = vmatpush.msra.mxu0 0.0
    %5069 = vmatpush.msra.mxu0 0.0
    %5070 = vmatpush.msra.mxu0 0.0
    %5071 = vmatpush.msra.mxu0 %v4830
    %5072 = vmatmul.f32.gmra.mxu0 %v506
    %v5073 = vpop.f32.mrf.mxu0
    %v5074 = vadd.f32 0.0, %v5073
    %5075 = vmatmul.f32.gmra.mxu0 %v508
    %v5076 = vpop.f32.mrf.mxu0
    %v5077 = vadd.f32 0.0, %v5076
    %5078 = vmatmul.f32.gmra.mxu0 %v510
    %v5079 = vpop.f32.mrf.mxu0
    %v5080 = vadd.f32 0.0, %v5079
    %5081 = vmatmul.f32.gmra.mxu0 %v512
    %v5082 = vpop.f32.mrf.mxu0
    %v5083 = vadd.f32 0.0, %v5082
    %5084 = vmatmul.f32.gmra.mxu0 %v514
    %v5085 = vpop.f32.mrf.mxu0
    %v5086 = vadd.f32 0.0, %v5085
    %5087 = vmatmul.f32.gmra.mxu0 %v516
    %v5088 = vpop.f32.mrf.mxu0
    %v5089 = vadd.f32 0.0, %v5088
    %5090 = vmatmul.f32.gmra.mxu0 %v3072
    %v5091 = vpop.f32.mrf.mxu0
    %v5092 = vadd.f32 0.0, %v5091
    %5093 = vmatmul.f32.gmra.mxu0 %v4831
    %v5094 = vpop.f32.mrf.mxu0
    %v5095 = vadd.f32 0.0, %v5094
    %5096 = vmatmul.f32.gmra.mxu0 %v522
    %v5097 = vpop.f32.mrf.mxu0
    %v5098 = vadd.f32 0.0, %v5097
    %5099 = vmatmul.f32.gmra.mxu0 %v524
    %v5100 = vpop.f32.mrf.mxu0
    %v5101 = vadd.f32 0.0, %v5100
    %5102 = vmatmul.f32.gmra.mxu0 %v526
    %v5103 = vpop.f32.mrf.mxu0
    %v5104 = vadd.f32 0.0, %v5103
    %5105 = vmatmul.f32.gmra.mxu0 %v528
    %v5106 = vpop.f32.mrf.mxu0
    %v5107 = vadd.f32 0.0, %v5106
    %5108 = vmatmul.f32.gmra.mxu0 %v530
    %v5109 = vpop.f32.mrf.mxu0
    %v5110 = vadd.f32 0.0, %v5109
    %5111 = vmatmul.f32.gmra.mxu0 %v532
    %v5112 = vpop.f32.mrf.mxu0
    %v5113 = vadd.f32 0.0, %v5112
    %5114 = vmatmul.f32.gmra.mxu0 %v3074
    %v5115 = vpop.f32.mrf.mxu0
    %v5116 = vadd.f32 0.0, %v5115
    %5117 = vmatmul.f32.gmra.mxu0 %v4833
    %v5118 = vpop.f32.mrf.mxu0
    %v5119 = vadd.f32 0.0, %v5118
    %5120 = vmatmul.f32.gmra.mxu0 %v538
    %v5121 = vpop.f32.mrf.mxu0
    %v5122 = vadd.f32 0.0, %v5121
    %5123 = vmatmul.f32.gmra.mxu0 %v540
    %v5124 = vpop.f32.mrf.mxu0
    %v5125 = vadd.f32 0.0, %v5124
    %5126 = vmatmul.f32.gmra.mxu0 %v542
    %v5127 = vpop.f32.mrf.mxu0
    %v5128 = vadd.f32 0.0, %v5127
    %5129 = vmatmul.f32.gmra.mxu0 %v544
    %v5130 = vpop.f32.mrf.mxu0
    %v5131 = vadd.f32 0.0, %v5130
    %5132 = vmatmul.f32.gmra.mxu0 %v546
    %v5133 = vpop.f32.mrf.mxu0
    %v5134 = vadd.f32 0.0, %v5133
    %5135 = vmatmul.f32.gmra.mxu0 %v548
    %v5136 = vpop.f32.mrf.mxu0
    %v5137 = vadd.f32 0.0, %v5136
    %5138 = vmatmul.f32.gmra.mxu0 %v3076
    %v5139 = vpop.f32.mrf.mxu0
    %v5140 = vadd.f32 0.0, %v5139
    %5141 = vmatmul.f32.gmra.mxu0 %v4835
    %v5142 = vpop.f32.mrf.mxu0
    %v5143 = vadd.f32 0.0, %v5142
    %5144 = vmatmul.f32.gmra.mxu0 %v554
    %v5145 = vpop.f32.mrf.mxu0
    %v5146 = vadd.f32 0.0, %v5145
    %5147 = vmatmul.f32.gmra.mxu0 %v556
    %v5148 = vpop.f32.mrf.mxu0
    %v5149 = vadd.f32 0.0, %v5148
    %5150 = vmatmul.f32.gmra.mxu0 %v558
    %v5151 = vpop.f32.mrf.mxu0
    %v5152 = vadd.f32 0.0, %v5151
    %5153 = vmatmul.f32.gmra.mxu0 %v560
    %v5154 = vpop.f32.mrf.mxu0
    %v5155 = vadd.f32 0.0, %v5154
    %5156 = vmatmul.f32.gmra.mxu0 %v562
    %v5157 = vpop.f32.mrf.mxu0
    %v5158 = vadd.f32 0.0, %v5157
    %5159 = vmatmul.f32.gmra.mxu0 %v564
    %v5160 = vpop.f32.mrf.mxu0
    %v5161 = vadd.f32 0.0, %v5160
    %5162 = vmatmul.f32.gmra.mxu0 %v3078
    %v5163 = vpop.f32.mrf.mxu0
    %v5164 = vadd.f32 0.0, %v5163
    %5165 = vmatmul.f32.gmra.mxu0 %v4837
    %v5166 = vpop.f32.mrf.mxu0
    %v5167 = vadd.f32 0.0, %v5166
    %5168 = vmatmul.f32.gmra.mxu0 %v570
    %v5169 = vpop.f32.mrf.mxu0
    %v5170 = vadd.f32 0.0, %v5169
    %5171 = vmatmul.f32.gmra.mxu0 %v572
    %v5172 = vpop.f32.mrf.mxu0
    %v5173 = vadd.f32 0.0, %v5172
    %5174 = vmatmul.f32.gmra.mxu0 %v574
    %v5175 = vpop.f32.mrf.mxu0
    %v5176 = vadd.f32 0.0, %v5175
    %5177 = vmatmul.f32.gmra.mxu0 %v576
    %v5178 = vpop.f32.mrf.mxu0
    %v5179 = vadd.f32 0.0, %v5178
    %5180 = vmatmul.f32.gmra.mxu0 %v578
    %v5181 = vpop.f32.mrf.mxu0
    %v5182 = vadd.f32 0.0, %v5181
    %5183 = vmatmul.f32.gmra.mxu0 %v580
    %v5184 = vpop.f32.mrf.mxu0
    %v5185 = vadd.f32 0.0, %v5184
    %5186 = vmatmul.f32.gmra.mxu0 %v3080
    %v5187 = vpop.f32.mrf.mxu0
    %v5188 = vadd.f32 0.0, %v5187
    %5189 = vmatmul.f32.gmra.mxu0 %v4839
    %v5190 = vpop.f32.mrf.mxu0
    %v5191 = vadd.f32 0.0, %v5190
    %5192 = vmatmul.f32.gmra.mxu0 %v586
    %v5193 = vpop.f32.mrf.mxu0
    %v5194 = vadd.f32 0.0, %v5193
    %5195 = vmatmul.f32.gmra.mxu0 %v588
    %v5196 = vpop.f32.mrf.mxu0
    %v5197 = vadd.f32 0.0, %v5196
    %5198 = vmatmul.f32.gmra.mxu0 %v590
    %v5199 = vpop.f32.mrf.mxu0
    %v5200 = vadd.f32 0.0, %v5199
    %5201 = vmatmul.f32.gmra.mxu0 %v592
    %v5202 = vpop.f32.mrf.mxu0
    %v5203 = vadd.f32 0.0, %v5202
    %5204 = vmatmul.f32.gmra.mxu0 %v594
    %v5205 = vpop.f32.mrf.mxu0
    %v5206 = vadd.f32 0.0, %v5205
    %5207 = vmatmul.f32.gmra.mxu0 %v596
    %v5208 = vpop.f32.mrf.mxu0
    %v5209 = vadd.f32 0.0, %v5208
    %5210 = vmatmul.f32.gmra.mxu0 %v3082
    %v5211 = vpop.f32.mrf.mxu0
    %v5212 = vadd.f32 0.0, %v5211
    %5213 = vmatmul.f32.gmra.mxu0 %v4841
    %v5214 = vpop.f32.mrf.mxu0
    %v5215 = vadd.f32 0.0, %v5214
    %5216 = vmatmul.f32.gmra.mxu0 %v602
    %v5217 = vpop.f32.mrf.mxu0
    %v5218 = vadd.f32 0.0, %v5217
    %5219 = vmatmul.f32.gmra.mxu0 %v604
    %v5220 = vpop.f32.mrf.mxu0
    %v5221 = vadd.f32 0.0, %v5220
    %5222 = vmatmul.f32.gmra.mxu0 %v606
    %v5223 = vpop.f32.mrf.mxu0
    %v5224 = vadd.f32 0.0, %v5223
    %5225 = vmatmul.f32.gmra.mxu0 %v608
    %v5226 = vpop.f32.mrf.mxu0
    %v5227 = vadd.f32 0.0, %v5226
    %5228 = vmatmul.f32.gmra.mxu0 %v610
    %v5229 = vpop.f32.mrf.mxu0
    %v5230 = vadd.f32 0.0, %v5229
    %5231 = vmatmul.f32.gmra.mxu0 %v612
    %v5232 = vpop.f32.mrf.mxu0
    %v5233 = vadd.f32 0.0, %v5232
    %5234 = vmatmul.f32.gmra.mxu0 %v3084
    %v5235 = vpop.f32.mrf.mxu0
    %v5236 = vadd.f32 0.0, %v5235
    %5237 = vmatmul.f32.gmra.mxu0 %v4843
    %v5238 = vpop.f32.mrf.mxu0
    %v5239 = vadd.f32 0.0, %v5238
    %5240 = vmatmul.f32.gmra.mxu0 %v618
    %v5241 = vpop.f32.mrf.mxu0
    %v5242 = vadd.f32 0.0, %v5241
    %5243 = vmatmul.f32.gmra.mxu0 %v620
    %v5244 = vpop.f32.mrf.mxu0
    %v5245 = vadd.f32 0.0, %v5244
    %5246 = vmatmul.f32.gmra.mxu0 %v622
    %v5247 = vpop.f32.mrf.mxu0
    %v5248 = vadd.f32 0.0, %v5247
    %5249 = vmatmul.f32.gmra.mxu0 %v624
    %v5250 = vpop.f32.mrf.mxu0
    %v5251 = vadd.f32 0.0, %v5250
    %5252 = vmatmul.f32.gmra.mxu0 %v626
    %v5253 = vpop.f32.mrf.mxu0
    %v5254 = vadd.f32 0.0, %v5253
    %5255 = vmatmul.f32.gmra.mxu0 %v628
    %v5256 = vpop.f32.mrf.mxu0
    %v5257 = vadd.f32 0.0, %v5256
    %5258 = vmatmul.f32.gmra.mxu0 %v3086
    %v5259 = vpop.f32.mrf.mxu0
    %v5260 = vadd.f32 0.0, %v5259
    %5261 = vmatmul.f32.gmra.mxu0 %v4845
    %v5262 = vpop.f32.mrf.mxu0
    %v5263 = vadd.f32 0.0, %v5262
    %5264 = vdwg.mxu0
    %v5265 = vadd.f32 %v4668, %v4865
    %v5266 = vadd.f32 %v4669, %v5074
    %v5267 = vadd.f32 %v4670, %v4868
    %v5268 = vadd.f32 %v4671, %v5077
    %v5269 = vadd.f32 %v4672, %v4871
    %v5270 = vadd.f32 %v4673, %v5080
    %v5271 = vadd.f32 %v4674, %v4874
    %v5272 = vadd.f32 %v4675, %v5083
    %v5273 = vadd.f32 %v4676, %v4877
    %v5274 = vadd.f32 %v4677, %v5086
    %v5275 = vadd.f32 %v4678, %v4880
    %v5276 = vadd.f32 %v4679, %v5089
    %v5277 = vadd.f32 %v4680, %v4883
    %v5278 = vadd.f32 %v4681, %v5092
    %v5279 = vadd.f32 %v4682, %v4886
    %v5280 = vadd.f32 %v4683, %v5095
    %v5281 = vadd.f32 %v4684, %v4889
    %v5282 = vadd.f32 %v4685, %v5098
    %v5283 = vadd.f32 %v4686, %v4892
    %v5284 = vadd.f32 %v4687, %v5101
    %v5285 = vadd.f32 %v4688, %v4895
    %v5286 = vadd.f32 %v4689, %v5104
    %v5287 = vadd.f32 %v4690, %v4898
    %v5288 = vadd.f32 %v4691, %v5107
    %v5289 = vadd.f32 %v4692, %v4901
    %v5290 = vadd.f32 %v4693, %v5110
    %v5291 = vadd.f32 %v4694, %v4904
    %v5292 = vadd.f32 %v4695, %v5113
    %v5293 = vadd.f32 %v4696, %v4907
    %v5294 = vadd.f32 %v4697, %v5116
    %v5295 = vadd.f32 %v4698, %v4910
    %v5296 = vadd.f32 %v4699, %v5119
    %v5297 = vadd.f32 %v4700, %v4913
    %v5298 = vadd.f32 %v4701, %v5122
    %v5299 = vadd.f32 %v4702, %v4916
    %v5300 = vadd.f32 %v4703, %v5125
    %v5301 = vadd.f32 %v4704, %v4919
    %v5302 = vadd.f32 %v4705, %v5128
    %v5303 = vadd.f32 %v4706, %v4922
    %v5304 = vadd.f32 %v4707, %v5131
    %v5305 = vadd.f32 %v4708, %v4925
    %v5306 = vadd.f32 %v4709, %v5134
    %v5307 = vadd.f32 %v4710, %v4928
    %v5308 = vadd.f32 %v4711, %v5137
    %v5309 = vadd.f32 %v4712, %v4931
    %v5310 = vadd.f32 %v4713, %v5140
    %v5311 = vadd.f32 %v4714, %v4934
    %v5312 = vadd.f32 %v4715, %v5143
    %v5313 = vadd.f32 %v4716, %v4937
    %v5314 = vadd.f32 %v4717, %v5146
    %v5315 = vadd.f32 %v4718, %v4940
    %v5316 = vadd.f32 %v4719, %v5149
    %v5317 = vadd.f32 %v4720, %v4943
    %v5318 = vadd.f32 %v4721, %v5152
    %v5319 = vadd.f32 %v4722, %v4946
    %v5320 = vadd.f32 %v4723, %v5155
    %v5321 = vadd.f32 %v4724, %v4949
    %v5322 = vadd.f32 %v4725, %v5158
    %v5323 = vadd.f32 %v4726, %v4952
    %v5324 = vadd.f32 %v4727, %v5161
    %v5325 = vadd.f32 %v4728, %v4955
    %v5326 = vadd.f32 %v4729, %v5164
    %v5327 = vadd.f32 %v4730, %v4958
    %v5328 = vadd.f32 %v4731, %v5167
    %v5329 = vadd.f32 %v4732, %v4961
    %v5330 = vadd.f32 %v4733, %v5170
    %v5331 = vadd.f32 %v4734, %v4964
    %v5332 = vadd.f32 %v4735, %v5173
    %v5333 = vadd.f32 %v4736, %v4967
    %v5334 = vadd.f32 %v4737, %v5176
    %v5335 = vadd.f32 %v4738, %v4970
    %v5336 = vadd.f32 %v4739, %v5179
    %v5337 = vadd.f32 %v4740, %v4973
    %v5338 = vadd.f32 %v4741, %v5182
    %v5339 = vadd.f32 %v4742, %v4976
    %v5340 = vadd.f32 %v4743, %v5185
    %v5341 = vadd.f32 %v4744, %v4979
    %v5342 = vadd.f32 %v4745, %v5188
    %v5343 = vadd.f32 %v4746, %v4982
    %v5344 = vadd.f32 %v4747, %v5191
    %v5345 = vadd.f32 %v4748, %v4985
    %v5346 = vadd.f32 %v4749, %v5194
    %v5347 = vadd.f32 %v4750, %v4988
    %v5348 = vadd.f32 %v4751, %v5197
    %v5349 = vadd.f32 %v4752, %v4991
    %v5350 = vadd.f32 %v4753, %v5200
    %v5351 = vadd.f32 %v4754, %v4994
    %v5352 = vadd.f32 %v4755, %v5203
    %v5353 = vadd.f32 %v4756, %v4997
    %v5354 = vadd.f32 %v4757, %v5206
    %v5355 = vadd.f32 %v4758, %v5000
    %v5356 = vadd.f32 %v4759, %v5209
    %v5357 = vadd.f32 %v4760, %v5003
    %v5358 = vadd.f32 %v4761, %v5212
    %v5359 = vadd.f32 %v4762, %v5006
    %v5360 = vadd.f32 %v4763, %v5215
    %v5361 = vadd.f32 %v4764, %v5009
    %v5362 = vadd.f32 %v4765, %v5218
    %v5363 = vadd.f32 %v4766, %v5012
    %v5364 = vadd.f32 %v4767, %v5221
    %v5365 = vadd.f32 %v4768, %v5015
    %v5366 = vadd.f32 %v4769, %v5224
    %v5367 = vadd.f32 %v4770, %v5018
    %v5368 = vadd.f32 %v4771, %v5227
    %v5369 = vadd.f32 %v4772, %v5021
    %v5370 = vadd.f32 %v4773, %v5230
    %v5371 = vadd.f32 %v4774, %v5024
    %v5372 = vadd.f32 %v4775, %v5233
    %v5373 = vadd.f32 %v4776, %v5027
    %v5374 = vadd.f32 %v4777, %v5236
    %v5375 = vadd.f32 %v4778, %v5030
    %v5376 = vadd.f32 %v4779, %v5239
    %v5377 = vadd.f32 %v4780, %v5033
    %v5378 = vadd.f32 %v4781, %v5242
    %v5379 = vadd.f32 %v4782, %v5036
    %v5380 = vadd.f32 %v4783, %v5245
    %v5381 = vadd.f32 %v4784, %v5039
    %v5382 = vadd.f32 %v4785, %v5248
    %v5383 = vadd.f32 %v4786, %v5042
    %v5384 = vadd.f32 %v4787, %v5251
    %v5385 = vadd.f32 %v4788, %v5045
    %v5386 = vadd.f32 %v4789, %v5254
    %v5387 = vadd.f32 %v4790, %v5048
    %v5388 = vadd.f32 %v4791, %v5257
    %v5389 = vadd.f32 %v4792, %v5051
    %v5390 = vadd.f32 %v4793, %v5260
    %v5391 = vadd.f32 %v4794, %v5054
    %v5392 = vadd.f32 %v4795, %v5263
    %v5393 = vrot.slane %v33, 2
    %v5394 = vrot.slane %v34, 2
    %v5395 = vsel %vm1594, %v5393, %v5394
    %v5396 = vrot.slane %v53, 2
    %v5397 = vrot.slane %v54, 2
    %v5398 = vsel %vm1594, %v5396, %v5397
    %v5399 = vrot.slane %v73, 2
    %v5400 = vrot.slane %v74, 2
    %v5401 = vsel %vm1594, %v5399, %v5400
    %v5402 = vrot.slane %v93, 2
    %v5403 = vrot.slane %v94, 2
    %v5404 = vsel %vm1594, %v5402, %v5403
    %v5405 = vrot.slane %v113, 2
    %v5406 = vrot.slane %v114, 2
    %v5407 = vsel %vm1594, %v5405, %v5406
    %v5408 = vrot.slane %v133, 2
    %v5409 = vrot.slane %v134, 2
    %v5410 = vsel %vm1594, %v5408, %v5409
    %v5411 = vrot.slane %v153, 2
    %v5412 = vrot.slane %v154, 2
    %v5413 = vsel %vm1594, %v5411, %v5412
    %v5414 = vrot.slane %v173, 2
    %v5415 = vrot.slane %v174, 2
    %v5416 = vsel %vm1594, %v5414, %v5415
    %s5417 = scalar_lea.vmem %s1, 128
    %v5418 = vld [vmem:[%s5417] sm:$0xff]
    %v5419 = vld [vmem:[%s5417 + $0x8] sm:$0xff]
    %v5420 = vsel %vm501, %v5395, 0
    %v5422 = vsel %vm501, %v5398, 0
    %v5424 = vsel %vm501, %v5401, 0
    %v5426 = vsel %vm501, %v5404, 0
    %v5428 = vsel %vm501, %v5407, 0
    %v5430 = vsel %vm501, %v5410, 0
    %v5432 = vsel %vm501, %v5413, 0
    %v5434 = vsel %vm501, %v5416, 0
    %5436 = vmatpush.msra.mxu0 0.0
    %5437 = vmatpush.msra.mxu0 0.0
    %5438 = vmatpush.msra.mxu0 0.0
    %5439 = vmatpush.msra.mxu0 0.0
    %5440 = vmatpush.msra.mxu0 0.0
    %5441 = vmatpush.msra.mxu0 0.0
    %5442 = vmatpush.msra.mxu0 0.0
    %5443 = vmatpush.msra.mxu0 0.0
    %5444 = vmatpush.msra.mxu0 0.0
    %5445 = vmatpush.msra.mxu0 0.0
    %5446 = vmatpush.msra.mxu0 0.0
    %5447 = vmatpush.msra.mxu0 0.0
    %5448 = vmatpush.msra.mxu0 0.0
    %5449 = vmatpush.msra.mxu0 0.0
    %5450 = vmatpush.msra.mxu0 0.0
    %5451 = vmatpush.msra.mxu0 %v5418
    %5452 = vmatmul.f32.gmra.mxu0 %v1794
    %v5453 = vpop.f32.mrf.mxu0
    %v5454 = vadd.f32 0.0, %v5453
    %5455 = vmatmul.f32.gmra.mxu0 %v1796
    %v5456 = vpop.f32.mrf.mxu0
    %v5457 = vadd.f32 0.0, %v5456
    %5458 = vmatmul.f32.gmra.mxu0 %v1798
    %v5459 = vpop.f32.mrf.mxu0
    %v5460 = vadd.f32 0.0, %v5459
    %5461 = vmatmul.f32.gmra.mxu0 %v1800
    %v5462 = vpop.f32.mrf.mxu0
    %v5463 = vadd.f32 0.0, %v5462
    %5464 = vmatmul.f32.gmra.mxu0 %v1802
    %v5465 = vpop.f32.mrf.mxu0
    %v5466 = vadd.f32 0.0, %v5465
    %5467 = vmatmul.f32.gmra.mxu0 %v1804
    %v5468 = vpop.f32.mrf.mxu0
    %v5469 = vadd.f32 0.0, %v5468
    %5470 = vmatmul.f32.gmra.mxu0 %v3661
    %v5471 = vpop.f32.mrf.mxu0
    %v5472 = vadd.f32 0.0, %v5471
    %5473 = vmatmul.f32.gmra.mxu0 %v5420
    %v5474 = vpop.f32.mrf.mxu0
    %v5475 = vadd.f32 0.0, %v5474
    %5476 = vmatmul.f32.gmra.mxu0 %v1810
    %v5477 = vpop.f32.mrf.mxu0
    %v5478 = vadd.f32 0.0, %v5477
    %5479 = vmatmul.f32.gmra.mxu0 %v1812
    %v5480 = vpop.f32.mrf.mxu0
    %v5481 = vadd.f32 0.0, %v5480
    %5482 = vmatmul.f32.gmra.mxu0 %v1814
    %v5483 = vpop.f32.mrf.mxu0
    %v5484 = vadd.f32 0.0, %v5483
    %5485 = vmatmul.f32.gmra.mxu0 %v1816
    %v5486 = vpop.f32.mrf.mxu0
    %v5487 = vadd.f32 0.0, %v5486
    %5488 = vmatmul.f32.gmra.mxu0 %v1818
    %v5489 = vpop.f32.mrf.mxu0
    %v5490 = vadd.f32 0.0, %v5489
    %5491 = vmatmul.f32.gmra.mxu0 %v1820
    %v5492 = vpop.f32.mrf.mxu0
    %v5493 = vadd.f32 0.0, %v5492
    %5494 = vmatmul.f32.gmra.mxu0 %v3663
    %v5495 = vpop.f32.mrf.mxu0
    %v5496 = vadd.f32 0.0, %v5495
    %5497 = vmatmul.f32.gmra.mxu0 %v5422
    %v5498 = vpop.f32.mrf.mxu0
    %v5499 = vadd.f32 0.0, %v5498
    %5500 = vmatmul.f32.gmra.mxu0 %v1826
    %v5501 = vpop.f32.mrf.mxu0
    %v5502 = vadd.f32 0.0, %v5501
    %5503 = vmatmul.f32.gmra.mxu0 %v1828
    %v5504 = vpop.f32.mrf.mxu0
    %v5505 = vadd.f32 0.0, %v5504
    %5506 = vmatmul.f32.gmra.mxu0 %v1830
    %v5507 = vpop.f32.mrf.mxu0
    %v5508 = vadd.f32 0.0, %v5507
    %5509 = vmatmul.f32.gmra.mxu0 %v1832
    %v5510 = vpop.f32.mrf.mxu0
    %v5511 = vadd.f32 0.0, %v5510
    %5512 = vmatmul.f32.gmra.mxu0 %v1834
    %v5513 = vpop.f32.mrf.mxu0
    %v5514 = vadd.f32 0.0, %v5513
    %5515 = vmatmul.f32.gmra.mxu0 %v1836
    %v5516 = vpop.f32.mrf.mxu0
    %v5517 = vadd.f32 0.0, %v5516
    %5518 = vmatmul.f32.gmra.mxu0 %v3665
    %v5519 = vpop.f32.mrf.mxu0
    %v5520 = vadd.f32 0.0, %v5519
    %5521 = vmatmul.f32.gmra.mxu0 %v5424
    %v5522 = vpop.f32.mrf.mxu0
    %v5523 = vadd.f32 0.0, %v5522
    %5524 = vmatmul.f32.gmra.mxu0 %v1842
    %v5525 = vpop.f32.mrf.mxu0
    %v5526 = vadd.f32 0.0, %v5525
    %5527 = vmatmul.f32.gmra.mxu0 %v1844
    %v5528 = vpop.f32.mrf.mxu0
    %v5529 = vadd.f32 0.0, %v5528
    %5530 = vmatmul.f32.gmra.mxu0 %v1846
    %v5531 = vpop.f32.mrf.mxu0
    %v5532 = vadd.f32 0.0, %v5531
    %5533 = vmatmul.f32.gmra.mxu0 %v1848
    %v5534 = vpop.f32.mrf.mxu0
    %v5535 = vadd.f32 0.0, %v5534
    %5536 = vmatmul.f32.gmra.mxu0 %v1850
    %v5537 = vpop.f32.mrf.mxu0
    %v5538 = vadd.f32 0.0, %v5537
    %5539 = vmatmul.f32.gmra.mxu0 %v1852
    %v5540 = vpop.f32.mrf.mxu0
    %v5541 = vadd.f32 0.0, %v5540
    %5542 = vmatmul.f32.gmra.mxu0 %v3667
    %v5543 = vpop.f32.mrf.mxu0
    %v5544 = vadd.f32 0.0, %v5543
    %5545 = vmatmul.f32.gmra.mxu0 %v5426
    %v5546 = vpop.f32.mrf.mxu0
    %v5547 = vadd.f32 0.0, %v5546
    %5548 = vmatmul.f32.gmra.mxu0 %v1858
    %v5549 = vpop.f32.mrf.mxu0
    %v5550 = vadd.f32 0.0, %v5549
    %5551 = vmatmul.f32.gmra.mxu0 %v1860
    %v5552 = vpop.f32.mrf.mxu0
    %v5553 = vadd.f32 0.0, %v5552
    %5554 = vmatmul.f32.gmra.mxu0 %v1862
    %v5555 = vpop.f32.mrf.mxu0
    %v5556 = vadd.f32 0.0, %v5555
    %5557 = vmatmul.f32.gmra.mxu0 %v1864
    %v5558 = vpop.f32.mrf.mxu0
    %v5559 = vadd.f32 0.0, %v5558
    %5560 = vmatmul.f32.gmra.mxu0 %v1866
    %v5561 = vpop.f32.mrf.mxu0
    %v5562 = vadd.f32 0.0, %v5561
    %5563 = vmatmul.f32.gmra.mxu0 %v1868
    %v5564 = vpop.f32.mrf.mxu0
    %v5565 = vadd.f32 0.0, %v5564
    %5566 = vmatmul.f32.gmra.mxu0 %v3669
    %v5567 = vpop.f32.mrf.mxu0
    %v5568 = vadd.f32 0.0, %v5567
    %5569 = vmatmul.f32.gmra.mxu0 %v5428
    %v5570 = vpop.f32.mrf.mxu0
    %v5571 = vadd.f32 0.0, %v5570
    %5572 = vmatmul.f32.gmra.mxu0 %v1874
    %v5573 = vpop.f32.mrf.mxu0
    %v5574 = vadd.f32 0.0, %v5573
    %5575 = vmatmul.f32.gmra.mxu0 %v1876
    %v5576 = vpop.f32.mrf.mxu0
    %v5577 = vadd.f32 0.0, %v5576
    %5578 = vmatmul.f32.gmra.mxu0 %v1878
    %v5579 = vpop.f32.mrf.mxu0
    %v5580 = vadd.f32 0.0, %v5579
    %5581 = vmatmul.f32.gmra.mxu0 %v1880
    %v5582 = vpop.f32.mrf.mxu0
    %v5583 = vadd.f32 0.0, %v5582
    %5584 = vmatmul.f32.gmra.mxu0 %v1882
    %v5585 = vpop.f32.mrf.mxu0
    %v5586 = vadd.f32 0.0, %v5585
    %5587 = vmatmul.f32.gmra.mxu0 %v1884
    %v5588 = vpop.f32.mrf.mxu0
    %v5589 = vadd.f32 0.0, %v5588
    %5590 = vmatmul.f32.gmra.mxu0 %v3671
    %v5591 = vpop.f32.mrf.mxu0
    %v5592 = vadd.f32 0.0, %v5591
    %5593 = vmatmul.f32.gmra.mxu0 %v5430
    %v5594 = vpop.f32.mrf.mxu0
    %v5595 = vadd.f32 0.0, %v5594
    %5596 = vmatmul.f32.gmra.mxu0 %v1890
    %v5597 = vpop.f32.mrf.mxu0
    %v5598 = vadd.f32 0.0, %v5597
    %5599 = vmatmul.f32.gmra.mxu0 %v1892
    %v5600 = vpop.f32.mrf.mxu0
    %v5601 = vadd.f32 0.0, %v5600
    %5602 = vmatmul.f32.gmra.mxu0 %v1894
    %v5603 = vpop.f32.mrf.mxu0
    %v5604 = vadd.f32 0.0, %v5603
    %5605 = vmatmul.f32.gmra.mxu0 %v1896
    %v5606 = vpop.f32.mrf.mxu0
    %v5607 = vadd.f32 0.0, %v5606
    %5608 = vmatmul.f32.gmra.mxu0 %v1898
    %v5609 = vpop.f32.mrf.mxu0
    %v5610 = vadd.f32 0.0, %v5609
    %5611 = vmatmul.f32.gmra.mxu0 %v1900
    %v5612 = vpop.f32.mrf.mxu0
    %v5613 = vadd.f32 0.0, %v5612
    %5614 = vmatmul.f32.gmra.mxu0 %v3673
    %v5615 = vpop.f32.mrf.mxu0
    %v5616 = vadd.f32 0.0, %v5615
    %5617 = vmatmul.f32.gmra.mxu0 %v5432
    %v5618 = vpop.f32.mrf.mxu0
    %v5619 = vadd.f32 0.0, %v5618
    %5620 = vmatmul.f32.gmra.mxu0 %v1906
    %v5621 = vpop.f32.mrf.mxu0
    %v5622 = vadd.f32 0.0, %v5621
    %5623 = vmatmul.f32.gmra.mxu0 %v1908
    %v5624 = vpop.f32.mrf.mxu0
    %v5625 = vadd.f32 0.0, %v5624
    %5626 = vmatmul.f32.gmra.mxu0 %v1910
    %v5627 = vpop.f32.mrf.mxu0
    %v5628 = vadd.f32 0.0, %v5627
    %5629 = vmatmul.f32.gmra.mxu0 %v1912
    %v5630 = vpop.f32.mrf.mxu0
    %v5631 = vadd.f32 0.0, %v5630
    %5632 = vmatmul.f32.gmra.mxu0 %v1914
    %v5633 = vpop.f32.mrf.mxu0
    %v5634 = vadd.f32 0.0, %v5633
    %5635 = vmatmul.f32.gmra.mxu0 %v1916
    %v5636 = vpop.f32.mrf.mxu0
    %v5637 = vadd.f32 0.0, %v5636
    %5638 = vmatmul.f32.gmra.mxu0 %v3675
    %v5639 = vpop.f32.mrf.mxu0
    %v5640 = vadd.f32 0.0, %v5639
    %5641 = vmatmul.f32.gmra.mxu0 %v5434
    %v5642 = vpop.f32.mrf.mxu0
    %v5643 = vadd.f32 0.0, %v5642
    %5644 = vdwg.mxu0
    %5645 = vmatpush.msra.mxu0 0.0
    %5646 = vmatpush.msra.mxu0 0.0
    %5647 = vmatpush.msra.mxu0 0.0
    %5648 = vmatpush.msra.mxu0 0.0
    %5649 = vmatpush.msra.mxu0 0.0
    %5650 = vmatpush.msra.mxu0 0.0
    %5651 = vmatpush.msra.mxu0 0.0
    %5652 = vmatpush.msra.mxu0 0.0
    %5653 = vmatpush.msra.mxu0 0.0
    %5654 = vmatpush.msra.mxu0 0.0
    %5655 = vmatpush.msra.mxu0 0.0
    %5656 = vmatpush.msra.mxu0 0.0
    %5657 = vmatpush.msra.mxu0 0.0
    %5658 = vmatpush.msra.mxu0 0.0
    %5659 = vmatpush.msra.mxu0 0.0
    %5660 = vmatpush.msra.mxu0 %v5419
    %5661 = vmatmul.f32.gmra.mxu0 %v1794
    %v5662 = vpop.f32.mrf.mxu0
    %v5663 = vadd.f32 0.0, %v5662
    %5664 = vmatmul.f32.gmra.mxu0 %v1796
    %v5665 = vpop.f32.mrf.mxu0
    %v5666 = vadd.f32 0.0, %v5665
    %5667 = vmatmul.f32.gmra.mxu0 %v1798
    %v5668 = vpop.f32.mrf.mxu0
    %v5669 = vadd.f32 0.0, %v5668
    %5670 = vmatmul.f32.gmra.mxu0 %v1800
    %v5671 = vpop.f32.mrf.mxu0
    %v5672 = vadd.f32 0.0, %v5671
    %5673 = vmatmul.f32.gmra.mxu0 %v1802
    %v5674 = vpop.f32.mrf.mxu0
    %v5675 = vadd.f32 0.0, %v5674
    %5676 = vmatmul.f32.gmra.mxu0 %v1804
    %v5677 = vpop.f32.mrf.mxu0
    %v5678 = vadd.f32 0.0, %v5677
    %5679 = vmatmul.f32.gmra.mxu0 %v3661
    %v5680 = vpop.f32.mrf.mxu0
    %v5681 = vadd.f32 0.0, %v5680
    %5682 = vmatmul.f32.gmra.mxu0 %v5420
    %v5683 = vpop.f32.mrf.mxu0
    %v5684 = vadd.f32 0.0, %v5683
    %5685 = vmatmul.f32.gmra.mxu0 %v1810
    %v5686 = vpop.f32.mrf.mxu0
    %v5687 = vadd.f32 0.0, %v5686
    %5688 = vmatmul.f32.gmra.mxu0 %v1812
    %v5689 = vpop.f32.mrf.mxu0
    %v5690 = vadd.f32 0.0, %v5689
    %5691 = vmatmul.f32.gmra.mxu0 %v1814
    %v5692 = vpop.f32.mrf.mxu0
    %v5693 = vadd.f32 0.0, %v5692
    %5694 = vmatmul.f32.gmra.mxu0 %v1816
    %v5695 = vpop.f32.mrf.mxu0
    %v5696 = vadd.f32 0.0, %v5695
    %5697 = vmatmul.f32.gmra.mxu0 %v1818
    %v5698 = vpop.f32.mrf.mxu0
    %v5699 = vadd.f32 0.0, %v5698
    %5700 = vmatmul.f32.gmra.mxu0 %v1820
    %v5701 = vpop.f32.mrf.mxu0
    %v5702 = vadd.f32 0.0, %v5701
    %5703 = vmatmul.f32.gmra.mxu0 %v3663
    %v5704 = vpop.f32.mrf.mxu0
    %v5705 = vadd.f32 0.0, %v5704
    %5706 = vmatmul.f32.gmra.mxu0 %v5422
    %v5707 = vpop.f32.mrf.mxu0
    %v5708 = vadd.f32 0.0, %v5707
    %5709 = vmatmul.f32.gmra.mxu0 %v1826
    %v5710 = vpop.f32.mrf.mxu0
    %v5711 = vadd.f32 0.0, %v5710
    %5712 = vmatmul.f32.gmra.mxu0 %v1828
    %v5713 = vpop.f32.mrf.mxu0
    %v5714 = vadd.f32 0.0, %v5713
    %5715 = vmatmul.f32.gmra.mxu0 %v1830
    %v5716 = vpop.f32.mrf.mxu0
    %v5717 = vadd.f32 0.0, %v5716
    %5718 = vmatmul.f32.gmra.mxu0 %v1832
    %v5719 = vpop.f32.mrf.mxu0
    %v5720 = vadd.f32 0.0, %v5719
    %5721 = vmatmul.f32.gmra.mxu0 %v1834
    %v5722 = vpop.f32.mrf.mxu0
    %v5723 = vadd.f32 0.0, %v5722
    %5724 = vmatmul.f32.gmra.mxu0 %v1836
    %v5725 = vpop.f32.mrf.mxu0
    %v5726 = vadd.f32 0.0, %v5725
    %5727 = vmatmul.f32.gmra.mxu0 %v3665
    %v5728 = vpop.f32.mrf.mxu0
    %v5729 = vadd.f32 0.0, %v5728
    %5730 = vmatmul.f32.gmra.mxu0 %v5424
    %v5731 = vpop.f32.mrf.mxu0
    %v5732 = vadd.f32 0.0, %v5731
    %5733 = vmatmul.f32.gmra.mxu0 %v1842
    %v5734 = vpop.f32.mrf.mxu0
    %v5735 = vadd.f32 0.0, %v5734
    %5736 = vmatmul.f32.gmra.mxu0 %v1844
    %v5737 = vpop.f32.mrf.mxu0
    %v5738 = vadd.f32 0.0, %v5737
    %5739 = vmatmul.f32.gmra.mxu0 %v1846
    %v5740 = vpop.f32.mrf.mxu0
    %v5741 = vadd.f32 0.0, %v5740
    %5742 = vmatmul.f32.gmra.mxu0 %v1848
    %v5743 = vpop.f32.mrf.mxu0
    %v5744 = vadd.f32 0.0, %v5743
    %5745 = vmatmul.f32.gmra.mxu0 %v1850
    %v5746 = vpop.f32.mrf.mxu0
    %v5747 = vadd.f32 0.0, %v5746
    %5748 = vmatmul.f32.gmra.mxu0 %v1852
    %v5749 = vpop.f32.mrf.mxu0
    %v5750 = vadd.f32 0.0, %v5749
    %5751 = vmatmul.f32.gmra.mxu0 %v3667
    %v5752 = vpop.f32.mrf.mxu0
    %v5753 = vadd.f32 0.0, %v5752
    %5754 = vmatmul.f32.gmra.mxu0 %v5426
    %v5755 = vpop.f32.mrf.mxu0
    %v5756 = vadd.f32 0.0, %v5755
    %5757 = vmatmul.f32.gmra.mxu0 %v1858
    %v5758 = vpop.f32.mrf.mxu0
    %v5759 = vadd.f32 0.0, %v5758
    %5760 = vmatmul.f32.gmra.mxu0 %v1860
    %v5761 = vpop.f32.mrf.mxu0
    %v5762 = vadd.f32 0.0, %v5761
    %5763 = vmatmul.f32.gmra.mxu0 %v1862
    %v5764 = vpop.f32.mrf.mxu0
    %v5765 = vadd.f32 0.0, %v5764
    %5766 = vmatmul.f32.gmra.mxu0 %v1864
    %v5767 = vpop.f32.mrf.mxu0
    %v5768 = vadd.f32 0.0, %v5767
    %5769 = vmatmul.f32.gmra.mxu0 %v1866
    %v5770 = vpop.f32.mrf.mxu0
    %v5771 = vadd.f32 0.0, %v5770
    %5772 = vmatmul.f32.gmra.mxu0 %v1868
    %v5773 = vpop.f32.mrf.mxu0
    %v5774 = vadd.f32 0.0, %v5773
    %5775 = vmatmul.f32.gmra.mxu0 %v3669
    %v5776 = vpop.f32.mrf.mxu0
    %v5777 = vadd.f32 0.0, %v5776
    %5778 = vmatmul.f32.gmra.mxu0 %v5428
    %v5779 = vpop.f32.mrf.mxu0
    %v5780 = vadd.f32 0.0, %v5779
    %5781 = vmatmul.f32.gmra.mxu0 %v1874
    %v5782 = vpop.f32.mrf.mxu0
    %v5783 = vadd.f32 0.0, %v5782
    %5784 = vmatmul.f32.gmra.mxu0 %v1876
    %v5785 = vpop.f32.mrf.mxu0
    %v5786 = vadd.f32 0.0, %v5785
    %5787 = vmatmul.f32.gmra.mxu0 %v1878
    %v5788 = vpop.f32.mrf.mxu0
    %v5789 = vadd.f32 0.0, %v5788
    %5790 = vmatmul.f32.gmra.mxu0 %v1880
    %v5791 = vpop.f32.mrf.mxu0
    %v5792 = vadd.f32 0.0, %v5791
    %5793 = vmatmul.f32.gmra.mxu0 %v1882
    %v5794 = vpop.f32.mrf.mxu0
    %v5795 = vadd.f32 0.0, %v5794
    %5796 = vmatmul.f32.gmra.mxu0 %v1884
    %v5797 = vpop.f32.mrf.mxu0
    %v5798 = vadd.f32 0.0, %v5797
    %5799 = vmatmul.f32.gmra.mxu0 %v3671
    %v5800 = vpop.f32.mrf.mxu0
    %v5801 = vadd.f32 0.0, %v5800
    %5802 = vmatmul.f32.gmra.mxu0 %v5430
    %v5803 = vpop.f32.mrf.mxu0
    %v5804 = vadd.f32 0.0, %v5803
    %5805 = vmatmul.f32.gmra.mxu0 %v1890
    %v5806 = vpop.f32.mrf.mxu0
    %v5807 = vadd.f32 0.0, %v5806
    %5808 = vmatmul.f32.gmra.mxu0 %v1892
    %v5809 = vpop.f32.mrf.mxu0
    %v5810 = vadd.f32 0.0, %v5809
    %5811 = vmatmul.f32.gmra.mxu0 %v1894
    %v5812 = vpop.f32.mrf.mxu0
    %v5813 = vadd.f32 0.0, %v5812
    %5814 = vmatmul.f32.gmra.mxu0 %v1896
    %v5815 = vpop.f32.mrf.mxu0
    %v5816 = vadd.f32 0.0, %v5815
    %5817 = vmatmul.f32.gmra.mxu0 %v1898
    %v5818 = vpop.f32.mrf.mxu0
    %v5819 = vadd.f32 0.0, %v5818
    %5820 = vmatmul.f32.gmra.mxu0 %v1900
    %v5821 = vpop.f32.mrf.mxu0
    %v5822 = vadd.f32 0.0, %v5821
    %5823 = vmatmul.f32.gmra.mxu0 %v3673
    %v5824 = vpop.f32.mrf.mxu0
    %v5825 = vadd.f32 0.0, %v5824
    %5826 = vmatmul.f32.gmra.mxu0 %v5432
    %v5827 = vpop.f32.mrf.mxu0
    %v5828 = vadd.f32 0.0, %v5827
    %5829 = vmatmul.f32.gmra.mxu0 %v1906
    %v5830 = vpop.f32.mrf.mxu0
    %v5831 = vadd.f32 0.0, %v5830
    %5832 = vmatmul.f32.gmra.mxu0 %v1908
    %v5833 = vpop.f32.mrf.mxu0
    %v5834 = vadd.f32 0.0, %v5833
    %5835 = vmatmul.f32.gmra.mxu0 %v1910
    %v5836 = vpop.f32.mrf.mxu0
    %v5837 = vadd.f32 0.0, %v5836
    %5838 = vmatmul.f32.gmra.mxu0 %v1912
    %v5839 = vpop.f32.mrf.mxu0
    %v5840 = vadd.f32 0.0, %v5839
    %5841 = vmatmul.f32.gmra.mxu0 %v1914
    %v5842 = vpop.f32.mrf.mxu0
    %v5843 = vadd.f32 0.0, %v5842
    %5844 = vmatmul.f32.gmra.mxu0 %v1916
    %v5845 = vpop.f32.mrf.mxu0
    %v5846 = vadd.f32 0.0, %v5845
    %5847 = vmatmul.f32.gmra.mxu0 %v3675
    %v5848 = vpop.f32.mrf.mxu0
    %v5849 = vadd.f32 0.0, %v5848
    %5850 = vmatmul.f32.gmra.mxu0 %v5434
    %v5851 = vpop.f32.mrf.mxu0
    %v5852 = vadd.f32 0.0, %v5851
    %5853 = vdwg.mxu0
    %v5854 = vadd.f32 %v5265, %v5454
    %v5855 = vadd.f32 %v5266, %v5663
    %v5856 = vadd.f32 %v5267, %v5457
    %v5857 = vadd.f32 %v5268, %v5666
    %v5858 = vadd.f32 %v5269, %v5460
    %v5859 = vadd.f32 %v5270, %v5669
    %v5860 = vadd.f32 %v5271, %v5463
    %v5861 = vadd.f32 %v5272, %v5672
    %v5862 = vadd.f32 %v5273, %v5466
    %v5863 = vadd.f32 %v5274, %v5675
    %v5864 = vadd.f32 %v5275, %v5469
    %v5865 = vadd.f32 %v5276, %v5678
    %v5866 = vadd.f32 %v5277, %v5472
    %v5867 = vadd.f32 %v5278, %v5681
    %v5868 = vadd.f32 %v5279, %v5475
    %v5869 = vadd.f32 %v5280, %v5684
    %v5870 = vadd.f32 %v5281, %v5478
    %v5871 = vadd.f32 %v5282, %v5687
    %v5872 = vadd.f32 %v5283, %v5481
    %v5873 = vadd.f32 %v5284, %v5690
    %v5874 = vadd.f32 %v5285, %v5484
    %v5875 = vadd.f32 %v5286, %v5693
    %v5876 = vadd.f32 %v5287, %v5487
    %v5877 = vadd.f32 %v5288, %v5696
    %v5878 = vadd.f32 %v5289, %v5490
    %v5879 = vadd.f32 %v5290, %v5699
    %v5880 = vadd.f32 %v5291, %v5493
    %v5881 = vadd.f32 %v5292, %v5702
    %v5882 = vadd.f32 %v5293, %v5496
    %v5883 = vadd.f32 %v5294, %v5705
    %v5884 = vadd.f32 %v5295, %v5499
    %v5885 = vadd.f32 %v5296, %v5708
    %v5886 = vadd.f32 %v5297, %v5502
    %v5887 = vadd.f32 %v5298, %v5711
    %v5888 = vadd.f32 %v5299, %v5505
    %v5889 = vadd.f32 %v5300, %v5714
    %v5890 = vadd.f32 %v5301, %v5508
    %v5891 = vadd.f32 %v5302, %v5717
    %v5892 = vadd.f32 %v5303, %v5511
    %v5893 = vadd.f32 %v5304, %v5720
    %v5894 = vadd.f32 %v5305, %v5514
    %v5895 = vadd.f32 %v5306, %v5723
    %v5896 = vadd.f32 %v5307, %v5517
    %v5897 = vadd.f32 %v5308, %v5726
    %v5898 = vadd.f32 %v5309, %v5520
    %v5899 = vadd.f32 %v5310, %v5729
    %v5900 = vadd.f32 %v5311, %v5523
    %v5901 = vadd.f32 %v5312, %v5732
    %v5902 = vadd.f32 %v5313, %v5526
    %v5903 = vadd.f32 %v5314, %v5735
    %v5904 = vadd.f32 %v5315, %v5529
    %v5905 = vadd.f32 %v5316, %v5738
    %v5906 = vadd.f32 %v5317, %v5532
    %v5907 = vadd.f32 %v5318, %v5741
    %v5908 = vadd.f32 %v5319, %v5535
    %v5909 = vadd.f32 %v5320, %v5744
    %v5910 = vadd.f32 %v5321, %v5538
    %v5911 = vadd.f32 %v5322, %v5747
    %v5912 = vadd.f32 %v5323, %v5541
    %v5913 = vadd.f32 %v5324, %v5750
    %v5914 = vadd.f32 %v5325, %v5544
    %v5915 = vadd.f32 %v5326, %v5753
    %v5916 = vadd.f32 %v5327, %v5547
    %v5917 = vadd.f32 %v5328, %v5756
    %v5918 = vadd.f32 %v5329, %v5550
    %v5919 = vadd.f32 %v5330, %v5759
    %v5920 = vadd.f32 %v5331, %v5553
    %v5921 = vadd.f32 %v5332, %v5762
    %v5922 = vadd.f32 %v5333, %v5556
    %v5923 = vadd.f32 %v5334, %v5765
    %v5924 = vadd.f32 %v5335, %v5559
    %v5925 = vadd.f32 %v5336, %v5768
    %v5926 = vadd.f32 %v5337, %v5562
    %v5927 = vadd.f32 %v5338, %v5771
    %v5928 = vadd.f32 %v5339, %v5565
    %v5929 = vadd.f32 %v5340, %v5774
    %v5930 = vadd.f32 %v5341, %v5568
    %v5931 = vadd.f32 %v5342, %v5777
    %v5932 = vadd.f32 %v5343, %v5571
    %v5933 = vadd.f32 %v5344, %v5780
    %v5934 = vadd.f32 %v5345, %v5574
    %v5935 = vadd.f32 %v5346, %v5783
    %v5936 = vadd.f32 %v5347, %v5577
    %v5937 = vadd.f32 %v5348, %v5786
    %v5938 = vadd.f32 %v5349, %v5580
    %v5939 = vadd.f32 %v5350, %v5789
    %v5940 = vadd.f32 %v5351, %v5583
    %v5941 = vadd.f32 %v5352, %v5792
    %v5942 = vadd.f32 %v5353, %v5586
    %v5943 = vadd.f32 %v5354, %v5795
    %v5944 = vadd.f32 %v5355, %v5589
    %v5945 = vadd.f32 %v5356, %v5798
    %v5946 = vadd.f32 %v5357, %v5592
    %v5947 = vadd.f32 %v5358, %v5801
    %v5948 = vadd.f32 %v5359, %v5595
    %v5949 = vadd.f32 %v5360, %v5804
    %v5950 = vadd.f32 %v5361, %v5598
    %v5951 = vadd.f32 %v5362, %v5807
    %v5952 = vadd.f32 %v5363, %v5601
    %v5953 = vadd.f32 %v5364, %v5810
    %v5954 = vadd.f32 %v5365, %v5604
    %v5955 = vadd.f32 %v5366, %v5813
    %v5956 = vadd.f32 %v5367, %v5607
    %v5957 = vadd.f32 %v5368, %v5816
    %v5958 = vadd.f32 %v5369, %v5610
    %v5959 = vadd.f32 %v5370, %v5819
    %v5960 = vadd.f32 %v5371, %v5613
    %v5961 = vadd.f32 %v5372, %v5822
    %v5962 = vadd.f32 %v5373, %v5616
    %v5963 = vadd.f32 %v5374, %v5825
    %v5964 = vadd.f32 %v5375, %v5619
    %v5965 = vadd.f32 %v5376, %v5828
    %v5966 = vadd.f32 %v5377, %v5622
    %v5967 = vadd.f32 %v5378, %v5831
    %v5968 = vadd.f32 %v5379, %v5625
    %v5969 = vadd.f32 %v5380, %v5834
    %v5970 = vadd.f32 %v5381, %v5628
    %v5971 = vadd.f32 %v5382, %v5837
    %v5972 = vadd.f32 %v5383, %v5631
    %v5973 = vadd.f32 %v5384, %v5840
    %v5974 = vadd.f32 %v5385, %v5634
    %v5975 = vadd.f32 %v5386, %v5843
    %v5976 = vadd.f32 %v5387, %v5637
    %v5977 = vadd.f32 %v5388, %v5846
    %v5978 = vadd.f32 %v5389, %v5640
    %v5979 = vadd.f32 %v5390, %v5849
    %v5980 = vadd.f32 %v5391, %v5643
    %v5981 = vadd.f32 %v5392, %v5852
    %p5982 = scmp.eq.s32.totalorder 0, 0
    // Predicated region
    $region10: #{tpu_custom_call.1} parent=1 // pred_check
      %p5983 = pneg %p5982
    $region11: #{tpu_custom_call.1} parent=1 // pred_check_branch
      %5985 = sbr.rel (%p5983) target = $region13
    $region12: #{tpu_custom_call.1} parent=1 // pred_region
      %v5986 = vlaneseq
      %vm5987 = vcmp.ge.s32.totalorder %v5986, 0
      %vm5988 = vcmp.lt.s32.totalorder %v5986, 256
      %vm5989 = vmand %vm5987, %vm5988
      %5990 = vst.msk [vmem:[#allocation2] sm:$0x3] %vm5989, 0.0
      %5991 = vst.msk [vmem:[#allocation4] sm:$0x3] %vm5989, 0.0
    $region13: #{tpu_custom_call.1} parent=1 // pred_fallthru
      _
    %v5992 = vld [vmem:[#allocation2] sm:$0x3]
    %v5993 = vadd.f32 %v5854, %v5856
    %v5994 = vadd.f32 %v5993, %v5858
    %v5995 = vadd.f32 %v5994, %v5860
    %v5996 = vadd.f32 %v5995, %v5862
    %v5997 = vadd.f32 %v5996, %v5864
    %v5998 = vadd.f32 %v5997, %v5866
    %v5999 = vadd.f32 %v5998, %v5868
    %v6000 = vadd.f32 %v5999, %v5870
    %v6001 = vadd.f32 %v6000, %v5872
    %v6002 = vadd.f32 %v6001, %v5874
    %v6003 = vadd.f32 %v6002, %v5876
    %v6004 = vadd.f32 %v6003, %v5878
    %v6005 = vadd.f32 %v6004, %v5880
    %v6006 = vadd.f32 %v6005, %v5882
    %v6007 = vadd.f32 %v6006, %v5884
    %v6008 = vadd.f32 %v6007, %v5886
    %v6009 = vadd.f32 %v6008, %v5888
    %v6010 = vadd.f32 %v6009, %v5890
    %v6011 = vadd.f32 %v6010, %v5892
    %v6012 = vadd.f32 %v6011, %v5894
    %v6013 = vadd.f32 %v6012, %v5896
    %v6014 = vadd.f32 %v6013, %v5898
    %v6015 = vadd.f32 %v6014, %v5900
    %v6016 = vadd.f32 %v6015, %v5902
    %v6017 = vadd.f32 %v6016, %v5904
    %v6018 = vadd.f32 %v6017, %v5906
    %v6019 = vadd.f32 %v6018, %v5908
    %v6020 = vadd.f32 %v6019, %v5910
    %v6021 = vadd.f32 %v6020, %v5912
    %v6022 = vadd.f32 %v6021, %v5914
    %v6023 = vadd.f32 %v6022, %v5916
    %v6024 = vadd.f32 %v6023, %v5918
    %v6025 = vadd.f32 %v6024, %v5920
    %v6026 = vadd.f32 %v6025, %v5922
    %v6027 = vadd.f32 %v6026, %v5924
    %v6028 = vadd.f32 %v6027, %v5926
    %v6029 = vadd.f32 %v6028, %v5928
    %v6030 = vadd.f32 %v6029, %v5930
    %v6031 = vadd.f32 %v6030, %v5932
    %v6032 = vadd.f32 %v6031, %v5934
    %v6033 = vadd.f32 %v6032, %v5936
    %v6034 = vadd.f32 %v6033, %v5938
    %v6035 = vadd.f32 %v6034, %v5940
    %v6036 = vadd.f32 %v6035, %v5942
    %v6037 = vadd.f32 %v6036, %v5944
    %v6038 = vadd.f32 %v6037, %v5946
    %v6039 = vadd.f32 %v6038, %v5948
    %v6040 = vadd.f32 %v6039, %v5950
    %v6041 = vadd.f32 %v6040, %v5952
    %v6042 = vadd.f32 %v6041, %v5954
    %v6043 = vadd.f32 %v6042, %v5956
    %v6044 = vadd.f32 %v6043, %v5958
    %v6045 = vadd.f32 %v6044, %v5960
    %v6046 = vadd.f32 %v6045, %v5962
    %v6047 = vadd.f32 %v6046, %v5964
    %v6048 = vadd.f32 %v6047, %v5966
    %v6049 = vadd.f32 %v6048, %v5968
    %v6050 = vadd.f32 %v6049, %v5970
    %v6051 = vadd.f32 %v6050, %v5972
    %v6052 = vadd.f32 %v6051, %v5974
    %v6053 = vadd.f32 %v6052, %v5976
    %v6054 = vadd.f32 %v6053, %v5978
    %v6055 = vadd.f32 %v6054, %v5980
    %v6056 = vrot.slane %v6055, 4
    %v6057 = vadd.f32 %v6055, %v6056
    %v6058 = vrot.slane %v6057, 2
    %v6059 = vadd.f32 %v6057, %v6058
    %v6060 = vrot.slane %v6059, 1
    %v6061 = vadd.f32 %v6059, %v6060
    %v6062 = vadd.f32 %v5855, %v5857
    %v6063 = vadd.f32 %v6062, %v5859
    %v6064 = vadd.f32 %v6063, %v5861
    %v6065 = vadd.f32 %v6064, %v5863
    %v6066 = vadd.f32 %v6065, %v5865
    %v6067 = vadd.f32 %v6066, %v5867
    %v6068 = vadd.f32 %v6067, %v5869
    %v6069 = vadd.f32 %v6068, %v5871
    %v6070 = vadd.f32 %v6069, %v5873
    %v6071 = vadd.f32 %v6070, %v5875
    %v6072 = vadd.f32 %v6071, %v5877
    %v6073 = vadd.f32 %v6072, %v5879
    %v6074 = vadd.f32 %v6073, %v5881
    %v6075 = vadd.f32 %v6074, %v5883
    %v6076 = vadd.f32 %v6075, %v5885
    %v6077 = vadd.f32 %v6076, %v5887
    %v6078 = vadd.f32 %v6077, %v5889
    %v6079 = vadd.f32 %v6078, %v5891
    %v6080 = vadd.f32 %v6079, %v5893
    %v6081 = vadd.f32 %v6080, %v5895
    %v6082 = vadd.f32 %v6081, %v5897
    %v6083 = vadd.f32 %v6082, %v5899
    %v6084 = vadd.f32 %v6083, %v5901
    %v6085 = vadd.f32 %v6084, %v5903
    %v6086 = vadd.f32 %v6085, %v5905
    %v6087 = vadd.f32 %v6086, %v5907
    %v6088 = vadd.f32 %v6087, %v5909
    %v6089 = vadd.f32 %v6088, %v5911
    %v6090 = vadd.f32 %v6089, %v5913
    %v6091 = vadd.f32 %v6090, %v5915
    %v6092 = vadd.f32 %v6091, %v5917
    %v6093 = vadd.f32 %v6092, %v5919
    %v6094 = vadd.f32 %v6093, %v5921
    %v6095 = vadd.f32 %v6094, %v5923
    %v6096 = vadd.f32 %v6095, %v5925
    %v6097 = vadd.f32 %v6096, %v5927
    %v6098 = vadd.f32 %v6097, %v5929
    %v6099 = vadd.f32 %v6098, %v5931
    %v6100 = vadd.f32 %v6099, %v5933
    %v6101 = vadd.f32 %v6100, %v5935
    %v6102 = vadd.f32 %v6101, %v5937
    %v6103 = vadd.f32 %v6102, %v5939
    %v6104 = vadd.f32 %v6103, %v5941
    %v6105 = vadd.f32 %v6104, %v5943
    %v6106 = vadd.f32 %v6105, %v5945
    %v6107 = vadd.f32 %v6106, %v5947
    %v6108 = vadd.f32 %v6107, %v5949
    %v6109 = vadd.f32 %v6108, %v5951
    %v6110 = vadd.f32 %v6109, %v5953
    %v6111 = vadd.f32 %v6110, %v5955
    %v6112 = vadd.f32 %v6111, %v5957
    %v6113 = vadd.f32 %v6112, %v5959
    %v6114 = vadd.f32 %v6113, %v5961
    %v6115 = vadd.f32 %v6114, %v5963
    %v6116 = vadd.f32 %v6115, %v5965
    %v6117 = vadd.f32 %v6116, %v5967
    %v6118 = vadd.f32 %v6117, %v5969
    %v6119 = vadd.f32 %v6118, %v5971
    %v6120 = vadd.f32 %v6119, %v5973
    %v6121 = vadd.f32 %v6120, %v5975
    %v6122 = vadd.f32 %v6121, %v5977
    %v6123 = vadd.f32 %v6122, %v5979
    %v6124 = vadd.f32 %v6123, %v5981
    %v6125 = vrot.slane %v6124, 4
    %v6126 = vadd.f32 %v6124, %v6125
    %v6127 = vrot.slane %v6126, 2
    %v6128 = vadd.f32 %v6126, %v6127
    %v6129 = vrot.slane %v6128, 1
    %v6130 = vadd.f32 %v6128, %v6129
    %v6133 = vrot.slane %v6130, 7
    %vm6134 = vcmask 1040384
    %v6135 = vsel %vm6134, %v6061, %v6133
    %v6137 = vadd.f32 %v5992, %v6135
    %v6138 = vlaneseq
    %vm6139 = vcmp.ge.s32.totalorder %v6138, 0
    %vm6140 = vcmp.lt.s32.totalorder %v6138, 256
    %vm6141 = vmand %vm6139, %vm6140
    %6142 = vst.msk [vmem:[#allocation2] sm:$0x3] %vm6141, %v6137
    %v6143 = vld [vmem:[#allocation4] sm:$0x3]
    %v6144 = vmul.f32 %v5854, %v5854
    %v6145 = vmul.f32 %v5855, %v5855
    %v6146 = vmul.f32 %v5856, %v5856
    %v6147 = vmul.f32 %v5857, %v5857
    %v6148 = vmul.f32 %v5858, %v5858
    %v6149 = vmul.f32 %v5859, %v5859
    %v6150 = vmul.f32 %v5860, %v5860
    %v6151 = vmul.f32 %v5861, %v5861
    %v6152 = vmul.f32 %v5862, %v5862
    %v6153 = vmul.f32 %v5863, %v5863
    %v6154 = vmul.f32 %v5864, %v5864
    %v6155 = vmul.f32 %v5865, %v5865
    %v6156 = vmul.f32 %v5866, %v5866
    %v6157 = vmul.f32 %v5867, %v5867
    %v6158 = vmul.f32 %v5868, %v5868
    %v6159 = vmul.f32 %v5869, %v5869
    %v6160 = vmul.f32 %v5870, %v5870
    %v6161 = vmul.f32 %v5871, %v5871
    %v6162 = vmul.f32 %v5872, %v5872
    %v6163 = vmul.f32 %v5873, %v5873
    %v6164 = vmul.f32 %v5874, %v5874
    %v6165 = vmul.f32 %v5875, %v5875
    %v6166 = vmul.f32 %v5876, %v5876
    %v6167 = vmul.f32 %v5877, %v5877
    %v6168 = vmul.f32 %v5878, %v5878
    %v6169 = vmul.f32 %v5879, %v5879
    %v6170 = vmul.f32 %v5880, %v5880
    %v6171 = vmul.f32 %v5881, %v5881
    %v6172 = vmul.f32 %v5882, %v5882
    %v6173 = vmul.f32 %v5883, %v5883
    %v6174 = vmul.f32 %v5884, %v5884
    %v6175 = vmul.f32 %v5885, %v5885
    %v6176 = vmul.f32 %v5886, %v5886
    %v6177 = vmul.f32 %v5887, %v5887
    %v6178 = vmul.f32 %v5888, %v5888
    %v6179 = vmul.f32 %v5889, %v5889
    %v6180 = vmul.f32 %v5890, %v5890
    %v6181 = vmul.f32 %v5891, %v5891
    %v6182 = vmul.f32 %v5892, %v5892
    %v6183 = vmul.f32 %v5893, %v5893
    %v6184 = vmul.f32 %v5894, %v5894
    %v6185 = vmul.f32 %v5895, %v5895
    %v6186 = vmul.f32 %v5896, %v5896
    %v6187 = vmul.f32 %v5897, %v5897
    %v6188 = vmul.f32 %v5898, %v5898
    %v6189 = vmul.f32 %v5899, %v5899
    %v6190 = vmul.f32 %v5900, %v5900
    %v6191 = vmul.f32 %v5901, %v5901
    %v6192 = vmul.f32 %v5902, %v5902
    %v6193 = vmul.f32 %v5903, %v5903
    %v6194 = vmul.f32 %v5904, %v5904
    %v6195 = vmul.f32 %v5905, %v5905
    %v6196 = vmul.f32 %v5906, %v5906
    %v6197 = vmul.f32 %v5907, %v5907
    %v6198 = vmul.f32 %v5908, %v5908
    %v6199 = vmul.f32 %v5909, %v5909
    %v6200 = vmul.f32 %v5910, %v5910
    %v6201 = vmul.f32 %v5911, %v5911
    %v6202 = vmul.f32 %v5912, %v5912
    %v6203 = vmul.f32 %v5913, %v5913
    %v6204 = vmul.f32 %v5914, %v5914
    %v6205 = vmul.f32 %v5915, %v5915
    %v6206 = vmul.f32 %v5916, %v5916
    %v6207 = vmul.f32 %v5917, %v5917
    %v6208 = vmul.f32 %v5918, %v5918
    %v6209 = vmul.f32 %v5919, %v5919
    %v6210 = vmul.f32 %v5920, %v5920
    %v6211 = vmul.f32 %v5921, %v5921
    %v6212 = vmul.f32 %v5922, %v5922
    %v6213 = vmul.f32 %v5923, %v5923
    %v6214 = vmul.f32 %v5924, %v5924
    %v6215 = vmul.f32 %v5925, %v5925
    %v6216 = vmul.f32 %v5926, %v5926
    %v6217 = vmul.f32 %v5927, %v5927
    %v6218 = vmul.f32 %v5928, %v5928
    %v6219 = vmul.f32 %v5929, %v5929
    %v6220 = vmul.f32 %v5930, %v5930
    %v6221 = vmul.f32 %v5931, %v5931
    %v6222 = vmul.f32 %v5932, %v5932
    %v6223 = vmul.f32 %v5933, %v5933
    %v6224 = vmul.f32 %v5934, %v5934
    %v6225 = vmul.f32 %v5935, %v5935
    %v6226 = vmul.f32 %v5936, %v5936
    %v6227 = vmul.f32 %v5937, %v5937
    %v6228 = vmul.f32 %v5938, %v5938
    %v6229 = vmul.f32 %v5939, %v5939
    %v6230 = vmul.f32 %v5940, %v5940
    %v6231 = vmul.f32 %v5941, %v5941
    %v6232 = vmul.f32 %v5942, %v5942
    %v6233 = vmul.f32 %v5943, %v5943
    %v6234 = vmul.f32 %v5944, %v5944
    %v6235 = vmul.f32 %v5945, %v5945
    %v6236 = vmul.f32 %v5946, %v5946
    %v6237 = vmul.f32 %v5947, %v5947
    %v6238 = vmul.f32 %v5948, %v5948
    %v6239 = vmul.f32 %v5949, %v5949
    %v6240 = vmul.f32 %v5950, %v5950
    %v6241 = vmul.f32 %v5951, %v5951
    %v6242 = vmul.f32 %v5952, %v5952
    %v6243 = vmul.f32 %v5953, %v5953
    %v6244 = vmul.f32 %v5954, %v5954
    %v6245 = vmul.f32 %v5955, %v5955
    %v6246 = vmul.f32 %v5956, %v5956
    %v6247 = vmul.f32 %v5957, %v5957
    %v6248 = vmul.f32 %v5958, %v5958
    %v6249 = vmul.f32 %v5959, %v5959
    %v6250 = vmul.f32 %v5960, %v5960
    %v6251 = vmul.f32 %v5961, %v5961
    %v6252 = vmul.f32 %v5962, %v5962
    %v6253 = vmul.f32 %v5963, %v5963
    %v6254 = vmul.f32 %v5964, %v5964
    %v6255 = vmul.f32 %v5965, %v5965
    %v6256 = vmul.f32 %v5966, %v5966
    %v6257 = vmul.f32 %v5967, %v5967
    %v6258 = vmul.f32 %v5968, %v5968
    %v6259 = vmul.f32 %v5969, %v5969
    %v6260 = vmul.f32 %v5970, %v5970
    %v6261 = vmul.f32 %v5971, %v5971
    %v6262 = vmul.f32 %v5972, %v5972
    %v6263 = vmul.f32 %v5973, %v5973
    %v6264 = vmul.f32 %v5974, %v5974
    %v6265 = vmul.f32 %v5975, %v5975
    %v6266 = vmul.f32 %v5976, %v5976
    %v6267 = vmul.f32 %v5977, %v5977
    %v6268 = vmul.f32 %v5978, %v5978
    %v6269 = vmul.f32 %v5979, %v5979
    %v6270 = vmul.f32 %v5980, %v5980
    %v6271 = vmul.f32 %v5981, %v5981
    %v6272 = vadd.f32 %v6144, %v6146
    %v6273 = vadd.f32 %v6272, %v6148
    %v6274 = vadd.f32 %v6273, %v6150
    %v6275 = vadd.f32 %v6274, %v6152
    %v6276 = vadd.f32 %v6275, %v6154
    %v6277 = vadd.f32 %v6276, %v6156
    %v6278 = vadd.f32 %v6277, %v6158
    %v6279 = vadd.f32 %v6278, %v6160
    %v6280 = vadd.f32 %v6279, %v6162
    %v6281 = vadd.f32 %v6280, %v6164
    %v6282 = vadd.f32 %v6281, %v6166
    %v6283 = vadd.f32 %v6282, %v6168
    %v6284 = vadd.f32 %v6283, %v6170
    %v6285 = vadd.f32 %v6284, %v6172
    %v6286 = vadd.f32 %v6285, %v6174
    %v6287 = vadd.f32 %v6286, %v6176
    %v6288 = vadd.f32 %v6287, %v6178
    %v6289 = vadd.f32 %v6288, %v6180
    %v6290 = vadd.f32 %v6289, %v6182
    %v6291 = vadd.f32 %v6290, %v6184
    %v6292 = vadd.f32 %v6291, %v6186
    %v6293 = vadd.f32 %v6292, %v6188
    %v6294 = vadd.f32 %v6293, %v6190
    %v6295 = vadd.f32 %v6294, %v6192
    %v6296 = vadd.f32 %v6295, %v6194
    %v6297 = vadd.f32 %v6296, %v6196
    %v6298 = vadd.f32 %v6297, %v6198
    %v6299 = vadd.f32 %v6298, %v6200
    %v6300 = vadd.f32 %v6299, %v6202
    %v6301 = vadd.f32 %v6300, %v6204
    %v6302 = vadd.f32 %v6301, %v6206
    %v6303 = vadd.f32 %v6302, %v6208
    %v6304 = vadd.f32 %v6303, %v6210
    %v6305 = vadd.f32 %v6304, %v6212
    %v6306 = vadd.f32 %v6305, %v6214
    %v6307 = vadd.f32 %v6306, %v6216
    %v6308 = vadd.f32 %v6307, %v6218
    %v6309 = vadd.f32 %v6308, %v6220
    %v6310 = vadd.f32 %v6309, %v6222
    %v6311 = vadd.f32 %v6310, %v6224
    %v6312 = vadd.f32 %v6311, %v6226
    %v6313 = vadd.f32 %v6312, %v6228
    %v6314 = vadd.f32 %v6313, %v6230
    %v6315 = vadd.f32 %v6314, %v6232
    %v6316 = vadd.f32 %v6315, %v6234
    %v6317 = vadd.f32 %v6316, %v6236
    %v6318 = vadd.f32 %v6317, %v6238
    %v6319 = vadd.f32 %v6318, %v6240
    %v6320 = vadd.f32 %v6319, %v6242
    %v6321 = vadd.f32 %v6320, %v6244
    %v6322 = vadd.f32 %v6321, %v6246
    %v6323 = vadd.f32 %v6322, %v6248
    %v6324 = vadd.f32 %v6323, %v6250
    %v6325 = vadd.f32 %v6324, %v6252
    %v6326 = vadd.f32 %v6325, %v6254
    %v6327 = vadd.f32 %v6326, %v6256
    %v6328 = vadd.f32 %v6327, %v6258
    %v6329 = vadd.f32 %v6328, %v6260
    %v6330 = vadd.f32 %v6329, %v6262
    %v6331 = vadd.f32 %v6330, %v6264
    %v6332 = vadd.f32 %v6331, %v6266
    %v6333 = vadd.f32 %v6332, %v6268
    %v6334 = vadd.f32 %v6333, %v6270
    %v6335 = vrot.slane %v6334, 4
    %v6336 = vadd.f32 %v6334, %v6335
    %v6337 = vrot.slane %v6336, 2
    %v6338 = vadd.f32 %v6336, %v6337
    %v6339 = vrot.slane %v6338, 1
    %v6340 = vadd.f32 %v6338, %v6339
    %v6341 = vadd.f32 %v6145, %v6147
    %v6342 = vadd.f32 %v6341, %v6149
    %v6343 = vadd.f32 %v6342, %v6151
    %v6344 = vadd.f32 %v6343, %v6153
    %v6345 = vadd.f32 %v6344, %v6155
    %v6346 = vadd.f32 %v6345, %v6157
    %v6347 = vadd.f32 %v6346, %v6159
    %v6348 = vadd.f32 %v6347, %v6161
    %v6349 = vadd.f32 %v6348, %v6163
    %v6350 = vadd.f32 %v6349, %v6165
    %v6351 = vadd.f32 %v6350, %v6167
    %v6352 = vadd.f32 %v6351, %v6169
    %v6353 = vadd.f32 %v6352, %v6171
    %v6354 = vadd.f32 %v6353, %v6173
    %v6355 = vadd.f32 %v6354, %v6175
    %v6356 = vadd.f32 %v6355, %v6177
    %v6357 = vadd.f32 %v6356, %v6179
    %v6358 = vadd.f32 %v6357, %v6181
    %v6359 = vadd.f32 %v6358, %v6183
    %v6360 = vadd.f32 %v6359, %v6185
    %v6361 = vadd.f32 %v6360, %v6187
    %v6362 = vadd.f32 %v6361, %v6189
    %v6363 = vadd.f32 %v6362, %v6191
    %v6364 = vadd.f32 %v6363, %v6193
    %v6365 = vadd.f32 %v6364, %v6195
    %v6366 = vadd.f32 %v6365, %v6197
    %v6367 = vadd.f32 %v6366, %v6199
    %v6368 = vadd.f32 %v6367, %v6201
    %v6369 = vadd.f32 %v6368, %v6203
    %v6370 = vadd.f32 %v6369, %v6205
    %v6371 = vadd.f32 %v6370, %v6207
    %v6372 = vadd.f32 %v6371, %v6209
    %v6373 = vadd.f32 %v6372, %v6211
    %v6374 = vadd.f32 %v6373, %v6213
    %v6375 = vadd.f32 %v6374, %v6215
    %v6376 = vadd.f32 %v6375, %v6217
    %v6377 = vadd.f32 %v6376, %v6219
    %v6378 = vadd.f32 %v6377, %v6221
    %v6379 = vadd.f32 %v6378, %v6223
    %v6380 = vadd.f32 %v6379, %v6225
    %v6381 = vadd.f32 %v6380, %v6227
    %v6382 = vadd.f32 %v6381, %v6229
    %v6383 = vadd.f32 %v6382, %v6231
    %v6384 = vadd.f32 %v6383, %v6233
    %v6385 = vadd.f32 %v6384, %v6235
    %v6386 = vadd.f32 %v6385, %v6237
    %v6387 = vadd.f32 %v6386, %v6239
    %v6388 = vadd.f32 %v6387, %v6241
    %v6389 = vadd.f32 %v6388, %v6243
    %v6390 = vadd.f32 %v6389, %v6245
    %v6391 = vadd.f32 %v6390, %v6247
    %v6392 = vadd.f32 %v6391, %v6249
    %v6393 = vadd.f32 %v6392, %v6251
    %v6394 = vadd.f32 %v6393, %v6253
    %v6395 = vadd.f32 %v6394, %v6255
    %v6396 = vadd.f32 %v6395, %v6257
    %v6397 = vadd.f32 %v6396, %v6259
    %v6398 = vadd.f32 %v6397, %v6261
    %v6399 = vadd.f32 %v6398, %v6263
    %v6400 = vadd.f32 %v6399, %v6265
    %v6401 = vadd.f32 %v6400, %v6267
    %v6402 = vadd.f32 %v6401, %v6269
    %v6403 = vadd.f32 %v6402, %v6271
    %v6404 = vrot.slane %v6403, 4
    %v6405 = vadd.f32 %v6403, %v6404
    %v6406 = vrot.slane %v6405, 2
    %v6407 = vadd.f32 %v6405, %v6406
    %v6408 = vrot.slane %v6407, 1
    %v6409 = vadd.f32 %v6407, %v6408
    %v6412 = vrot.slane %v6409, 7
    %v6413 = vsel %vm6134, %v6340, %v6412
    %v6415 = vadd.f32 %v6143, %v6413
    %6416 = vst.msk [vmem:[#allocation4] sm:$0x3] %vm6141, %v6415
    // Predicated region
    $region14: #{tpu_custom_call.1} parent=1 // pred_check
      _
    $region15: #{tpu_custom_call.1} parent=1 // pred_check_branch
      %6418 = sbr.rel (0) target = $region17
    $region16: #{tpu_custom_call.1} parent=1 // pred_region
      %6420 = vsyncadd [#allocation3], 0
      %s6422 = sshll.u32 [#allocation2], 4
      %s6423 = int_to_ptr.vmem [resolvable:$true] %s6422
      %s6424 = sshll.u32 %s2, 4
      %s6425 = int_to_ptr.hbm [resolvable:$true] %s6424
      %6427 = dma.vmem_to_hbm [thread:$0]  %s6423, 32, %s6425, [#allocation3]
    $region17: #{tpu_custom_call.1} parent=1 // pred_fallthru
      _
    // Predicated region
    $region18: #{tpu_custom_call.1} parent=1 // pred_check
      _
    $region19: #{tpu_custom_call.1} parent=1 // pred_check_branch
      %6429 = sbr.rel (0) target = $region21
    $region20: #{tpu_custom_call.1} parent=1 // pred_region
      %6431 = vsyncadd [#allocation5], 0
      %s6433 = sshll.u32 [#allocation4], 4
      %s6434 = int_to_ptr.vmem [resolvable:$true] %s6433
      %s6435 = sshll.u32 %s3, 4
      %s6436 = int_to_ptr.hbm [resolvable:$true] %s6435
      %6438 = dma.vmem_to_hbm [thread:$0]  %s6434, 32, %s6436, [#allocation5]
    $region21: #{tpu_custom_call.1} parent=1 // pred_fallthru
      _
    // Predicated region
    $region22: #{tpu_custom_call.1} parent=1 // pred_check
      _
    $region23: #{tpu_custom_call.1} parent=1 // pred_check_branch
      %6440 = sbr.rel (0) target = $region25
    $region24: #{tpu_custom_call.1} parent=1 // pred_region
      %6442 = dma.done [#allocation3], 32
    $region25: #{tpu_custom_call.1} parent=1 // pred_fallthru
      _
    // Predicated region
    $region26: #{tpu_custom_call.1} parent=1 // pred_check
      _
    $region27: #{tpu_custom_call.1} parent=1 // pred_check_branch
      %6444 = sbr.rel (0) target = $region29
    $region28: #{tpu_custom_call.1} parent=1 // pred_region
      %6446 = dma.done [#allocation5], 32
    $region29: #{tpu_custom_call.1} parent=1 // pred_fallthru
      _
    %6447 = vsyncpa [#allocation3], 1
    %6448 = vsyncpa [#allocation5], 1

</llo_original>
